<compile_context>
chip_gen: v5e
topology: v5e:2x2
jax: 0.10.0
libtpu: 0.0.40
codegen_flags: <defaults>
</compile_context>

<pallas_src>
import functools

import jax
import jax.numpy as jnp
from jax.experimental import pallas as pl
from jax.experimental.pallas import tpu as pltpu

_LN_EPS = 1e-5                 # nn.LayerNorm default eps
_SQRT_HALF = 0.7071067811865476


# ----------------------------------------------------------------------------
# In-kernel math helpers (float32, VPU/EUP only)
# ----------------------------------------------------------------------------
def _erf_approx(z):
    # Abramowitz & Stegun 7.1.26, |err| < 1.5e-7 -> float32-exact for GELU.
    a1, a2, a3, a4, a5 = (0.254829592, -0.284496736, 1.421413741,
                          -1.453152027, 1.061405429)
    p = 0.3275911
    sgn = jnp.where(z >= 0.0, 1.0, -1.0)
    az = jnp.abs(z)
    t = 1.0 / (1.0 + p * az)
    poly = ((((a5 * t + a4) * t + a3) * t + a2) * t + a1) * t
    return sgn * (1.0 - poly * jnp.exp(-az * az))


def _gelu_exact(z):
    # erf-based GELU == PyTorch nn.GELU(approximate='none') default.
    return 0.5 * z * (1.0 + _erf_approx(z * _SQRT_HALF))


def _layernorm(v, gamma, beta):
    mu = jnp.mean(v, axis=-1, keepdims=True)
    d = v - mu
    var = jnp.mean(d * d, axis=-1, keepdims=True)
    return d * jax.lax.rsqrt(var + _LN_EPS) * gamma + beta


# ----------------------------------------------------------------------------
# Fused transformer-block kernel.  Grid = (batch, query_tile); each step sees
# the FULL sequence of one batch element (needed for K/V) and produces one
# query tile of the output.
# ----------------------------------------------------------------------------
def _block_kernel(x_ref, g1_ref, b1_ref,
                  wq_ref, wkv_ref, wp_ref, bp_ref,
                  g2_ref, b2_ref,
                  w1_ref, bf1_ref, w2_ref, bf2_ref,
                  o_ref, *, num_heads, q_tile):
    n_tok = x_ref.shape[1]
    dim = x_ref.shape[2]
    hd = dim // num_heads

    row0 = pl.multiple_of(pl.program_id(1) * q_tile, q_tile)
    x_q = x_ref[0, pl.ds(row0, q_tile), :]            # (tq, C) f32 query rows
    x_all = x_ref[0]                                  # (N, C)  f32 full sequence

    g1 = g1_ref[...]
    b1 = b1_ref[...]
    xn_all = _layernorm(x_all, g1, b1).astype(jnp.bfloat16)   # feeds kv linear
    xn_q = _layernorm(x_q, g1, b1).astype(jnp.bfloat16)       # feeds q linear

    # Lane-dense fused linears (attention scale pre-folded into wq at init).
    q_slab = jnp.dot(xn_q, wq_ref[...],
                     preferred_element_type=jnp.float32)       # (tq, C)
    kv_slab = jnp.dot(xn_all, wkv_ref[...],
                      preferred_element_type=jnp.float32)      # (N, 2C)

    # Head-major stacks (static lane slices; stacking on a new leading axis).
    qh = jnp.stack([q_slab[:, h * hd:(h + 1) * hd]
                    for h in range(num_heads)], axis=0).astype(jnp.bfloat16)
    kh = jnp.stack([kv_slab[:, h * hd:(h + 1) * hd]
                    for h in range(num_heads)], axis=0).astype(jnp.bfloat16)
    vh = jnp.stack([kv_slab[:, dim + h * hd: dim + (h + 1) * hd]
                    for h in range(num_heads)], axis=0).astype(jnp.bfloat16)

    # Batched-over-heads attention (scale already folded into q).
    s = jnp.einsum("hqd,hkd->hqk", qh, kh,
                   preferred_element_type=jnp.float32)         # (nh, tq, N) f32
    s = s - jnp.max(s, axis=-1, keepdims=True)                 # stable softmax
    e = jnp.exp(s)
    p = e * pl.reciprocal(jnp.sum(e, axis=-1, keepdims=True), approx=True)
    o = jnp.einsum("hqk,hkd->hqd", p.astype(jnp.bfloat16), vh,
                   preferred_element_type=jnp.float32)         # (nh, tq, hd)

    # Single output projection over the reassembled (tq, C) slab.
    o_slab = jnp.concatenate([o[h] for h in range(num_heads)],
                             axis=-1).astype(jnp.bfloat16)     # (tq, C)
    attn = jnp.dot(o_slab, wp_ref[...],
                   preferred_element_type=jnp.float32) + bp_ref[...]
    x1 = x_q + attn                                            # residual 1

    # ---------------- MLP branch: LN -> fc1 -> GELU -> fc2 -----------------
    xn2 = _layernorm(x1, g2_ref[...], b2_ref[...]).astype(jnp.bfloat16)
    hmid = jnp.dot(xn2, w1_ref[...],
                   preferred_element_type=jnp.float32) + bf1_ref[...]
    hmid = _gelu_exact(hmid)
    y = jnp.dot(hmid.astype(jnp.bfloat16), w2_ref[...],
                preferred_element_type=jnp.float32) + bf2_ref[...]

    o_ref[0] = (x1 + y).astype(o_ref.dtype)                    # residual 2


def block_forward(x, params, *, num_heads):
    """Fused Block forward.  x: (B, N, C) float32 -> (B, N, C) float32."""
    B, N, C = x.shape
    hidden = params["w_fc1"].shape[1]

    # Second parallel grid axis (query tiles) keeps both v7x TensorCores busy
    # even when B == 1 / B is odd.  Tile must keep the sublane dim a multiple
    # of 8.
    num_q_tiles = 2 if (N % 16 == 0 and N >= 16) else 1
    q_tile = N // num_q_tiles

    def rep(shape):
        nd = len(shape)
        return pl.BlockSpec(shape, lambda b, qi, _nd=nd: (0,) * _nd)

    in_specs = [
        pl.BlockSpec((1, N, C), lambda b, qi: (b, 0, 0)),  # full sequence (K/V)
        rep((1, C)), rep((1, C)),                          # norm1 gamma / beta
        rep((C, C)), rep((C, 2 * C)),                      # q weight, kv weight
        rep((C, C)), rep((1, C)),                          # proj weight / bias
        rep((1, C)), rep((1, C)),                          # norm2 gamma / beta
        rep((C, hidden)), rep((1, hidden)),                # fc1
        rep((hidden, C)), rep((1, C)),                     # fc2
    ]

    grid_spec = pltpu.PrefetchScalarGridSpec(
        num_scalar_prefetch=0,
        grid=(B, num_q_tiles),
        in_specs=in_specs,
        out_specs=pl.BlockSpec((1, q_tile, C), lambda b, qi: (b, qi, 0)),
    )

    w_bytes = 2 * (C * C + 2 * C * C + C * C + 2 * C * hidden) \
        + 4 * (7 * C + hidden)
    cost = pl.CostEstimate(
        flops=int(2 * B * N * (4 * C * C + 2 * N * C + 2 * C * hidden)),
        transcendentals=int(B * N * (num_heads * N + hidden)),
        bytes_accessed=int(4 * B * N * C * (num_q_tiles + 1)
                           + B * num_q_tiles * w_bytes),
    )

    return pl.pallas_call(
        functools.partial(_block_kernel, num_heads=num_heads, q_tile=q_tile),
        out_shape=jax.ShapeDtypeStruct((B, N, C), jnp.float32),
        grid_spec=grid_spec,
        compiler_params=pltpu.CompilerParams(
            dimension_semantics=("parallel", "parallel"),
            vmem_limit_bytes=32 * 1024 * 1024),
        cost_estimate=cost,
    )(x, params["g1"], params["b1"],
      params["w_q"], params["w_kv"], params["w_proj"], params["b_proj"],
      params["g2"], params["b2"],
      params["w_fc1"], params["b_fc1"], params["w_fc2"], params["b_fc2"])


# ----------------------------------------------------------------------------
# Parameter init (weights pre-cast to bf16 once; attention scale folded into
# the q weight; kv-linear column order matches the torch layout: [k | v],
# head-major within each half).
# ----------------------------------------------------------------------------
def init_block_params(key, dim, num_heads, mlp_ratio=4.0):
    hd = dim // num_heads
    scale = float(hd) ** -0.5
    hidden = int(dim * mlp_ratio)
    ks = jax.random.split(key, 12)

    def lin(k, fan_in, fan_out):
        return jax.random.normal(k, (fan_in, fan_out), jnp.float32) * (1.0 / fan_in) ** 0.5

    wq = lin(ks[0], dim, dim) * scale        # fold head_dim**-0.5 at init
    wkv = lin(ks[1], dim, 2 * dim)           # columns: [k heads | v heads]
    wp = lin(ks[2], dim, dim)
    wfc1 = lin(ks[3], dim, hidden)
    wfc2 = lin(ks[4], hidden, dim)

    return dict(
        g1=(1.0 + 0.1 * jax.random.normal(ks[5], (1, dim))).astype(jnp.float32),
        b1=0.1 * jax.random.normal(ks[6], (1, dim), jnp.float32),
        g2=(1.0 + 0.1 * jax.random.normal(ks[7], (1, dim))).astype(jnp.float32),
        b2=0.1 * jax.random.normal(ks[8], (1, dim), jnp.float32),
        w_q=wq.astype(jnp.bfloat16),
        w_kv=wkv.astype(jnp.bfloat16),
        w_proj=wp.astype(jnp.bfloat16),
        b_proj=0.1 * jax.random.normal(ks[9], (1, dim), jnp.float32),
        w_fc1=wfc1.astype(jnp.bfloat16),
        b_fc1=0.1 * jax.random.normal(ks[10], (1, hidden), jnp.float32),
        w_fc2=wfc2.astype(jnp.bfloat16),
        b_fc2=0.1 * jax.random.normal(ks[11], (1, dim), jnp.float32),
    )


# ----------------------------------------------------------------------------
# Pure-JAX reference (same bf16 matmul precision, exact erf GELU / softmax)
# ----------------------------------------------------------------------------
def block_reference(x, p, *, num_heads):
    B, N, C = x.shape
    hd = C // num_heads
    bf = lambda a: a.astype(jnp.bfloat16)

    def ln(v, g, b):
        mu = jnp.mean(v, axis=-1, keepdims=True)
        var = jnp.mean((v - mu) ** 2, axis=-1, keepdims=True)
        return (v - mu) * jax.lax.rsqrt(var + _LN_EPS) * g + b

    xn = ln(x, p["g1"], p["b1"])
    q = jnp.einsum("bnc,cd->bnd", bf(xn), p["w_q"],
                   preferred_element_type=jnp.float32)
    kv = jnp.einsum("bnc,cd->bnd", bf(xn), p["w_kv"],
                    preferred_element_type=jnp.float32)
    q = bf(q).reshape(B, N, num_heads, hd).transpose(0, 2, 1, 3)
    k = bf(kv[..., :C]).reshape(B, N, num_heads, hd).transpose(0, 2, 1, 3)
    v = bf(kv[..., C:]).reshape(B, N, num_heads, hd).transpose(0, 2, 1, 3)
    s = jnp.einsum("bhqd,bhkd->bhqk", q, k, preferred_element_type=jnp.float32)
    a = jax.nn.softmax(s, axis=-1)
    o = jnp.einsum("bhqk,bhkd->bhqd", bf(a), v, preferred_element_type=jnp.float32)
    o = bf(o.transpose(0, 2, 1, 3).reshape(B, N, C))
    attn = jnp.einsum("bnc,cd->bnd", o, p["w_proj"],
                      preferred_element_type=jnp.float32) + p["b_proj"]
    x1 = x + attn
    xn2 = ln(x1, p["g2"], p["b2"])
    h = jnp.einsum("bnc,cf->bnf", bf(xn2), p["w_fc1"],
                   preferred_element_type=jnp.float32) + p["b_fc1"]
    h = jax.nn.gelu(h, approximate=False)
    y = jnp.einsum("bnf,fc->bnc", bf(h), p["w_fc2"],
                   preferred_element_type=jnp.float32) + p["b_fc2"]
    return x1 + y


# ----------------------------------------------------------------------------
if __name__ == "__main__":
    B, H, W = 2, 8, 16          # N = H*W tokens (H/W only feed the sr_ratio>1 path)
    dim, num_heads = 64, 8      # head_dim = 8
    N = H * W

    root = jax.random.PRNGKey(0)
    k_x, k_p = jax.random.split(root)
    x = jax.random.normal(k_x, (B, N, dim), jnp.float32)
    params = init_block_params(k_p, dim, num_heads, mlp_ratio=4.0)

    fwd = jax.jit(functools.partial(block_forward, num_heads=num_heads))
    out = jax.block_until_ready(fwd(x, params))

    ref = jax.block_until_ready(block_reference(x, params, num_heads=num_heads))

    assert out.shape == (B, N, dim)
    assert bool(jnp.all(jnp.isfinite(out)))
    max_err = float(jnp.max(jnp.abs(out - ref)))
    assert max_err < 5e-2, f"mismatch vs reference: max abs err {max_err}"
    print("KERNEL_OK")
</pallas_src>

<mosaic_0001>
module attributes {stable_mosaic.version = 11 : i64} {
  func.func @_block_kernel(%arg0: i32, %arg1: i32, %arg2: memref<1x128x64xf32, #tpu.memory_space<vmem>>, %arg3: memref<1x64xf32, #tpu.memory_space<vmem>>, %arg4: memref<1x64xf32, #tpu.memory_space<vmem>>, %arg5: memref<64x64xbf16, #tpu.memory_space<vmem>>, %arg6: memref<64x128xbf16, #tpu.memory_space<vmem>>, %arg7: memref<64x64xbf16, #tpu.memory_space<vmem>>, %arg8: memref<1x64xf32, #tpu.memory_space<vmem>>, %arg9: memref<1x64xf32, #tpu.memory_space<vmem>>, %arg10: memref<1x64xf32, #tpu.memory_space<vmem>>, %arg11: memref<64x256xbf16, #tpu.memory_space<vmem>>, %arg12: memref<1x256xf32, #tpu.memory_space<vmem>>, %arg13: memref<256x64xbf16, #tpu.memory_space<vmem>>, %arg14: memref<1x64xf32, #tpu.memory_space<vmem>>, %arg15: memref<1x64x64xf32, #tpu.memory_space<vmem>>) attributes {dimension_semantics = [#tpu.dimension_semantics<parallel>, #tpu.dimension_semantics<parallel>], iteration_bounds = array<i64: 2, 2>, scalar_prefetch = 0 : i64, scratch_operands = 0 : i64, tpu.core_type = #tpu.core_type<tc>, window_params = [{transform_indices = @transform_0, window_bounds = array<i64: 1, 128, 64>}, {pipeline_mode = #tpu.pipeline_mode<synchronous>, transform_indices = @transform_1, window_bounds = array<i64: 1, 64>}, {pipeline_mode = #tpu.pipeline_mode<synchronous>, transform_indices = @transform_2, window_bounds = array<i64: 1, 64>}, {pipeline_mode = #tpu.pipeline_mode<synchronous>, transform_indices = @transform_3, window_bounds = array<i64: 64, 64>}, {pipeline_mode = #tpu.pipeline_mode<synchronous>, transform_indices = @transform_4, window_bounds = array<i64: 64, 128>}, {pipeline_mode = #tpu.pipeline_mode<synchronous>, transform_indices = @transform_5, window_bounds = array<i64: 64, 64>}, {pipeline_mode = #tpu.pipeline_mode<synchronous>, transform_indices = @transform_6, window_bounds = array<i64: 1, 64>}, {pipeline_mode = #tpu.pipeline_mode<synchronous>, transform_indices = @transform_7, window_bounds = array<i64: 1, 64>}, {pipeline_mode = #tpu.pipeline_mode<synchronous>, transform_indices = @transform_8, window_bounds = array<i64: 1, 64>}, {pipeline_mode = #tpu.pipeline_mode<synchronous>, transform_indices = @transform_9, window_bounds = array<i64: 64, 256>}, {pipeline_mode = #tpu.pipeline_mode<synchronous>, transform_indices = @transform_10, window_bounds = array<i64: 1, 256>}, {pipeline_mode = #tpu.pipeline_mode<synchronous>, transform_indices = @transform_11, window_bounds = array<i64: 256, 64>}, {pipeline_mode = #tpu.pipeline_mode<synchronous>, transform_indices = @transform_12, window_bounds = array<i64: 1, 64>}, {transform_indices = @transform_13, window_bounds = array<i64: 1, 64, 64>}]} {
    %c64_i32 = arith.constant 64 : i32
    %0 = arith.muli %arg1, %c64_i32 : i32
    %1 = tpu.assume_multiple %0, 64 : i32
    %c0 = arith.constant 0 : index
    %2 = arith.index_cast %1 : i32 to index
    %c0_0 = arith.constant 0 : index
    %3 = vector.load %arg2[%c0, %2, %c0_0] : memref<1x128x64xf32, #tpu.memory_space<vmem>>, vector<1x64x64xf32>
    %4 = vector.shape_cast %3 : vector<1x64x64xf32> to vector<64x64xf32>
    %c0_1 = arith.constant 0 : index
    %c0_2 = arith.constant 0 : index
    %c0_3 = arith.constant 0 : index
    %5 = vector.load %arg2[%c0_1, %c0_2, %c0_3] : memref<1x128x64xf32, #tpu.memory_space<vmem>>, vector<1x128x64xf32>
    %6 = vector.shape_cast %5 : vector<1x128x64xf32> to vector<128x64xf32>
    %c0_4 = arith.constant 0 : index
    %c0_5 = arith.constant 0 : index
    %7 = vector.load %arg3[%c0_4, %c0_5] : memref<1x64xf32, #tpu.memory_space<vmem>>, vector<1x64xf32>
    %c0_6 = arith.constant 0 : index
    %c0_7 = arith.constant 0 : index
    %8 = vector.load %arg4[%c0_6, %c0_7] : memref<1x64xf32, #tpu.memory_space<vmem>>, vector<1x64xf32>
    %cst = arith.constant dense<0.000000e+00> : vector<128xf32>
    %9 = vector.multi_reduction <add>, %6, %cst [1] : vector<128x64xf32> to vector<128xf32>
    %10 = vector.shape_cast %9 : vector<128xf32> to vector<128x1xf32>
    %cst_8 = arith.constant 6.400000e+01 : f32
    %11 = vector.broadcast %cst_8 : f32 to vector<128x1xf32>
    %12 = arith.divf %10, %11 : vector<128x1xf32>
    %13 = vector.broadcast %12 : vector<128x1xf32> to vector<128x64xf32>
    %14 = arith.subf %6, %13 : vector<128x64xf32>
    %15 = arith.mulf %14, %14 : vector<128x64xf32>
    %cst_9 = arith.constant dense<0.000000e+00> : vector<128xf32>
    %16 = vector.multi_reduction <add>, %15, %cst_9 [1] : vector<128x64xf32> to vector<128xf32>
    %17 = vector.shape_cast %16 : vector<128xf32> to vector<128x1xf32>
    %cst_10 = arith.constant 6.400000e+01 : f32
    %18 = vector.broadcast %cst_10 : f32 to vector<128x1xf32>
    %19 = arith.divf %17, %18 : vector<128x1xf32>
    %cst_11 = arith.constant 9.99999974E-6 : f32
    %20 = vector.broadcast %cst_11 : f32 to vector<128x1xf32>
    %21 = arith.addf %19, %20 : vector<128x1xf32>
    %22 = math.rsqrt %21 : vector<128x1xf32>
    %23 = vector.broadcast %22 : vector<128x1xf32> to vector<128x64xf32>
    %24 = arith.mulf %14, %23 : vector<128x64xf32>
    %25 = vector.broadcast %7 : vector<1x64xf32> to vector<128x64xf32>
    %26 = arith.mulf %24, %25 : vector<128x64xf32>
    %27 = vector.broadcast %8 : vector<1x64xf32> to vector<128x64xf32>
    %28 = arith.addf %26, %27 : vector<128x64xf32>
    %29 = arith.truncf %28 : vector<128x64xf32> to vector<128x64xbf16>
    %cst_12 = arith.constant dense<0.000000e+00> : vector<64xf32>
    %30 = vector.multi_reduction <add>, %4, %cst_12 [1] : vector<64x64xf32> to vector<64xf32>
    %31 = vector.shape_cast %30 : vector<64xf32> to vector<64x1xf32>
    %cst_13 = arith.constant 6.400000e+01 : f32
    %32 = vector.broadcast %cst_13 : f32 to vector<64x1xf32>
    %33 = arith.divf %31, %32 : vector<64x1xf32>
    %34 = vector.broadcast %33 : vector<64x1xf32> to vector<64x64xf32>
    %35 = arith.subf %4, %34 : vector<64x64xf32>
    %36 = arith.mulf %35, %35 : vector<64x64xf32>
    %cst_14 = arith.constant dense<0.000000e+00> : vector<64xf32>
    %37 = vector.multi_reduction <add>, %36, %cst_14 [1] : vector<64x64xf32> to vector<64xf32>
    %38 = vector.shape_cast %37 : vector<64xf32> to vector<64x1xf32>
    %cst_15 = arith.constant 6.400000e+01 : f32
    %39 = vector.broadcast %cst_15 : f32 to vector<64x1xf32>
    %40 = arith.divf %38, %39 : vector<64x1xf32>
    %cst_16 = arith.constant 9.99999974E-6 : f32
    %41 = vector.broadcast %cst_16 : f32 to vector<64x1xf32>
    %42 = arith.addf %40, %41 : vector<64x1xf32>
    %43 = math.rsqrt %42 : vector<64x1xf32>
    %44 = vector.broadcast %43 : vector<64x1xf32> to vector<64x64xf32>
    %45 = arith.mulf %35, %44 : vector<64x64xf32>
    %46 = vector.broadcast %7 : vector<1x64xf32> to vector<64x64xf32>
    %47 = arith.mulf %45, %46 : vector<64x64xf32>
    %48 = vector.broadcast %8 : vector<1x64xf32> to vector<64x64xf32>
    %49 = arith.addf %47, %48 : vector<64x64xf32>
    %50 = arith.truncf %49 : vector<64x64xf32> to vector<64x64xbf16>
    %c0_17 = arith.constant 0 : index
    %c0_18 = arith.constant 0 : index
    %51 = vector.load %arg5[%c0_17, %c0_18] : memref<64x64xbf16, #tpu.memory_space<vmem>>, vector<64x64xbf16>
    %cst_19 = arith.constant dense<0.000000e+00> : vector<64x64xf32>
    %52 = tpu.matmul %50, %51, %cst_19 {dimension_numbers = #tpu.dot_dimension_numbers<[1], [0], [0], [1], [0, 0, 1, 1], [], []>} : vector<64x64xbf16>, vector<64x64xbf16>, vector<64x64xf32> -> vector<64x64xf32>
    %c0_20 = arith.constant 0 : index
    %c0_21 = arith.constant 0 : index
    %53 = vector.load %arg6[%c0_20, %c0_21] : memref<64x128xbf16, #tpu.memory_space<vmem>>, vector<64x128xbf16>
    %cst_22 = arith.constant dense<0.000000e+00> : vector<128x128xf32>
    %54 = tpu.matmul %29, %53, %cst_22 {dimension_numbers = #tpu.dot_dimension_numbers<[1], [0], [0], [1], [0, 0, 1, 1], [], []>} : vector<128x64xbf16>, vector<64x128xbf16>, vector<128x128xf32> -> vector<128x128xf32>
    %55 = vector.extract_strided_slice %52 {offsets = [0, 0], sizes = [64, 8], strides = [1, 1]} : vector<64x64xf32> to vector<64x8xf32>
    %56 = vector.extract_strided_slice %52 {offsets = [0, 8], sizes = [64, 8], strides = [1, 1]} : vector<64x64xf32> to vector<64x8xf32>
    %57 = vector.extract_strided_slice %52 {offsets = [0, 16], sizes = [64, 8], strides = [1, 1]} : vector<64x64xf32> to vector<64x8xf32>
    %58 = vector.extract_strided_slice %52 {offsets = [0, 24], sizes = [64, 8], strides = [1, 1]} : vector<64x64xf32> to vector<64x8xf32>
    %59 = vector.extract_strided_slice %52 {offsets = [0, 32], sizes = [64, 8], strides = [1, 1]} : vector<64x64xf32> to vector<64x8xf32>
    %60 = vector.extract_strided_slice %52 {offsets = [0, 40], sizes = [64, 8], strides = [1, 1]} : vector<64x64xf32> to vector<64x8xf32>
    %61 = vector.extract_strided_slice %52 {offsets = [0, 48], sizes = [64, 8], strides = [1, 1]} : vector<64x64xf32> to vector<64x8xf32>
    %62 = vector.extract_strided_slice %52 {offsets = [0, 56], sizes = [64, 8], strides = [1, 1]} : vector<64x64xf32> to vector<64x8xf32>
    %63 = vector.shape_cast %55 : vector<64x8xf32> to vector<1x64x8xf32>
    %64 = vector.shape_cast %56 : vector<64x8xf32> to vector<1x64x8xf32>
    %65 = vector.shape_cast %57 : vector<64x8xf32> to vector<1x64x8xf32>
    %66 = vector.shape_cast %58 : vector<64x8xf32> to vector<1x64x8xf32>
    %67 = vector.shape_cast %59 : vector<64x8xf32> to vector<1x64x8xf32>
    %68 = vector.shape_cast %60 : vector<64x8xf32> to vector<1x64x8xf32>
    %69 = vector.shape_cast %61 : vector<64x8xf32> to vector<1x64x8xf32>
    %70 = vector.shape_cast %62 : vector<64x8xf32> to vector<1x64x8xf32>
    %71 = tpu.concatenate %63, %64, %65, %66, %67, %68, %69, %70 in 0 : vector<1x64x8xf32>, vector<1x64x8xf32>, vector<1x64x8xf32>, vector<1x64x8xf32>, vector<1x64x8xf32>, vector<1x64x8xf32>, vector<1x64x8xf32>, vector<1x64x8xf32> -> vector<8x64x8xf32>
    %72 = arith.truncf %71 : vector<8x64x8xf32> to vector<8x64x8xbf16>
    %73 = vector.extract_strided_slice %54 {offsets = [0, 0], sizes = [128, 8], strides = [1, 1]} : vector<128x128xf32> to vector<128x8xf32>
    %74 = vector.extract_strided_slice %54 {offsets = [0, 8], sizes = [128, 8], strides = [1, 1]} : vector<128x128xf32> to vector<128x8xf32>
    %75 = vector.extract_strided_slice %54 {offsets = [0, 16], sizes = [128, 8], strides = [1, 1]} : vector<128x128xf32> to vector<128x8xf32>
    %76 = vector.extract_strided_slice %54 {offsets = [0, 24], sizes = [128, 8], strides = [1, 1]} : vector<128x128xf32> to vector<128x8xf32>
    %77 = vector.extract_strided_slice %54 {offsets = [0, 32], sizes = [128, 8], strides = [1, 1]} : vector<128x128xf32> to vector<128x8xf32>
    %78 = vector.extract_strided_slice %54 {offsets = [0, 40], sizes = [128, 8], strides = [1, 1]} : vector<128x128xf32> to vector<128x8xf32>
    %79 = vector.extract_strided_slice %54 {offsets = [0, 48], sizes = [128, 8], strides = [1, 1]} : vector<128x128xf32> to vector<128x8xf32>
    %80 = vector.extract_strided_slice %54 {offsets = [0, 56], sizes = [128, 8], strides = [1, 1]} : vector<128x128xf32> to vector<128x8xf32>
    %81 = vector.shape_cast %73 : vector<128x8xf32> to vector<1x128x8xf32>
    %82 = vector.shape_cast %74 : vector<128x8xf32> to vector<1x128x8xf32>
    %83 = vector.shape_cast %75 : vector<128x8xf32> to vector<1x128x8xf32>
    %84 = vector.shape_cast %76 : vector<128x8xf32> to vector<1x128x8xf32>
    %85 = vector.shape_cast %77 : vector<128x8xf32> to vector<1x128x8xf32>
    %86 = vector.shape_cast %78 : vector<128x8xf32> to vector<1x128x8xf32>
    %87 = vector.shape_cast %79 : vector<128x8xf32> to vector<1x128x8xf32>
    %88 = vector.shape_cast %80 : vector<128x8xf32> to vector<1x128x8xf32>
    %89 = tpu.concatenate %81, %82, %83, %84, %85, %86, %87, %88 in 0 : vector<1x128x8xf32>, vector<1x128x8xf32>, vector<1x128x8xf32>, vector<1x128x8xf32>, vector<1x128x8xf32>, vector<1x128x8xf32>, vector<1x128x8xf32>, vector<1x128x8xf32> -> vector<8x128x8xf32>
    %90 = arith.truncf %89 : vector<8x128x8xf32> to vector<8x128x8xbf16>
    %91 = vector.extract_strided_slice %54 {offsets = [0, 64], sizes = [128, 8], strides = [1, 1]} : vector<128x128xf32> to vector<128x8xf32>
    %92 = vector.extract_strided_slice %54 {offsets = [0, 72], sizes = [128, 8], strides = [1, 1]} : vector<128x128xf32> to vector<128x8xf32>
    %93 = vector.extract_strided_slice %54 {offsets = [0, 80], sizes = [128, 8], strides = [1, 1]} : vector<128x128xf32> to vector<128x8xf32>
    %94 = vector.extract_strided_slice %54 {offsets = [0, 88], sizes = [128, 8], strides = [1, 1]} : vector<128x128xf32> to vector<128x8xf32>
    %95 = vector.extract_strided_slice %54 {offsets = [0, 96], sizes = [128, 8], strides = [1, 1]} : vector<128x128xf32> to vector<128x8xf32>
    %96 = vector.extract_strided_slice %54 {offsets = [0, 104], sizes = [128, 8], strides = [1, 1]} : vector<128x128xf32> to vector<128x8xf32>
    %97 = vector.extract_strided_slice %54 {offsets = [0, 112], sizes = [128, 8], strides = [1, 1]} : vector<128x128xf32> to vector<128x8xf32>
    %98 = vector.extract_strided_slice %54 {offsets = [0, 120], sizes = [128, 8], strides = [1, 1]} : vector<128x128xf32> to vector<128x8xf32>
    %99 = vector.shape_cast %91 : vector<128x8xf32> to vector<1x128x8xf32>
    %100 = vector.shape_cast %92 : vector<128x8xf32> to vector<1x128x8xf32>
    %101 = vector.shape_cast %93 : vector<128x8xf32> to vector<1x128x8xf32>
    %102 = vector.shape_cast %94 : vector<128x8xf32> to vector<1x128x8xf32>
    %103 = vector.shape_cast %95 : vector<128x8xf32> to vector<1x128x8xf32>
    %104 = vector.shape_cast %96 : vector<128x8xf32> to vector<1x128x8xf32>
    %105 = vector.shape_cast %97 : vector<128x8xf32> to vector<1x128x8xf32>
    %106 = vector.shape_cast %98 : vector<128x8xf32> to vector<1x128x8xf32>
    %107 = tpu.concatenate %99, %100, %101, %102, %103, %104, %105, %106 in 0 : vector<1x128x8xf32>, vector<1x128x8xf32>, vector<1x128x8xf32>, vector<1x128x8xf32>, vector<1x128x8xf32>, vector<1x128x8xf32>, vector<1x128x8xf32>, vector<1x128x8xf32> -> vector<8x128x8xf32>
    %108 = arith.truncf %107 : vector<8x128x8xf32> to vector<8x128x8xbf16>
    "tpu.trace_start"() <{level = 10 : i32, message = "hqd,hkd->hqk"}> : () -> ()
    %cst_23 = arith.constant dense<0.000000e+00> : vector<8x64x128xf32>
    %109 = tpu.matmul %72, %90, %cst_23 {dimension_numbers = #tpu.dot_dimension_numbers<[2], [2], [1], [1], [0, 0, 0, 1, 1, 1], [0], [0]>} : vector<8x64x8xbf16>, vector<8x128x8xbf16>, vector<8x64x128xf32> -> vector<8x64x128xf32>
    "tpu.trace_stop"() : () -> ()
    %cst_24 = arith.constant dense<0xFF800000> : vector<8x64xf32>
    %110 = vector.multi_reduction <maximumf>, %109, %cst_24 [2] : vector<8x64x128xf32> to vector<8x64xf32>
    %111 = vector.shape_cast %110 : vector<8x64xf32> to vector<8x64x1xf32>
    %112 = vector.broadcast %111 : vector<8x64x1xf32> to vector<8x64x128xf32>
    %113 = arith.subf %109, %112 : vector<8x64x128xf32>
    %114 = math.exp %113 : vector<8x64x128xf32>
    %cst_25 = arith.constant dense<0.000000e+00> : vector<8x64xf32>
    %115 = vector.multi_reduction <add>, %114, %cst_25 [2] : vector<8x64x128xf32> to vector<8x64xf32>
    %116 = vector.shape_cast %115 : vector<8x64xf32> to vector<8x64x1xf32>
    %117 = tpu.reciprocal %116 {approx = true} : vector<8x64x1xf32> -> vector<8x64x1xf32>
    %118 = vector.broadcast %117 : vector<8x64x1xf32> to vector<8x64x128xf32>
    %119 = arith.mulf %114, %118 : vector<8x64x128xf32>
    %120 = arith.truncf %119 : vector<8x64x128xf32> to vector<8x64x128xbf16>
    "tpu.trace_start"() <{level = 10 : i32, message = "hqk,hkd->hqd"}> : () -> ()
    %cst_26 = arith.constant dense<0.000000e+00> : vector<8x64x8xf32>
    %121 = tpu.matmul %120, %108, %cst_26 {dimension_numbers = #tpu.dot_dimension_numbers<[2], [1], [1], [2], [0, 0, 0, 1, 1, 2], [0], [0]>} : vector<8x64x128xbf16>, vector<8x128x8xbf16>, vector<8x64x8xf32> -> vector<8x64x8xf32>
    "tpu.trace_stop"() : () -> ()
    %122 = vector.extract_strided_slice %121 {offsets = [0, 0, 0], sizes = [1, 64, 8], strides = [1, 1, 1]} : vector<8x64x8xf32> to vector<1x64x8xf32>
    %123 = vector.shape_cast %122 : vector<1x64x8xf32> to vector<64x8xf32>
    %124 = vector.extract_strided_slice %121 {offsets = [1, 0, 0], sizes = [1, 64, 8], strides = [1, 1, 1]} : vector<8x64x8xf32> to vector<1x64x8xf32>
    %125 = vector.shape_cast %124 : vector<1x64x8xf32> to vector<64x8xf32>
    %126 = vector.extract_strided_slice %121 {offsets = [2, 0, 0], sizes = [1, 64, 8], strides = [1, 1, 1]} : vector<8x64x8xf32> to vector<1x64x8xf32>
    %127 = vector.shape_cast %126 : vector<1x64x8xf32> to vector<64x8xf32>
    %128 = vector.extract_strided_slice %121 {offsets = [3, 0, 0], sizes = [1, 64, 8], strides = [1, 1, 1]} : vector<8x64x8xf32> to vector<1x64x8xf32>
    %129 = vector.shape_cast %128 : vector<1x64x8xf32> to vector<64x8xf32>
    %130 = vector.extract_strided_slice %121 {offsets = [4, 0, 0], sizes = [1, 64, 8], strides = [1, 1, 1]} : vector<8x64x8xf32> to vector<1x64x8xf32>
    %131 = vector.shape_cast %130 : vector<1x64x8xf32> to vector<64x8xf32>
    %132 = vector.extract_strided_slice %121 {offsets = [5, 0, 0], sizes = [1, 64, 8], strides = [1, 1, 1]} : vector<8x64x8xf32> to vector<1x64x8xf32>
    %133 = vector.shape_cast %132 : vector<1x64x8xf32> to vector<64x8xf32>
    %134 = vector.extract_strided_slice %121 {offsets = [6, 0, 0], sizes = [1, 64, 8], strides = [1, 1, 1]} : vector<8x64x8xf32> to vector<1x64x8xf32>
    %135 = vector.shape_cast %134 : vector<1x64x8xf32> to vector<64x8xf32>
    %136 = vector.extract_strided_slice %121 {offsets = [7, 0, 0], sizes = [1, 64, 8], strides = [1, 1, 1]} : vector<8x64x8xf32> to vector<1x64x8xf32>
    %137 = vector.shape_cast %136 : vector<1x64x8xf32> to vector<64x8xf32>
    %138 = tpu.concatenate %123, %125, %127, %129, %131, %133, %135, %137 in 1 : vector<64x8xf32>, vector<64x8xf32>, vector<64x8xf32>, vector<64x8xf32>, vector<64x8xf32>, vector<64x8xf32>, vector<64x8xf32>, vector<64x8xf32> -> vector<64x64xf32>
    %139 = arith.truncf %138 : vector<64x64xf32> to vector<64x64xbf16>
    %c0_27 = arith.constant 0 : index
    %c0_28 = arith.constant 0 : index
    %140 = vector.load %arg7[%c0_27, %c0_28] : memref<64x64xbf16, #tpu.memory_space<vmem>>, vector<64x64xbf16>
    %cst_29 = arith.constant dense<0.000000e+00> : vector<64x64xf32>
    %141 = tpu.matmul %139, %140, %cst_29 {dimension_numbers = #tpu.dot_dimension_numbers<[1], [0], [0], [1], [0, 0, 1, 1], [], []>} : vector<64x64xbf16>, vector<64x64xbf16>, vector<64x64xf32> -> vector<64x64xf32>
    %c0_30 = arith.constant 0 : index
    %c0_31 = arith.constant 0 : index
    %142 = vector.load %arg8[%c0_30, %c0_31] : memref<1x64xf32, #tpu.memory_space<vmem>>, vector<1x64xf32>
    %143 = vector.broadcast %142 : vector<1x64xf32> to vector<64x64xf32>
    %144 = arith.addf %141, %143 : vector<64x64xf32>
    %145 = arith.addf %4, %144 : vector<64x64xf32>
    %c0_32 = arith.constant 0 : index
    %c0_33 = arith.constant 0 : index
    %146 = vector.load %arg9[%c0_32, %c0_33] : memref<1x64xf32, #tpu.memory_space<vmem>>, vector<1x64xf32>
    %c0_34 = arith.constant 0 : index
    %c0_35 = arith.constant 0 : index
    %147 = vector.load %arg10[%c0_34, %c0_35] : memref<1x64xf32, #tpu.memory_space<vmem>>, vector<1x64xf32>
    %cst_36 = arith.constant dense<0.000000e+00> : vector<64xf32>
    %148 = vector.multi_reduction <add>, %145, %cst_36 [1] : vector<64x64xf32> to vector<64xf32>
    %149 = vector.shape_cast %148 : vector<64xf32> to vector<64x1xf32>
    %cst_37 = arith.constant 6.400000e+01 : f32
    %150 = vector.broadcast %cst_37 : f32 to vector<64x1xf32>
    %151 = arith.divf %149, %150 : vector<64x1xf32>
    %152 = vector.broadcast %151 : vector<64x1xf32> to vector<64x64xf32>
    %153 = arith.subf %145, %152 : vector<64x64xf32>
    %154 = arith.mulf %153, %153 : vector<64x64xf32>
    %cst_38 = arith.constant dense<0.000000e+00> : vector<64xf32>
    %155 = vector.multi_reduction <add>, %154, %cst_38 [1] : vector<64x64xf32> to vector<64xf32>
    %156 = vector.shape_cast %155 : vector<64xf32> to vector<64x1xf32>
    %cst_39 = arith.constant 6.400000e+01 : f32
    %157 = vector.broadcast %cst_39 : f32 to vector<64x1xf32>
    %158 = arith.divf %156, %157 : vector<64x1xf32>
    %cst_40 = arith.constant 9.99999974E-6 : f32
    %159 = vector.broadcast %cst_40 : f32 to vector<64x1xf32>
    %160 = arith.addf %158, %159 : vector<64x1xf32>
    %161 = math.rsqrt %160 : vector<64x1xf32>
    %162 = vector.broadcast %161 : vector<64x1xf32> to vector<64x64xf32>
    %163 = arith.mulf %153, %162 : vector<64x64xf32>
    %164 = vector.broadcast %146 : vector<1x64xf32> to vector<64x64xf32>
    %165 = arith.mulf %163, %164 : vector<64x64xf32>
    %166 = vector.broadcast %147 : vector<1x64xf32> to vector<64x64xf32>
    %167 = arith.addf %165, %166 : vector<64x64xf32>
    %168 = arith.truncf %167 : vector<64x64xf32> to vector<64x64xbf16>
    %c0_41 = arith.constant 0 : index
    %c0_42 = arith.constant 0 : index
    %169 = vector.load %arg11[%c0_41, %c0_42] : memref<64x256xbf16, #tpu.memory_space<vmem>>, vector<64x256xbf16>
    %cst_43 = arith.constant dense<0.000000e+00> : vector<64x256xf32>
    %170 = tpu.matmul %168, %169, %cst_43 {dimension_numbers = #tpu.dot_dimension_numbers<[1], [0], [0], [1], [0, 0, 1, 1], [], []>} : vector<64x64xbf16>, vector<64x256xbf16>, vector<64x256xf32> -> vector<64x256xf32>
    %c0_44 = arith.constant 0 : index
    %c0_45 = arith.constant 0 : index
    %171 = vector.load %arg12[%c0_44, %c0_45] : memref<1x256xf32, #tpu.memory_space<vmem>>, vector<1x256xf32>
    %172 = vector.broadcast %171 : vector<1x256xf32> to vector<64x256xf32>
    %173 = arith.addf %170, %172 : vector<64x256xf32>
    %cst_46 = arith.constant 5.000000e-01 : f32
    %174 = vector.broadcast %cst_46 : f32 to vector<64x256xf32>
    %175 = arith.mulf %174, %173 : vector<64x256xf32>
    %cst_47 = arith.constant 0.707106769 : f32
    %176 = vector.broadcast %cst_47 : f32 to vector<64x256xf32>
    %177 = arith.mulf %173, %176 : vector<64x256xf32>
    %cst_48 = arith.constant 0.000000e+00 : f32
    %178 = vector.broadcast %cst_48 : f32 to vector<64x256xf32>
    %179 = arith.cmpf oge, %177, %178 : vector<64x256xf32>
    %cst_49 = arith.constant 1.000000e+00 : f32
    %cst_50 = arith.constant -1.000000e+00 : f32
    %180 = vector.broadcast %cst_49 : f32 to vector<64x256xf32>
    %181 = vector.broadcast %cst_50 : f32 to vector<64x256xf32>
    %182 = arith.select %179, %180, %181 : vector<64x256xi1>, vector<64x256xf32>
    %183 = math.absf %177 : vector<64x256xf32>
    %cst_51 = arith.constant 0.327591091 : f32
    %184 = vector.broadcast %cst_51 : f32 to vector<64x256xf32>
    %185 = arith.mulf %184, %183 : vector<64x256xf32>
    %cst_52 = arith.constant 1.000000e+00 : f32
    %186 = vector.broadcast %cst_52 : f32 to vector<64x256xf32>
    %187 = arith.addf %186, %185 : vector<64x256xf32>
    %cst_53 = arith.constant 1.000000e+00 : f32
    %188 = vector.broadcast %cst_53 : f32 to vector<64x256xf32>
    %189 = arith.divf %188, %187 : vector<64x256xf32>
    %cst_54 = arith.constant 1.06140542 : f32
    %190 = vector.broadcast %cst_54 : f32 to vector<64x256xf32>
    %191 = arith.mulf %190, %189 : vector<64x256xf32>
    %cst_55 = arith.constant -1.45315206 : f32
    %192 = vector.broadcast %cst_55 : f32 to vector<64x256xf32>
    %193 = arith.addf %191, %192 : vector<64x256xf32>
    %194 = arith.mulf %193, %189 : vector<64x256xf32>
    %cst_56 = arith.constant 1.42141378 : f32
    %195 = vector.broadcast %cst_56 : f32 to vector<64x256xf32>
    %196 = arith.addf %194, %195 : vector<64x256xf32>
    %197 = arith.mulf %196, %189 : vector<64x256xf32>
    %cst_57 = arith.constant -0.284496725 : f32
    %198 = vector.broadcast %cst_57 : f32 to vector<64x256xf32>
    %199 = arith.addf %197, %198 : vector<64x256xf32>
    %200 = arith.mulf %199, %189 : vector<64x256xf32>
    %cst_58 = arith.constant 0.254829586 : f32
    %201 = vector.broadcast %cst_58 : f32 to vector<64x256xf32>
    %202 = arith.addf %200, %201 : vector<64x256xf32>
    %203 = arith.mulf %202, %189 : vector<64x256xf32>
    %cst_59 = arith.constant 0.000000e+00 : f32
    %204 = vector.broadcast %cst_59 : f32 to vector<64x256xf32>
    %205 = arith.subf %204, %183 : vector<64x256xf32>
    %206 = arith.mulf %205, %183 : vector<64x256xf32>
    %207 = math.exp %206 : vector<64x256xf32>
    %208 = arith.mulf %203, %207 : vector<64x256xf32>
    %cst_60 = arith.constant 1.000000e+00 : f32
    %209 = vector.broadcast %cst_60 : f32 to vector<64x256xf32>
    %210 = arith.subf %209, %208 : vector<64x256xf32>
    %211 = arith.mulf %182, %210 : vector<64x256xf32>
    %cst_61 = arith.constant 1.000000e+00 : f32
    %212 = vector.broadcast %cst_61 : f32 to vector<64x256xf32>
    %213 = arith.addf %212, %211 : vector<64x256xf32>
    %214 = arith.mulf %175, %213 : vector<64x256xf32>
    %215 = arith.truncf %214 : vector<64x256xf32> to vector<64x256xbf16>
    %c0_62 = arith.constant 0 : index
    %c0_63 = arith.constant 0 : index
    %216 = vector.load %arg13[%c0_62, %c0_63] : memref<256x64xbf16, #tpu.memory_space<vmem>>, vector<256x64xbf16>
    %cst_64 = arith.constant dense<0.000000e+00> : vector<64x64xf32>
    %217 = tpu.matmul %215, %216, %cst_64 {dimension_numbers = #tpu.dot_dimension_numbers<[1], [0], [0], [1], [0, 0, 1, 1], [], []>} : vector<64x256xbf16>, vector<256x64xbf16>, vector<64x64xf32> -> vector<64x64xf32>
    %c0_65 = arith.constant 0 : index
    %c0_66 = arith.constant 0 : index
    %218 = vector.load %arg14[%c0_65, %c0_66] : memref<1x64xf32, #tpu.memory_space<vmem>>, vector<1x64xf32>
    %219 = vector.broadcast %218 : vector<1x64xf32> to vector<64x64xf32>
    %220 = arith.addf %217, %219 : vector<64x64xf32>
    %221 = arith.addf %145, %220 : vector<64x64xf32>
    %c0_67 = arith.constant 0 : index
    %c0_68 = arith.constant 0 : index
    %c0_69 = arith.constant 0 : index
    %222 = vector.load %arg15[%c0_67, %c0_68, %c0_69] : memref<1x64x64xf32, #tpu.memory_space<vmem>>, vector<1x64x64xf32>
    %223 = vector.shape_cast %222 : vector<1x64x64xf32> to vector<64x64xf32>
    %224 = vector.shape_cast %221 : vector<64x64xf32> to vector<1x64x64xf32>
    tpu.vector_store %arg15[%c0_67, %c0_68, %c0_69], %224 {strides = array<i32>} : memref<1x64x64xf32, #tpu.memory_space<vmem>>, vector<1x64x64xf32>,
    return
  }
  func.func @transform_0(%arg0: i32, %arg1: i32) -> (i32, i32, i32) {
    %c0_i32 = arith.constant 0 : i32
    %c0_i32_0 = arith.constant 0 : i32
    %c0_i32_1 = arith.constant 0 : i32
    return %arg0, %c0_i32, %c0_i32_0 : i32, i32, i32
  }
  func.func @transform_1(%arg0: i32, %arg1: i32) -> (i32, i32) {
    %c0_i32 = arith.constant 0 : i32
    %c0_i32_0 = arith.constant 0 : i32
    %c0_i32_1 = arith.constant 0 : i32
    return %c0_i32, %c0_i32_0 : i32, i32
  }
  func.func @transform_2(%arg0: i32, %arg1: i32) -> (i32, i32) {
    %c0_i32 = arith.constant 0 : i32
    %c0_i32_0 = arith.constant 0 : i32
    %c0_i32_1 = arith.constant 0 : i32
    return %c0_i32, %c0_i32_0 : i32, i32
  }
  func.func @transform_3(%arg0: i32, %arg1: i32) -> (i32, i32) {
    %c0_i32 = arith.constant 0 : i32
    %c0_i32_0 = arith.constant 0 : i32
    %c0_i32_1 = arith.constant 0 : i32
    return %c0_i32, %c0_i32_0 : i32, i32
  }
  func.func @transform_4(%arg0: i32, %arg1: i32) -> (i32, i32) {
    %c0_i32 = arith.constant 0 : i32
    %c0_i32_0 = arith.constant 0 : i32
    %c0_i32_1 = arith.constant 0 : i32
    return %c0_i32, %c0_i32_0 : i32, i32
  }
  func.func @transform_5(%arg0: i32, %arg1: i32) -> (i32, i32) {
    %c0_i32 = arith.constant 0 : i32
    %c0_i32_0 = arith.constant 0 : i32
    %c0_i32_1 = arith.constant 0 : i32
    return %c0_i32, %c0_i32_0 : i32, i32
  }
  func.func @transform_6(%arg0: i32, %arg1: i32) -> (i32, i32) {
    %c0_i32 = arith.constant 0 : i32
    %c0_i32_0 = arith.constant 0 : i32
    %c0_i32_1 = arith.constant 0 : i32
    return %c0_i32, %c0_i32_0 : i32, i32
  }
  func.func @transform_7(%arg0: i32, %arg1: i32) -> (i32, i32) {
    %c0_i32 = arith.constant 0 : i32
    %c0_i32_0 = arith.constant 0 : i32
    %c0_i32_1 = arith.constant 0 : i32
    return %c0_i32, %c0_i32_0 : i32, i32
  }
  func.func @transform_8(%arg0: i32, %arg1: i32) -> (i32, i32) {
    %c0_i32 = arith.constant 0 : i32
    %c0_i32_0 = arith.constant 0 : i32
    %c0_i32_1 = arith.constant 0 : i32
    return %c0_i32, %c0_i32_0 : i32, i32
  }
  func.func @transform_9(%arg0: i32, %arg1: i32) -> (i32, i32) {
    %c0_i32 = arith.constant 0 : i32
    %c0_i32_0 = arith.constant 0 : i32
    %c0_i32_1 = arith.constant 0 : i32
    return %c0_i32, %c0_i32_0 : i32, i32
  }
  func.func @transform_10(%arg0: i32, %arg1: i32) -> (i32, i32) {
    %c0_i32 = arith.constant 0 : i32
    %c0_i32_0 = arith.constant 0 : i32
    %c0_i32_1 = arith.constant 0 : i32
    return %c0_i32, %c0_i32_0 : i32, i32
  }
  func.func @transform_11(%arg0: i32, %arg1: i32) -> (i32, i32) {
    %c0_i32 = arith.constant 0 : i32
    %c0_i32_0 = arith.constant 0 : i32
    %c0_i32_1 = arith.constant 0 : i32
    return %c0_i32, %c0_i32_0 : i32, i32
  }
  func.func @transform_12(%arg0: i32, %arg1: i32) -> (i32, i32) {
    %c0_i32 = arith.constant 0 : i32
    %c0_i32_0 = arith.constant 0 : i32
    %c0_i32_1 = arith.constant 0 : i32
    return %c0_i32, %c0_i32_0 : i32, i32
  }
  func.func @transform_13(%arg0: i32, %arg1: i32) -> (i32, i32, i32) {
    %c0_i32 = arith.constant 0 : i32
    %c0_i32_0 = arith.constant 0 : i32
    return %arg0, %arg1, %c0_i32 : i32, i32, i32
  }
}

</mosaic_0001>

<llo_original>
// kernel: block_forward.1
$region0: #{block_forward.1}
  #allocation0 [shape = 'u32[]', space=smem, size = 0x4, offset = 0x4, fixed_abs, tag = 'smem constant byte address 0x4 - core index']
  #allocation1 [shape = 'u32[72,128]{1,0:T(1,128)}', space=vmem, size = 0x9000, scoped, tag = 'internal scratch']
  %s0 = inlined_call_operand.vmem [shape: f32[2,128,64], index: 0, kind: input, shape index: {}]
  %s1 = inlined_call_operand.vmem [shape: f32[1,64], index: 1, kind: input, shape index: {}]
  %s2 = inlined_call_operand.vmem [shape: f32[1,64], index: 2, kind: input, shape index: {}]
  %s3 = inlined_call_operand.vmem [shape: bf16[64,64], index: 3, kind: input, shape index: {}]
  %s4 = inlined_call_operand.vmem [shape: bf16[64,128], index: 4, kind: input, shape index: {}]
  %s5 = inlined_call_operand.vmem [shape: bf16[64,64], index: 5, kind: input, shape index: {}]
  %s6 = inlined_call_operand.vmem [shape: f32[1,64], index: 6, kind: input, shape index: {}]
  %s7 = inlined_call_operand.vmem [shape: f32[1,64], index: 7, kind: input, shape index: {}]
  %s8 = inlined_call_operand.vmem [shape: f32[1,64], index: 8, kind: input, shape index: {}]
  %s9 = inlined_call_operand.vmem [shape: bf16[64,256], index: 9, kind: input, shape index: {}]
  %s10 = inlined_call_operand.vmem [shape: f32[1,256], index: 10, kind: input, shape index: {}]
  %s11 = inlined_call_operand.vmem [shape: bf16[256,64], index: 11, kind: input, shape index: {}]
  %s12 = inlined_call_operand.vmem [shape: f32[1,64], index: 12, kind: input, shape index: {}]
  %s13 = inlined_call_operand.vmem [shape: f32[2,128,64], index: 13, kind: output, shape index: {}]
  %s14 = sld [smem:[#allocation0]]
  $region85: #{block_forward.1} parent=0
    _
  %s16 = ssub.s32 1, %s14
  %s17 = scalar_select 0, %s16, %s14
  loop: start=0, step=1, limit=6
  $region2: #{block_forward.1} parent=0 // loop_pre_header
    _
  $region3: #{block_forward.1} parent=0 // loop_header
    %s19 = sphi 0, %s23
    %p20 = scmp.ge.s32.totalorder %s19, 6
    %s26 = sphi 0, %s38
    %s27 = sphi 0, %s34
    %s28 = sphi 0, %s26
    %s29 = sphi 0, %s27
    %s30 = sphi 0, %s28
    %s31 = sphi 0, %s29
    %s41 = sphi 0, %s43
    %s44 = sphi 0, %s41
    %s45 = sphi 0, %s44
    %s61 = sphi 0, %s45
    %s65 = sphi 0, %s65
    %s67 = sphi 0, %s65
    %s68 = sphi 0, %s67
    %s82 = sphi 0, %s68
    %s86 = sphi 0, %s86
    %s88 = sphi 0, %s86
    %s89 = sphi 0, %s88
    %s103 = sphi 0, %s89
    %s107 = sphi 0, %s107
    %s109 = sphi 0, %s107
    %s110 = sphi 0, %s109
    %s124 = sphi 0, %s110
    %s128 = sphi 0, %s128
    %s130 = sphi 0, %s128
    %s131 = sphi 0, %s130
    %s145 = sphi 0, %s131
    %s149 = sphi 0, %s149
    %s151 = sphi 0, %s149
    %s152 = sphi 0, %s151
    %s166 = sphi 0, %s152
    %s170 = sphi 0, %s170
    %s172 = sphi 0, %s170
    %s173 = sphi 0, %s172
    %s187 = sphi 0, %s173
    %s191 = sphi 0, %s191
    %s193 = sphi 0, %s191
    %s194 = sphi 0, %s193
    %s208 = sphi 0, %s194
    %s212 = sphi 0, %s212
    %s214 = sphi 0, %s212
    %s215 = sphi 0, %s214
    %s229 = sphi 0, %s215
    %s233 = sphi 0, %s233
    %s235 = sphi 0, %s233
    %s236 = sphi 0, %s235
    %s250 = sphi 0, %s236
    %s254 = sphi 0, %s254
    %s256 = sphi 0, %s254
    %s257 = sphi 0, %s256
    %s271 = sphi 0, %s257
    %s275 = sphi 0, %s275
    %s277 = sphi 0, %s275
    %s278 = sphi 0, %s277
    %s292 = sphi 0, %s278
    %s296 = sphi 0, %s296
    %s298 = sphi 0, %s296
    %s299 = sphi 0, %s298
    %s313 = sphi 0, %s299
    %s321 = sphi 0, %s323
    %s324 = sphi 0, %s321
    %s325 = sphi 0, %s324
    %s341 = sphi 0, %s325
  $region4: #{block_forward.1} parent=0 // loop_header_branch
    %22 = sbr.rel (%p20) target = $region8
  $region5: #{block_forward.1} parent=0 // loop_body
    %s24 = ssub.s32 %s19, 1
    %s25 = ssub.s32 %s19, 2
    %s32 = sadd.s32 1, %s27
    %p33 = scmp.ge.s32.totalorder %s32, 2
    %s34 = scalar_select %p33, 0, %s32
    %s35 = sadd.s32 1, %s26
    %s36 = scalar_select %p33, %s35, %s26
    %p37 = scmp.ge.s32.totalorder %s36, 2
    %s38 = scalar_select %p37, 0, %s36
    %s39 = ssub.s32 %s26, %s38
    %p40 = scmp.eq.s32.totalorder %s39, 0
    %s42 = sadd.s32 %s41, 1
    %s43 = scalar_select %p40, %s41, %s42
    %p46 = pneg %p40
    %p47 = scmp.eq.s32.totalorder %s19, 3
    %p48 = por %p46, %p47
    %p49 = scmp.ne.s32.totalorder %s41, %s44
    %p50 = scmp.eq.s32.totalorder %s19, 0
    %p51 = por %p49, %p50
    %p52 = scmp.ne.s32.totalorder %s41, %s44
    %p53 = scmp.eq.s32.totalorder %s24, 3
    %p54 = por %p52, %p53
    %p55 = scmp.ne.s32.totalorder %s44, %s45
    %p56 = scmp.eq.s32.totalorder %s24, 0
    %p57 = por %p55, %p56
    %p58 = scmp.ne.s32.totalorder %s44, %s45
    %p59 = scmp.eq.s32.totalorder %s25, 3
    %p60 = por %p58, %p59
    %p62 = scmp.ne.s32.totalorder %s45, %s61
    %p63 = scmp.eq.s32.totalorder %s25, 0
    %p64 = por %p62, %p63
    %s66 = sadd.s32 %s65, 1
    %p69 = scmp.eq.s32.totalorder %s19, 3
    %p70 = scmp.ne.s32.totalorder %s65, %s67
    %p71 = scmp.eq.s32.totalorder %s19, 0
    %p72 = por %p70, %p71
    %p73 = scmp.ne.s32.totalorder %s65, %s67
    %p74 = scmp.eq.s32.totalorder %s24, 3
    %p75 = por %p73, %p74
    %p76 = scmp.ne.s32.totalorder %s67, %s68
    %p77 = scmp.eq.s32.totalorder %s24, 0
    %p78 = por %p76, %p77
    %p79 = scmp.ne.s32.totalorder %s67, %s68
    %p80 = scmp.eq.s32.totalorder %s25, 3
    %p81 = por %p79, %p80
    %p83 = scmp.ne.s32.totalorder %s68, %s82
    %p84 = scmp.eq.s32.totalorder %s25, 0
    %p85 = por %p83, %p84
    %s87 = sadd.s32 %s86, 1
    %p90 = scmp.eq.s32.totalorder %s19, 3
    %p91 = scmp.ne.s32.totalorder %s86, %s88
    %p92 = scmp.eq.s32.totalorder %s19, 0
    %p93 = por %p91, %p92
    %p94 = scmp.ne.s32.totalorder %s86, %s88
    %p95 = scmp.eq.s32.totalorder %s24, 3
    %p96 = por %p94, %p95
    %p97 = scmp.ne.s32.totalorder %s88, %s89
    %p98 = scmp.eq.s32.totalorder %s24, 0
    %p99 = por %p97, %p98
    %p100 = scmp.ne.s32.totalorder %s88, %s89
    %p101 = scmp.eq.s32.totalorder %s25, 3
    %p102 = por %p100, %p101
    %p104 = scmp.ne.s32.totalorder %s89, %s103
    %p105 = scmp.eq.s32.totalorder %s25, 0
    %p106 = por %p104, %p105
    %s108 = sadd.s32 %s107, 1
    %p111 = scmp.eq.s32.totalorder %s19, 3
    %p112 = scmp.ne.s32.totalorder %s107, %s109
    %p113 = scmp.eq.s32.totalorder %s19, 0
    %p114 = por %p112, %p113
    %p115 = scmp.ne.s32.totalorder %s107, %s109
    %p116 = scmp.eq.s32.totalorder %s24, 3
    %p117 = por %p115, %p116
    %p118 = scmp.ne.s32.totalorder %s109, %s110
    %p119 = scmp.eq.s32.totalorder %s24, 0
    %p120 = por %p118, %p119
    %p121 = scmp.ne.s32.totalorder %s109, %s110
    %p122 = scmp.eq.s32.totalorder %s25, 3
    %p123 = por %p121, %p122
    %p125 = scmp.ne.s32.totalorder %s110, %s124
    %p126 = scmp.eq.s32.totalorder %s25, 0
    %p127 = por %p125, %p126
    %s129 = sadd.s32 %s128, 1
    %p132 = scmp.eq.s32.totalorder %s19, 3
    %p133 = scmp.ne.s32.totalorder %s128, %s130
    %p134 = scmp.eq.s32.totalorder %s19, 0
    %p135 = por %p133, %p134
    %p136 = scmp.ne.s32.totalorder %s128, %s130
    %p137 = scmp.eq.s32.totalorder %s24, 3
    %p138 = por %p136, %p137
    %p139 = scmp.ne.s32.totalorder %s130, %s131
    %p140 = scmp.eq.s32.totalorder %s24, 0
    %p141 = por %p139, %p140
    %p142 = scmp.ne.s32.totalorder %s130, %s131
    %p143 = scmp.eq.s32.totalorder %s25, 3
    %p144 = por %p142, %p143
    %p146 = scmp.ne.s32.totalorder %s131, %s145
    %p147 = scmp.eq.s32.totalorder %s25, 0
    %p148 = por %p146, %p147
    %s150 = sadd.s32 %s149, 1
    %p153 = scmp.eq.s32.totalorder %s19, 3
    %p154 = scmp.ne.s32.totalorder %s149, %s151
    %p155 = scmp.eq.s32.totalorder %s19, 0
    %p156 = por %p154, %p155
    %p157 = scmp.ne.s32.totalorder %s149, %s151
    %p158 = scmp.eq.s32.totalorder %s24, 3
    %p159 = por %p157, %p158
    %p160 = scmp.ne.s32.totalorder %s151, %s152
    %p161 = scmp.eq.s32.totalorder %s24, 0
    %p162 = por %p160, %p161
    %p163 = scmp.ne.s32.totalorder %s151, %s152
    %p164 = scmp.eq.s32.totalorder %s25, 3
    %p165 = por %p163, %p164
    %p167 = scmp.ne.s32.totalorder %s152, %s166
    %p168 = scmp.eq.s32.totalorder %s25, 0
    %p169 = por %p167, %p168
    %s171 = sadd.s32 %s170, 1
    %p174 = scmp.eq.s32.totalorder %s19, 3
    %p175 = scmp.ne.s32.totalorder %s170, %s172
    %p176 = scmp.eq.s32.totalorder %s19, 0
    %p177 = por %p175, %p176
    %p178 = scmp.ne.s32.totalorder %s170, %s172
    %p179 = scmp.eq.s32.totalorder %s24, 3
    %p180 = por %p178, %p179
    %p181 = scmp.ne.s32.totalorder %s172, %s173
    %p182 = scmp.eq.s32.totalorder %s24, 0
    %p183 = por %p181, %p182
    %p184 = scmp.ne.s32.totalorder %s172, %s173
    %p185 = scmp.eq.s32.totalorder %s25, 3
    %p186 = por %p184, %p185
    %p188 = scmp.ne.s32.totalorder %s173, %s187
    %p189 = scmp.eq.s32.totalorder %s25, 0
    %p190 = por %p188, %p189
    %s192 = sadd.s32 %s191, 1
    %p195 = scmp.eq.s32.totalorder %s19, 3
    %p196 = scmp.ne.s32.totalorder %s191, %s193
    %p197 = scmp.eq.s32.totalorder %s19, 0
    %p198 = por %p196, %p197
    %p199 = scmp.ne.s32.totalorder %s191, %s193
    %p200 = scmp.eq.s32.totalorder %s24, 3
    %p201 = por %p199, %p200
    %p202 = scmp.ne.s32.totalorder %s193, %s194
    %p203 = scmp.eq.s32.totalorder %s24, 0
    %p204 = por %p202, %p203
    %p205 = scmp.ne.s32.totalorder %s193, %s194
    %p206 = scmp.eq.s32.totalorder %s25, 3
    %p207 = por %p205, %p206
    %p209 = scmp.ne.s32.totalorder %s194, %s208
    %p210 = scmp.eq.s32.totalorder %s25, 0
    %p211 = por %p209, %p210
    %s213 = sadd.s32 %s212, 1
    %p216 = scmp.eq.s32.totalorder %s19, 3
    %p217 = scmp.ne.s32.totalorder %s212, %s214
    %p218 = scmp.eq.s32.totalorder %s19, 0
    %p219 = por %p217, %p218
    %p220 = scmp.ne.s32.totalorder %s212, %s214
    %p221 = scmp.eq.s32.totalorder %s24, 3
    %p222 = por %p220, %p221
    %p223 = scmp.ne.s32.totalorder %s214, %s215
    %p224 = scmp.eq.s32.totalorder %s24, 0
    %p225 = por %p223, %p224
    %p226 = scmp.ne.s32.totalorder %s214, %s215
    %p227 = scmp.eq.s32.totalorder %s25, 3
    %p228 = por %p226, %p227
    %p230 = scmp.ne.s32.totalorder %s215, %s229
    %p231 = scmp.eq.s32.totalorder %s25, 0
    %p232 = por %p230, %p231
    %s234 = sadd.s32 %s233, 1
    %p237 = scmp.eq.s32.totalorder %s19, 3
    %p238 = scmp.ne.s32.totalorder %s233, %s235
    %p239 = scmp.eq.s32.totalorder %s19, 0
    %p240 = por %p238, %p239
    %p241 = scmp.ne.s32.totalorder %s233, %s235
    %p242 = scmp.eq.s32.totalorder %s24, 3
    %p243 = por %p241, %p242
    %p244 = scmp.ne.s32.totalorder %s235, %s236
    %p245 = scmp.eq.s32.totalorder %s24, 0
    %p246 = por %p244, %p245
    %p247 = scmp.ne.s32.totalorder %s235, %s236
    %p248 = scmp.eq.s32.totalorder %s25, 3
    %p249 = por %p247, %p248
    %p251 = scmp.ne.s32.totalorder %s236, %s250
    %p252 = scmp.eq.s32.totalorder %s25, 0
    %p253 = por %p251, %p252
    %s255 = sadd.s32 %s254, 1
    %p258 = scmp.eq.s32.totalorder %s19, 3
    %p259 = scmp.ne.s32.totalorder %s254, %s256
    %p260 = scmp.eq.s32.totalorder %s19, 0
    %p261 = por %p259, %p260
    %p262 = scmp.ne.s32.totalorder %s254, %s256
    %p263 = scmp.eq.s32.totalorder %s24, 3
    %p264 = por %p262, %p263
    %p265 = scmp.ne.s32.totalorder %s256, %s257
    %p266 = scmp.eq.s32.totalorder %s24, 0
    %p267 = por %p265, %p266
    %p268 = scmp.ne.s32.totalorder %s256, %s257
    %p269 = scmp.eq.s32.totalorder %s25, 3
    %p270 = por %p268, %p269
    %p272 = scmp.ne.s32.totalorder %s257, %s271
    %p273 = scmp.eq.s32.totalorder %s25, 0
    %p274 = por %p272, %p273
    %s276 = sadd.s32 %s275, 1
    %p279 = scmp.eq.s32.totalorder %s19, 3
    %p280 = scmp.ne.s32.totalorder %s275, %s277
    %p281 = scmp.eq.s32.totalorder %s19, 0
    %p282 = por %p280, %p281
    %p283 = scmp.ne.s32.totalorder %s275, %s277
    %p284 = scmp.eq.s32.totalorder %s24, 3
    %p285 = por %p283, %p284
    %p286 = scmp.ne.s32.totalorder %s277, %s278
    %p287 = scmp.eq.s32.totalorder %s24, 0
    %p288 = por %p286, %p287
    %p289 = scmp.ne.s32.totalorder %s277, %s278
    %p290 = scmp.eq.s32.totalorder %s25, 3
    %p291 = por %p289, %p290
    %p293 = scmp.ne.s32.totalorder %s278, %s292
    %p294 = scmp.eq.s32.totalorder %s25, 0
    %p295 = por %p293, %p294
    %s297 = sadd.s32 %s296, 1
    %p300 = scmp.eq.s32.totalorder %s19, 3
    %p301 = scmp.ne.s32.totalorder %s296, %s298
    %p302 = scmp.eq.s32.totalorder %s19, 0
    %p303 = por %p301, %p302
    %p304 = scmp.ne.s32.totalorder %s296, %s298
    %p305 = scmp.eq.s32.totalorder %s24, 3
    %p306 = por %p304, %p305
    %p307 = scmp.ne.s32.totalorder %s298, %s299
    %p308 = scmp.eq.s32.totalorder %s24, 0
    %p309 = por %p307, %p308
    %p310 = scmp.ne.s32.totalorder %s298, %s299
    %p311 = scmp.eq.s32.totalorder %s25, 3
    %p312 = por %p310, %p311
    %p314 = scmp.ne.s32.totalorder %s299, %s313
    %p315 = scmp.eq.s32.totalorder %s25, 0
    %p316 = por %p314, %p315
    %s317 = ssub.s32 %s26, %s38
    %s318 = ssub.s32 %s27, %s34
    %s319 = sor.u32 %s317, %s318
    %p320 = scmp.eq.s32.totalorder %s319, 0
    %s322 = sadd.s32 %s321, 1
    %s323 = scalar_select %p320, %s321, %s322
    %p326 = pneg %p320
    %p327 = scmp.eq.s32.totalorder %s19, 3
    %p328 = por %p326, %p327
    %p329 = scmp.ne.s32.totalorder %s321, %s324
    %p330 = scmp.eq.s32.totalorder %s19, 0
    %p331 = por %p329, %p330
    %p332 = scmp.ne.s32.totalorder %s321, %s324
    %p333 = scmp.eq.s32.totalorder %s24, 3
    %p334 = por %p332, %p333
    %p335 = scmp.ne.s32.totalorder %s324, %s325
    %p336 = scmp.eq.s32.totalorder %s24, 0
    %p337 = por %p335, %p336
    %p338 = scmp.ne.s32.totalorder %s324, %s325
    %p339 = scmp.eq.s32.totalorder %s25, 3
    %p340 = por %p338, %p339
    %p342 = scmp.ne.s32.totalorder %s325, %s341
    %p343 = scmp.eq.s32.totalorder %s25, 0
    %p344 = por %p342, %p343
    %p345 = scmp.le.s32.totalorder 1, %s19
    %p346 = scmp.lt.s32.totalorder %s19, 5
    %p347 = pnand %p345, %p346
    %p348 = pneg %p347
    // Predicated region
    $region9: #{block_forward.1} parent=5 // pred_check
      _
    $region10: #{block_forward.1} parent=5 // pred_check_branch
      %350 = sbr.rel (%p347) target = $region12
    $region11: #{block_forward.1} parent=5 // pred_region
      %s351 = ssub.s32 %s19, 1
      // Predicated region
      $region13: #{block_forward.1} parent=11 // pred_check
        %p352 = pneg %p78
      $region14: #{block_forward.1} parent=11 // pred_check_branch
        %354 = sbr.rel (%p352) target = $region16
      $region15: #{block_forward.1} parent=11 // pred_region
        _
      $region16: #{block_forward.1} parent=11 // pred_fallthru
        _
      // Predicated region
      $region17: #{block_forward.1} parent=11 // pred_check
        %p355 = pneg %p99
      $region18: #{block_forward.1} parent=11 // pred_check_branch
        %357 = sbr.rel (%p355) target = $region20
      $region19: #{block_forward.1} parent=11 // pred_region
        _
      $region20: #{block_forward.1} parent=11 // pred_fallthru
        _
      // Predicated region
      $region21: #{block_forward.1} parent=11 // pred_check
        %p358 = pneg %p120
      $region22: #{block_forward.1} parent=11 // pred_check_branch
        %360 = sbr.rel (%p358) target = $region24
      $region23: #{block_forward.1} parent=11 // pred_region
        _
      $region24: #{block_forward.1} parent=11 // pred_fallthru
        _
      // Predicated region
      $region25: #{block_forward.1} parent=11 // pred_check
        %p361 = pneg %p141
      $region26: #{block_forward.1} parent=11 // pred_check_branch
        %363 = sbr.rel (%p361) target = $region28
      $region27: #{block_forward.1} parent=11 // pred_region
        _
      $region28: #{block_forward.1} parent=11 // pred_fallthru
        _
      // Predicated region
      $region29: #{block_forward.1} parent=11 // pred_check
        %p364 = pneg %p162
      $region30: #{block_forward.1} parent=11 // pred_check_branch
        %366 = sbr.rel (%p364) target = $region32
      $region31: #{block_forward.1} parent=11 // pred_region
        _
      $region32: #{block_forward.1} parent=11 // pred_fallthru
        _
      // Predicated region
      $region33: #{block_forward.1} parent=11 // pred_check
        %p367 = pneg %p183
      $region34: #{block_forward.1} parent=11 // pred_check_branch
        %369 = sbr.rel (%p367) target = $region36
      $region35: #{block_forward.1} parent=11 // pred_region
        _
      $region36: #{block_forward.1} parent=11 // pred_fallthru
        _
      // Predicated region
      $region37: #{block_forward.1} parent=11 // pred_check
        %p370 = pneg %p204
      $region38: #{block_forward.1} parent=11 // pred_check_branch
        %372 = sbr.rel (%p370) target = $region40
      $region39: #{block_forward.1} parent=11 // pred_region
        _
      $region40: #{block_forward.1} parent=11 // pred_fallthru
        _
      // Predicated region
      $region41: #{block_forward.1} parent=11 // pred_check
        %p373 = pneg %p225
      $region42: #{block_forward.1} parent=11 // pred_check_branch
        %375 = sbr.rel (%p373) target = $region44
      $region43: #{block_forward.1} parent=11 // pred_region
        _
      $region44: #{block_forward.1} parent=11 // pred_fallthru
        _
      // Predicated region
      $region45: #{block_forward.1} parent=11 // pred_check
        %p376 = pneg %p246
      $region46: #{block_forward.1} parent=11 // pred_check_branch
        %378 = sbr.rel (%p376) target = $region48
      $region47: #{block_forward.1} parent=11 // pred_region
        _
      $region48: #{block_forward.1} parent=11 // pred_fallthru
        _
      // Predicated region
      $region49: #{block_forward.1} parent=11 // pred_check
        %p379 = pneg %p267
      $region50: #{block_forward.1} parent=11 // pred_check_branch
        %381 = sbr.rel (%p379) target = $region52
      $region51: #{block_forward.1} parent=11 // pred_region
        _
      $region52: #{block_forward.1} parent=11 // pred_fallthru
        _
      // Predicated region
      $region53: #{block_forward.1} parent=11 // pred_check
        %p382 = pneg %p288
      $region54: #{block_forward.1} parent=11 // pred_check_branch
        %384 = sbr.rel (%p382) target = $region56
      $region55: #{block_forward.1} parent=11 // pred_region
        _
      $region56: #{block_forward.1} parent=11 // pred_fallthru
        _
      // Predicated region
      $region57: #{block_forward.1} parent=11 // pred_check
        %p385 = pneg %p309
      $region58: #{block_forward.1} parent=11 // pred_check_branch
        %387 = sbr.rel (%p385) target = $region60
      $region59: #{block_forward.1} parent=11 // pred_region
        _
      $region60: #{block_forward.1} parent=11 // pred_fallthru
        _
    $region12: #{block_forward.1} parent=5 // pred_fallthru
      _
    %p388 = scmp.lt.s32.totalorder %s19, 4
    // Predicated region
    $region61: #{block_forward.1} parent=5 // pred_check
      %p389 = pneg %p388
    $region62: #{block_forward.1} parent=5 // pred_check_branch
      %391 = sbr.rel (%p389) target = $region64
    $region63: #{block_forward.1} parent=5 // pred_region
      // Predicated region
      $region65: #{block_forward.1} parent=63 // pred_check
        %p392 = pneg %p51
      $region66: #{block_forward.1} parent=63 // pred_check_branch
        %394 = sbr.rel (%p392) target = $region68
      $region67: #{block_forward.1} parent=63 // pred_region
        %p395 = scmp.lt.s32.totalorder %s26, 1
        %s396 = scalar_select %p395, %s26, 1
        %s397 = smul.addr %s396, 16
        %s398 = smul.addr %s397, 8
        %s399 = scalar_lea.vmem %s0, %s398
      $region68: #{block_forward.1} parent=63 // pred_fallthru
        _
    $region64: #{block_forward.1} parent=5 // pred_fallthru
      _
    %p400 = scmp.le.s32.totalorder 1, %s19
    %p401 = scmp.lt.s32.totalorder %s19, 5
    %p402 = pnand %p400, %p401
    %p403 = pneg %p402
    // Predicated region
    $region69: #{block_forward.1} parent=5 // pred_check
      _
    $region70: #{block_forward.1} parent=5 // pred_check_branch
      %405 = sbr.rel (%p402) target = $region72
    $region71: #{block_forward.1} parent=5 // pred_region
      %s406 = ssub.s32 %s19, 1
      %p407 = scmp.lt.s32.totalorder %s28, 1
      %s408 = scalar_select %p407, %s28, 1
      %s409 = smul.addr %s408, 16
      %s410 = smul.addr %s409, 8
      %s411 = scalar_lea.vmem %s0, %s410
      %p412 = pneg %p57
      %p413 = pneg %p54
      %p414 = pneg %p78
      %p415 = pneg %p75
      %p416 = pneg %p99
      %p417 = pneg %p96
      %p418 = pneg %p120
      %p419 = pneg %p117
      %p420 = pneg %p141
      %p421 = pneg %p138
      %p422 = pneg %p162
      %p423 = pneg %p159
      %p424 = pneg %p183
      %p425 = pneg %p180
      %p426 = pneg %p204
      %p427 = pneg %p201
      %p428 = pneg %p225
      %p429 = pneg %p222
      %p430 = pneg %p246
      %p431 = pneg %p243
      %p432 = pneg %p267
      %p433 = pneg %p264
      %p434 = pneg %p288
      %p435 = pneg %p285
      %p436 = pneg %p309
      %p437 = pneg %p306
      %p438 = pneg %p337
      %p439 = pneg %p334
      %s440 = smul.u32 8, %s29
      %p441 = scmp.lt.s32.totalorder %s28, 1
      %s442 = scalar_select %p441, %s28, 1
      %p443 = scmp.lt.s32.totalorder %s440, 15
      %s444 = scalar_select %p443, %s440, 15
      %s445 = smul.addr %s442, 16
      %s446 = sadd.s32 %s444, %s445
      %s447 = smul.addr %s446, 8
      %s448 = scalar_lea.vmem %s13, %s447
      %p449 = scmp.lt.s32.totalorder %s28, 1
      %s450 = scalar_select %p449, %s28, 1
      %s451 = smul.addr %s450, 16
      %s452 = smul.addr %s451, 8
      %s453 = scalar_lea.vmem %s0, %s452
      %s454 = smul.u32 8, %s29
      %p455 = scmp.lt.s32.totalorder %s28, 1
      %s456 = scalar_select %p455, %s28, 1
      %p457 = scmp.lt.s32.totalorder %s454, 15
      %s458 = scalar_select %p457, %s454, 15
      %s459 = smul.addr %s456, 16
      %s460 = sadd.s32 %s458, %s459
      %s461 = smul.addr %s460, 8
      %s462 = scalar_lea.vmem %s13, %s461
      %s463 = smul.u32 8, %s29
      %s465 = smul.u32 %s29, 64
      %s466 = scalar_lea.vmem %s453, %s465
      %v467 = vld [vmem:[%s466] sm:$0xff]
      %v468 = vld [vmem:[%s466 + $0x8] sm:$0xff]
      %v469 = vld [vmem:[%s466 + $0x10] sm:$0xff]
      %v470 = vld [vmem:[%s466 + $0x18] sm:$0xff]
      %v471 = vld [vmem:[%s466 + $0x20] sm:$0xff]
      %v472 = vld [vmem:[%s466 + $0x28] sm:$0xff]
      %v473 = vld [vmem:[%s466 + $0x30] sm:$0xff]
      %v474 = vld [vmem:[%s466 + $0x38] sm:$0xff]
      %v475 = vld [vmem:[%s453] sm:$0xff]
      %v476 = vld [vmem:[%s453 + $0x8] sm:$0xff]
      %v477 = vld [vmem:[%s453 + $0x10] sm:$0xff]
      %v478 = vld [vmem:[%s453 + $0x18] sm:$0xff]
      %v479 = vld [vmem:[%s453 + $0x20] sm:$0xff]
      %v480 = vld [vmem:[%s453 + $0x28] sm:$0xff]
      %v481 = vld [vmem:[%s453 + $0x30] sm:$0xff]
      %v482 = vld [vmem:[%s453 + $0x38] sm:$0xff]
      %v483 = vld [vmem:[%s453 + $0x40] sm:$0xff]
      %v484 = vld [vmem:[%s453 + $0x48] sm:$0xff]
      %v485 = vld [vmem:[%s453 + $0x50] sm:$0xff]
      %v486 = vld [vmem:[%s453 + $0x58] sm:$0xff]
      %v487 = vld [vmem:[%s453 + $0x60] sm:$0xff]
      %v488 = vld [vmem:[%s453 + $0x68] sm:$0xff]
      %v489 = vld [vmem:[%s453 + $0x70] sm:$0xff]
      %v490 = vld [vmem:[%s453 + $0x78] sm:$0xff]
      %v491 = vld [vmem:[%s1] sm:$0x1]
      %v492 = vld [vmem:[%s2] sm:$0x1]
      %vm493 = vcmask 523264
      %v494 = vsel %vm493, %v475, 0.0
      %495 = vadd.xlane.f32.xlu0 %v494
      %v496 = vpop.xlane.xlu0 %495
      %v497 = vsel %vm493, %v476, 0.0
      %498 = vadd.xlane.f32.xlu0 %v497
      %v499 = vpop.xlane.xlu0 %498
      %v500 = vsel %vm493, %v477, 0.0
      %501 = vadd.xlane.f32.xlu0 %v500
      %v502 = vpop.xlane.xlu0 %501
      %v503 = vsel %vm493, %v478, 0.0
      %504 = vadd.xlane.f32.xlu0 %v503
      %v505 = vpop.xlane.xlu0 %504
      %v506 = vsel %vm493, %v479, 0.0
      %507 = vadd.xlane.f32.xlu0 %v506
      %v508 = vpop.xlane.xlu0 %507
      %v509 = vsel %vm493, %v480, 0.0
      %510 = vadd.xlane.f32.xlu0 %v509
      %v511 = vpop.xlane.xlu0 %510
      %v512 = vsel %vm493, %v481, 0.0
      %513 = vadd.xlane.f32.xlu0 %v512
      %v514 = vpop.xlane.xlu0 %513
      %v515 = vsel %vm493, %v482, 0.0
      %516 = vadd.xlane.f32.xlu0 %v515
      %v517 = vpop.xlane.xlu0 %516
      %v518 = vsel %vm493, %v483, 0.0
      %519 = vadd.xlane.f32.xlu0 %v518
      %v520 = vpop.xlane.xlu0 %519
      %v521 = vsel %vm493, %v484, 0.0
      %522 = vadd.xlane.f32.xlu0 %v521
      %v523 = vpop.xlane.xlu0 %522
      %v524 = vsel %vm493, %v485, 0.0
      %525 = vadd.xlane.f32.xlu0 %v524
      %v526 = vpop.xlane.xlu0 %525
      %v527 = vsel %vm493, %v486, 0.0
      %528 = vadd.xlane.f32.xlu0 %v527
      %v529 = vpop.xlane.xlu0 %528
      %v530 = vsel %vm493, %v487, 0.0
      %531 = vadd.xlane.f32.xlu0 %v530
      %v532 = vpop.xlane.xlu0 %531
      %v533 = vsel %vm493, %v488, 0.0
      %534 = vadd.xlane.f32.xlu0 %v533
      %v535 = vpop.xlane.xlu0 %534
      %v536 = vsel %vm493, %v489, 0.0
      %537 = vadd.xlane.f32.xlu0 %v536
      %v538 = vpop.xlane.xlu0 %537
      %v539 = vsel %vm493, %v490, 0.0
      %540 = vadd.xlane.f32.xlu0 %v539
      %v541 = vpop.xlane.xlu0 %540
      %v542 = vrcp.pop 64.0
      %v543 = vmul.f32 64.0, %v542
      %v544 = vsub.f32 1.0, %v543
      %v545 = vmul.f32 %v542, %v544
      %v546 = vadd.f32 %v542, %v545
      %vm547 = vweird.f32 %v542
      %v548 = vsel %vm547, %v542, %v546
      %v549 = vmul.f32 %v496, %v548
      %v550 = vmul.f32 %v499, %v548
      %v551 = vmul.f32 %v502, %v548
      %v552 = vmul.f32 %v505, %v548
      %v553 = vmul.f32 %v508, %v548
      %v554 = vmul.f32 %v511, %v548
      %v555 = vmul.f32 %v514, %v548
      %v556 = vmul.f32 %v517, %v548
      %v557 = vmul.f32 %v520, %v548
      %v558 = vmul.f32 %v523, %v548
      %v559 = vmul.f32 %v526, %v548
      %v560 = vmul.f32 %v529, %v548
      %v561 = vmul.f32 %v532, %v548
      %v562 = vmul.f32 %v535, %v548
      %v563 = vmul.f32 %v538, %v548
      %v564 = vmul.f32 %v541, %v548
      %v565 = vsub.f32 %v475, %v549
      %v566 = vsub.f32 %v476, %v550
      %v567 = vsub.f32 %v477, %v551
      %v568 = vsub.f32 %v478, %v552
      %v569 = vsub.f32 %v479, %v553
      %v570 = vsub.f32 %v480, %v554
      %v571 = vsub.f32 %v481, %v555
      %v572 = vsub.f32 %v482, %v556
      %v573 = vsub.f32 %v483, %v557
      %v574 = vsub.f32 %v484, %v558
      %v575 = vsub.f32 %v485, %v559
      %v576 = vsub.f32 %v486, %v560
      %v577 = vsub.f32 %v487, %v561
      %v578 = vsub.f32 %v488, %v562
      %v579 = vsub.f32 %v489, %v563
      %v580 = vsub.f32 %v490, %v564
      %v581 = vmul.f32 %v565, %v565
      %v582 = vmul.f32 %v566, %v566
      %v583 = vmul.f32 %v567, %v567
      %v584 = vmul.f32 %v568, %v568
      %v585 = vmul.f32 %v569, %v569
      %v586 = vmul.f32 %v570, %v570
      %v587 = vmul.f32 %v571, %v571
      %v588 = vmul.f32 %v572, %v572
      %v589 = vmul.f32 %v573, %v573
      %v590 = vmul.f32 %v574, %v574
      %v591 = vmul.f32 %v575, %v575
      %v592 = vmul.f32 %v576, %v576
      %v593 = vmul.f32 %v577, %v577
      %v594 = vmul.f32 %v578, %v578
      %v595 = vmul.f32 %v579, %v579
      %v596 = vmul.f32 %v580, %v580
      %v597 = vsel %vm493, %v581, 0.0
      %598 = vadd.xlane.f32.xlu0 %v597
      %v599 = vpop.xlane.xlu0 %598
      %v600 = vsel %vm493, %v582, 0.0
      %601 = vadd.xlane.f32.xlu0 %v600
      %v602 = vpop.xlane.xlu0 %601
      %v603 = vsel %vm493, %v583, 0.0
      %604 = vadd.xlane.f32.xlu0 %v603
      %v605 = vpop.xlane.xlu0 %604
      %v606 = vsel %vm493, %v584, 0.0
      %607 = vadd.xlane.f32.xlu0 %v606
      %v608 = vpop.xlane.xlu0 %607
      %v609 = vsel %vm493, %v585, 0.0
      %610 = vadd.xlane.f32.xlu0 %v609
      %v611 = vpop.xlane.xlu0 %610
      %v612 = vsel %vm493, %v586, 0.0
      %613 = vadd.xlane.f32.xlu0 %v612
      %v614 = vpop.xlane.xlu0 %613
      %v615 = vsel %vm493, %v587, 0.0
      %616 = vadd.xlane.f32.xlu0 %v615
      %v617 = vpop.xlane.xlu0 %616
      %v618 = vsel %vm493, %v588, 0.0
      %619 = vadd.xlane.f32.xlu0 %v618
      %v620 = vpop.xlane.xlu0 %619
      %v621 = vsel %vm493, %v589, 0.0
      %622 = vadd.xlane.f32.xlu0 %v621
      %v623 = vpop.xlane.xlu0 %622
      %v624 = vsel %vm493, %v590, 0.0
      %625 = vadd.xlane.f32.xlu0 %v624
      %v626 = vpop.xlane.xlu0 %625
      %v627 = vsel %vm493, %v591, 0.0
      %628 = vadd.xlane.f32.xlu0 %v627
      %v629 = vpop.xlane.xlu0 %628
      %v630 = vsel %vm493, %v592, 0.0
      %631 = vadd.xlane.f32.xlu0 %v630
      %v632 = vpop.xlane.xlu0 %631
      %v633 = vsel %vm493, %v593, 0.0
      %634 = vadd.xlane.f32.xlu0 %v633
      %v635 = vpop.xlane.xlu0 %634
      %v636 = vsel %vm493, %v594, 0.0
      %637 = vadd.xlane.f32.xlu0 %v636
      %v638 = vpop.xlane.xlu0 %637
      %v639 = vsel %vm493, %v595, 0.0
      %640 = vadd.xlane.f32.xlu0 %v639
      %v641 = vpop.xlane.xlu0 %640
      %v642 = vsel %vm493, %v596, 0.0
      %643 = vadd.xlane.f32.xlu0 %v642
      %v644 = vpop.xlane.xlu0 %643
      %v645 = vmul.f32 %v599, %v548
      %v646 = vmul.f32 %v602, %v548
      %v647 = vmul.f32 %v605, %v548
      %v648 = vmul.f32 %v608, %v548
      %v649 = vmul.f32 %v611, %v548
      %v650 = vmul.f32 %v614, %v548
      %v651 = vmul.f32 %v617, %v548
      %v652 = vmul.f32 %v620, %v548
      %v653 = vmul.f32 %v623, %v548
      %v654 = vmul.f32 %v626, %v548
      %v655 = vmul.f32 %v629, %v548
      %v656 = vmul.f32 %v632, %v548
      %v657 = vmul.f32 %v635, %v548
      %v658 = vmul.f32 %v638, %v548
      %v659 = vmul.f32 %v641, %v548
      %v660 = vmul.f32 %v644, %v548
      %v661 = vadd.f32 %v645, 1e-05
      %v662 = vadd.f32 %v646, 1e-05
      %v663 = vadd.f32 %v647, 1e-05
      %v664 = vadd.f32 %v648, 1e-05
      %v665 = vadd.f32 %v649, 1e-05
      %v666 = vadd.f32 %v650, 1e-05
      %v667 = vadd.f32 %v651, 1e-05
      %v668 = vadd.f32 %v652, 1e-05
      %v669 = vadd.f32 %v653, 1e-05
      %v670 = vadd.f32 %v654, 1e-05
      %v671 = vadd.f32 %v655, 1e-05
      %v672 = vadd.f32 %v656, 1e-05
      %v673 = vadd.f32 %v657, 1e-05
      %v674 = vadd.f32 %v658, 1e-05
      %v675 = vadd.f32 %v659, 1e-05
      %v676 = vadd.f32 %v660, 1e-05
      %v677 = vrsqrt.pop %v661
      %v678 = vmul.f32 %v677, %v661
      %v679 = vmul.f32 %v678, %v677
      %v680 = vmul.f32 0.5, %v679
      %v681 = vsub.f32 1.5, %v680
      %v682 = vmul.f32 %v677, %v681
      %vm683 = vweird.f32 %v661
      %vm684 = vweird.f32 %v677
      %vm685 = vmor %vm683, %vm684
      %v686 = vsel %vm685, %v677, %v682
      %v687 = vrsqrt.pop %v662
      %v688 = vmul.f32 %v687, %v662
      %v689 = vmul.f32 %v688, %v687
      %v690 = vmul.f32 0.5, %v689
      %v691 = vsub.f32 1.5, %v690
      %v692 = vmul.f32 %v687, %v691
      %vm693 = vweird.f32 %v662
      %vm694 = vweird.f32 %v687
      %vm695 = vmor %vm693, %vm694
      %v696 = vsel %vm695, %v687, %v692
      %v697 = vrsqrt.pop %v663
      %v698 = vmul.f32 %v697, %v663
      %v699 = vmul.f32 %v698, %v697
      %v700 = vmul.f32 0.5, %v699
      %v701 = vsub.f32 1.5, %v700
      %v702 = vmul.f32 %v697, %v701
      %vm703 = vweird.f32 %v663
      %vm704 = vweird.f32 %v697
      %vm705 = vmor %vm703, %vm704
      %v706 = vsel %vm705, %v697, %v702
      %v707 = vrsqrt.pop %v664
      %v708 = vmul.f32 %v707, %v664
      %v709 = vmul.f32 %v708, %v707
      %v710 = vmul.f32 0.5, %v709
      %v711 = vsub.f32 1.5, %v710
      %v712 = vmul.f32 %v707, %v711
      %vm713 = vweird.f32 %v664
      %vm714 = vweird.f32 %v707
      %vm715 = vmor %vm713, %vm714
      %v716 = vsel %vm715, %v707, %v712
      %v717 = vrsqrt.pop %v665
      %v718 = vmul.f32 %v717, %v665
      %v719 = vmul.f32 %v718, %v717
      %v720 = vmul.f32 0.5, %v719
      %v721 = vsub.f32 1.5, %v720
      %v722 = vmul.f32 %v717, %v721
      %vm723 = vweird.f32 %v665
      %vm724 = vweird.f32 %v717
      %vm725 = vmor %vm723, %vm724
      %v726 = vsel %vm725, %v717, %v722
      %v727 = vrsqrt.pop %v666
      %v728 = vmul.f32 %v727, %v666
      %v729 = vmul.f32 %v728, %v727
      %v730 = vmul.f32 0.5, %v729
      %v731 = vsub.f32 1.5, %v730
      %v732 = vmul.f32 %v727, %v731
      %vm733 = vweird.f32 %v666
      %vm734 = vweird.f32 %v727
      %vm735 = vmor %vm733, %vm734
      %v736 = vsel %vm735, %v727, %v732
      %v737 = vrsqrt.pop %v667
      %v738 = vmul.f32 %v737, %v667
      %v739 = vmul.f32 %v738, %v737
      %v740 = vmul.f32 0.5, %v739
      %v741 = vsub.f32 1.5, %v740
      %v742 = vmul.f32 %v737, %v741
      %vm743 = vweird.f32 %v667
      %vm744 = vweird.f32 %v737
      %vm745 = vmor %vm743, %vm744
      %v746 = vsel %vm745, %v737, %v742
      %v747 = vrsqrt.pop %v668
      %v748 = vmul.f32 %v747, %v668
      %v749 = vmul.f32 %v748, %v747
      %v750 = vmul.f32 0.5, %v749
      %v751 = vsub.f32 1.5, %v750
      %v752 = vmul.f32 %v747, %v751
      %vm753 = vweird.f32 %v668
      %vm754 = vweird.f32 %v747
      %vm755 = vmor %vm753, %vm754
      %v756 = vsel %vm755, %v747, %v752
      %v757 = vrsqrt.pop %v669
      %v758 = vmul.f32 %v757, %v669
      %v759 = vmul.f32 %v758, %v757
      %v760 = vmul.f32 0.5, %v759
      %v761 = vsub.f32 1.5, %v760
      %v762 = vmul.f32 %v757, %v761
      %vm763 = vweird.f32 %v669
      %vm764 = vweird.f32 %v757
      %vm765 = vmor %vm763, %vm764
      %v766 = vsel %vm765, %v757, %v762
      %v767 = vrsqrt.pop %v670
      %v768 = vmul.f32 %v767, %v670
      %v769 = vmul.f32 %v768, %v767
      %v770 = vmul.f32 0.5, %v769
      %v771 = vsub.f32 1.5, %v770
      %v772 = vmul.f32 %v767, %v771
      %vm773 = vweird.f32 %v670
      %vm774 = vweird.f32 %v767
      %vm775 = vmor %vm773, %vm774
      %v776 = vsel %vm775, %v767, %v772
      %v777 = vrsqrt.pop %v671
      %v778 = vmul.f32 %v777, %v671
      %v779 = vmul.f32 %v778, %v777
      %v780 = vmul.f32 0.5, %v779
      %v781 = vsub.f32 1.5, %v780
      %v782 = vmul.f32 %v777, %v781
      %vm783 = vweird.f32 %v671
      %vm784 = vweird.f32 %v777
      %vm785 = vmor %vm783, %vm784
      %v786 = vsel %vm785, %v777, %v782
      %v787 = vrsqrt.pop %v672
      %v788 = vmul.f32 %v787, %v672
      %v789 = vmul.f32 %v788, %v787
      %v790 = vmul.f32 0.5, %v789
      %v791 = vsub.f32 1.5, %v790
      %v792 = vmul.f32 %v787, %v791
      %vm793 = vweird.f32 %v672
      %vm794 = vweird.f32 %v787
      %vm795 = vmor %vm793, %vm794
      %v796 = vsel %vm795, %v787, %v792
      %v797 = vrsqrt.pop %v673
      %v798 = vmul.f32 %v797, %v673
      %v799 = vmul.f32 %v798, %v797
      %v800 = vmul.f32 0.5, %v799
      %v801 = vsub.f32 1.5, %v800
      %v802 = vmul.f32 %v797, %v801
      %vm803 = vweird.f32 %v673
      %vm804 = vweird.f32 %v797
      %vm805 = vmor %vm803, %vm804
      %v806 = vsel %vm805, %v797, %v802
      %v807 = vrsqrt.pop %v674
      %v808 = vmul.f32 %v807, %v674
      %v809 = vmul.f32 %v808, %v807
      %v810 = vmul.f32 0.5, %v809
      %v811 = vsub.f32 1.5, %v810
      %v812 = vmul.f32 %v807, %v811
      %vm813 = vweird.f32 %v674
      %vm814 = vweird.f32 %v807
      %vm815 = vmor %vm813, %vm814
      %v816 = vsel %vm815, %v807, %v812
      %v817 = vrsqrt.pop %v675
      %v818 = vmul.f32 %v817, %v675
      %v819 = vmul.f32 %v818, %v817
      %v820 = vmul.f32 0.5, %v819
      %v821 = vsub.f32 1.5, %v820
      %v822 = vmul.f32 %v817, %v821
      %vm823 = vweird.f32 %v675
      %vm824 = vweird.f32 %v817
      %vm825 = vmor %vm823, %vm824
      %v826 = vsel %vm825, %v817, %v822
      %v827 = vrsqrt.pop %v676
      %v828 = vmul.f32 %v827, %v676
      %v829 = vmul.f32 %v828, %v827
      %v830 = vmul.f32 0.5, %v829
      %v831 = vsub.f32 1.5, %v830
      %v832 = vmul.f32 %v827, %v831
      %vm833 = vweird.f32 %v676
      %vm834 = vweird.f32 %v827
      %vm835 = vmor %vm833, %vm834
      %v836 = vsel %vm835, %v827, %v832
      %v837 = vmul.f32 %v565, %v686
      %v838 = vmul.f32 %v566, %v696
      %v839 = vmul.f32 %v567, %v706
      %v840 = vmul.f32 %v568, %v716
      %v841 = vmul.f32 %v569, %v726
      %v842 = vmul.f32 %v570, %v736
      %v843 = vmul.f32 %v571, %v746
      %v844 = vmul.f32 %v572, %v756
      %v845 = vmul.f32 %v573, %v766
      %v846 = vmul.f32 %v574, %v776
      %v847 = vmul.f32 %v575, %v786
      %v848 = vmul.f32 %v576, %v796
      %v849 = vmul.f32 %v577, %v806
      %v850 = vmul.f32 %v578, %v816
      %v851 = vmul.f32 %v579, %v826
      %v852 = vmul.f32 %v580, %v836
      %v854 = vperm.slane %v491, 0
      %v856 = vmul.f32 %v837, %v854
      %v857 = vmul.f32 %v838, %v854
      %v858 = vmul.f32 %v839, %v854
      %v859 = vmul.f32 %v840, %v854
      %v860 = vmul.f32 %v841, %v854
      %v861 = vmul.f32 %v842, %v854
      %v862 = vmul.f32 %v843, %v854
      %v863 = vmul.f32 %v844, %v854
      %v864 = vmul.f32 %v845, %v854
      %v865 = vmul.f32 %v846, %v854
      %v866 = vmul.f32 %v847, %v854
      %v867 = vmul.f32 %v848, %v854
      %v868 = vmul.f32 %v849, %v854
      %v869 = vmul.f32 %v850, %v854
      %v870 = vmul.f32 %v851, %v854
      %v871 = vmul.f32 %v852, %v854
      %v873 = vperm.slane %v492, 0
      %v875 = vadd.f32 %v856, %v873
      %v876 = vadd.f32 %v857, %v873
      %v877 = vadd.f32 %v858, %v873
      %v878 = vadd.f32 %v859, %v873
      %v879 = vadd.f32 %v860, %v873
      %v880 = vadd.f32 %v861, %v873
      %v881 = vadd.f32 %v862, %v873
      %v882 = vadd.f32 %v863, %v873
      %v883 = vadd.f32 %v864, %v873
      %v884 = vadd.f32 %v865, %v873
      %v885 = vadd.f32 %v866, %v873
      %v886 = vadd.f32 %v867, %v873
      %v887 = vadd.f32 %v868, %v873
      %v888 = vadd.f32 %v869, %v873
      %v889 = vadd.f32 %v870, %v873
      %v890 = vadd.f32 %v871, %v873
      %v891 = vpack.c.bf16 %v876, %v875
      %v892 = vpack.c.bf16 %v878, %v877
      %v893 = vpack.c.bf16 %v880, %v879
      %v894 = vpack.c.bf16 %v882, %v881
      %v895 = vpack.c.bf16 %v884, %v883
      %v896 = vpack.c.bf16 %v886, %v885
      %v897 = vpack.c.bf16 %v888, %v887
      %v898 = vpack.c.bf16 %v890, %v889
      %v899 = vsel %vm493, %v467, 0.0
      %900 = vadd.xlane.f32.xlu0 %v899
      %v901 = vpop.xlane.xlu0 %900
      %v902 = vsel %vm493, %v468, 0.0
      %903 = vadd.xlane.f32.xlu0 %v902
      %v904 = vpop.xlane.xlu0 %903
      %v905 = vsel %vm493, %v469, 0.0
      %906 = vadd.xlane.f32.xlu0 %v905
      %v907 = vpop.xlane.xlu0 %906
      %v908 = vsel %vm493, %v470, 0.0
      %909 = vadd.xlane.f32.xlu0 %v908
      %v910 = vpop.xlane.xlu0 %909
      %v911 = vsel %vm493, %v471, 0.0
      %912 = vadd.xlane.f32.xlu0 %v911
      %v913 = vpop.xlane.xlu0 %912
      %v914 = vsel %vm493, %v472, 0.0
      %915 = vadd.xlane.f32.xlu0 %v914
      %v916 = vpop.xlane.xlu0 %915
      %v917 = vsel %vm493, %v473, 0.0
      %918 = vadd.xlane.f32.xlu0 %v917
      %v919 = vpop.xlane.xlu0 %918
      %v920 = vsel %vm493, %v474, 0.0
      %921 = vadd.xlane.f32.xlu0 %v920
      %v922 = vpop.xlane.xlu0 %921
      %v923 = vmul.f32 %v901, %v548
      %v924 = vmul.f32 %v904, %v548
      %v925 = vmul.f32 %v907, %v548
      %v926 = vmul.f32 %v910, %v548
      %v927 = vmul.f32 %v913, %v548
      %v928 = vmul.f32 %v916, %v548
      %v929 = vmul.f32 %v919, %v548
      %v930 = vmul.f32 %v922, %v548
      %v931 = vsub.f32 %v467, %v923
      %v932 = vsub.f32 %v468, %v924
      %v933 = vsub.f32 %v469, %v925
      %v934 = vsub.f32 %v470, %v926
      %v935 = vsub.f32 %v471, %v927
      %v936 = vsub.f32 %v472, %v928
      %v937 = vsub.f32 %v473, %v929
      %v938 = vsub.f32 %v474, %v930
      %v939 = vmul.f32 %v931, %v931
      %v940 = vmul.f32 %v932, %v932
      %v941 = vmul.f32 %v933, %v933
      %v942 = vmul.f32 %v934, %v934
      %v943 = vmul.f32 %v935, %v935
      %v944 = vmul.f32 %v936, %v936
      %v945 = vmul.f32 %v937, %v937
      %v946 = vmul.f32 %v938, %v938
      %v947 = vsel %vm493, %v939, 0.0
      %948 = vadd.xlane.f32.xlu0 %v947
      %v949 = vpop.xlane.xlu0 %948
      %v950 = vsel %vm493, %v940, 0.0
      %951 = vadd.xlane.f32.xlu0 %v950
      %v952 = vpop.xlane.xlu0 %951
      %v953 = vsel %vm493, %v941, 0.0
      %954 = vadd.xlane.f32.xlu0 %v953
      %v955 = vpop.xlane.xlu0 %954
      %v956 = vsel %vm493, %v942, 0.0
      %957 = vadd.xlane.f32.xlu0 %v956
      %v958 = vpop.xlane.xlu0 %957
      %v959 = vsel %vm493, %v943, 0.0
      %960 = vadd.xlane.f32.xlu0 %v959
      %v961 = vpop.xlane.xlu0 %960
      %v962 = vsel %vm493, %v944, 0.0
      %963 = vadd.xlane.f32.xlu0 %v962
      %v964 = vpop.xlane.xlu0 %963
      %v965 = vsel %vm493, %v945, 0.0
      %966 = vadd.xlane.f32.xlu0 %v965
      %v967 = vpop.xlane.xlu0 %966
      %v968 = vsel %vm493, %v946, 0.0
      %969 = vadd.xlane.f32.xlu0 %v968
      %v970 = vpop.xlane.xlu0 %969
      %v971 = vmul.f32 %v949, %v548
      %v972 = vmul.f32 %v952, %v548
      %v973 = vmul.f32 %v955, %v548
      %v974 = vmul.f32 %v958, %v548
      %v975 = vmul.f32 %v961, %v548
      %v976 = vmul.f32 %v964, %v548
      %v977 = vmul.f32 %v967, %v548
      %v978 = vmul.f32 %v970, %v548
      %v979 = vadd.f32 %v971, 1e-05
      %v980 = vadd.f32 %v972, 1e-05
      %v981 = vadd.f32 %v973, 1e-05
      %v982 = vadd.f32 %v974, 1e-05
      %v983 = vadd.f32 %v975, 1e-05
      %v984 = vadd.f32 %v976, 1e-05
      %v985 = vadd.f32 %v977, 1e-05
      %v986 = vadd.f32 %v978, 1e-05
      %v987 = vrsqrt.pop %v979
      %v988 = vmul.f32 %v987, %v979
      %v989 = vmul.f32 %v988, %v987
      %v990 = vmul.f32 0.5, %v989
      %v991 = vsub.f32 1.5, %v990
      %v992 = vmul.f32 %v987, %v991
      %vm993 = vweird.f32 %v979
      %vm994 = vweird.f32 %v987
      %vm995 = vmor %vm993, %vm994
      %v996 = vsel %vm995, %v987, %v992
      %v997 = vrsqrt.pop %v980
      %v998 = vmul.f32 %v997, %v980
      %v999 = vmul.f32 %v998, %v997
      %v1000 = vmul.f32 0.5, %v999
      %v1001 = vsub.f32 1.5, %v1000
      %v1002 = vmul.f32 %v997, %v1001
      %vm1003 = vweird.f32 %v980
      %vm1004 = vweird.f32 %v997
      %vm1005 = vmor %vm1003, %vm1004
      %v1006 = vsel %vm1005, %v997, %v1002
      %v1007 = vrsqrt.pop %v981
      %v1008 = vmul.f32 %v1007, %v981
      %v1009 = vmul.f32 %v1008, %v1007
      %v1010 = vmul.f32 0.5, %v1009
      %v1011 = vsub.f32 1.5, %v1010
      %v1012 = vmul.f32 %v1007, %v1011
      %vm1013 = vweird.f32 %v981
      %vm1014 = vweird.f32 %v1007
      %vm1015 = vmor %vm1013, %vm1014
      %v1016 = vsel %vm1015, %v1007, %v1012
      %v1017 = vrsqrt.pop %v982
      %v1018 = vmul.f32 %v1017, %v982
      %v1019 = vmul.f32 %v1018, %v1017
      %v1020 = vmul.f32 0.5, %v1019
      %v1021 = vsub.f32 1.5, %v1020
      %v1022 = vmul.f32 %v1017, %v1021
      %vm1023 = vweird.f32 %v982
      %vm1024 = vweird.f32 %v1017
      %vm1025 = vmor %vm1023, %vm1024
      %v1026 = vsel %vm1025, %v1017, %v1022
      %v1027 = vrsqrt.pop %v983
      %v1028 = vmul.f32 %v1027, %v983
      %v1029 = vmul.f32 %v1028, %v1027
      %v1030 = vmul.f32 0.5, %v1029
      %v1031 = vsub.f32 1.5, %v1030
      %v1032 = vmul.f32 %v1027, %v1031
      %vm1033 = vweird.f32 %v983
      %vm1034 = vweird.f32 %v1027
      %vm1035 = vmor %vm1033, %vm1034
      %v1036 = vsel %vm1035, %v1027, %v1032
      %v1037 = vrsqrt.pop %v984
      %v1038 = vmul.f32 %v1037, %v984
      %v1039 = vmul.f32 %v1038, %v1037
      %v1040 = vmul.f32 0.5, %v1039
      %v1041 = vsub.f32 1.5, %v1040
      %v1042 = vmul.f32 %v1037, %v1041
      %vm1043 = vweird.f32 %v984
      %vm1044 = vweird.f32 %v1037
      %vm1045 = vmor %vm1043, %vm1044
      %v1046 = vsel %vm1045, %v1037, %v1042
      %v1047 = vrsqrt.pop %v985
      %v1048 = vmul.f32 %v1047, %v985
      %v1049 = vmul.f32 %v1048, %v1047
      %v1050 = vmul.f32 0.5, %v1049
      %v1051 = vsub.f32 1.5, %v1050
      %v1052 = vmul.f32 %v1047, %v1051
      %vm1053 = vweird.f32 %v985
      %vm1054 = vweird.f32 %v1047
      %vm1055 = vmor %vm1053, %vm1054
      %v1056 = vsel %vm1055, %v1047, %v1052
      %v1057 = vrsqrt.pop %v986
      %v1058 = vmul.f32 %v1057, %v986
      %v1059 = vmul.f32 %v1058, %v1057
      %v1060 = vmul.f32 0.5, %v1059
      %v1061 = vsub.f32 1.5, %v1060
      %v1062 = vmul.f32 %v1057, %v1061
      %vm1063 = vweird.f32 %v986
      %vm1064 = vweird.f32 %v1057
      %vm1065 = vmor %vm1063, %vm1064
      %v1066 = vsel %vm1065, %v1057, %v1062
      %v1067 = vmul.f32 %v931, %v996
      %v1068 = vmul.f32 %v932, %v1006
      %v1069 = vmul.f32 %v933, %v1016
      %v1070 = vmul.f32 %v934, %v1026
      %v1071 = vmul.f32 %v935, %v1036
      %v1072 = vmul.f32 %v936, %v1046
      %v1073 = vmul.f32 %v937, %v1056
      %v1074 = vmul.f32 %v938, %v1066
      %v1075 = vmul.f32 %v1067, %v854
      %v1076 = vmul.f32 %v1068, %v854
      %v1077 = vmul.f32 %v1069, %v854
      %v1078 = vmul.f32 %v1070, %v854
      %v1079 = vmul.f32 %v1071, %v854
      %v1080 = vmul.f32 %v1072, %v854
      %v1081 = vmul.f32 %v1073, %v854
      %v1082 = vmul.f32 %v1074, %v854
      %v1083 = vadd.f32 %v1075, %v873
      %v1084 = vadd.f32 %v1076, %v873
      %v1085 = vadd.f32 %v1077, %v873
      %v1086 = vadd.f32 %v1078, %v873
      %v1087 = vadd.f32 %v1079, %v873
      %v1088 = vadd.f32 %v1080, %v873
      %v1089 = vadd.f32 %v1081, %v873
      %v1090 = vadd.f32 %v1082, %v873
      %v1091 = vpack.c.bf16 %v1084, %v1083
      %v1092 = vpack.c.bf16 %v1086, %v1085
      %v1093 = vpack.c.bf16 %v1088, %v1087
      %v1094 = vpack.c.bf16 %v1090, %v1089
      %v1095 = vld [vmem:[%s3] sm:$0xf]
      %v1096 = vld [vmem:[%s3 + $0x4] sm:$0xf]
      %v1097 = vld [vmem:[%s3 + $0x8] sm:$0xf]
      %v1098 = vld [vmem:[%s3 + $0xc] sm:$0xf]
      %v1099 = vld [vmem:[%s3 + $0x10] sm:$0xf]
      %v1100 = vld [vmem:[%s3 + $0x14] sm:$0xf]
      %v1101 = vld [vmem:[%s3 + $0x18] sm:$0xf]
      %v1102 = vld [vmem:[%s3 + $0x1c] sm:$0xf]
      %v1111 = vunpack.c.l.b16 %v1095
      %v1112 = vunpack.c.l.b16 %v1096
      %v1113 = vunpack.c.l.b16 %v1097
      %v1114 = vunpack.c.l.b16 %v1098
      %v1115 = vunpack.c.l.b16 %v1099
      %v1116 = vunpack.c.l.b16 %v1100
      %v1117 = vunpack.c.l.b16 %v1101
      %v1118 = vunpack.c.l.b16 %v1102
      %v1119 = vpack.c.b16 %v1112, %v1111
      %v1120 = vpack.c.b16 %v1114, %v1113
      %v1121 = vpack.c.b16 %v1116, %v1115
      %v1122 = vpack.c.b16 %v1118, %v1117
      %v1128 = vsel %vm493, %v1091, 0
      %v1131 = vsel %vm493, %v1092, 0
      %v1134 = vsel %vm493, %v1093, 0
      %v1137 = vsel %vm493, %v1094, 0
      %1139 = vmatpush.bf16.msra.mxu0 0
      %1140 = vmatpush.bf16.msra.mxu0 0
      %1141 = vmatpush.bf16.msra.mxu0 0
      %1142 = vmatpush.bf16.msra.mxu0 0
      %1143 = vmatpush.bf16.msra.mxu0 %v1122
      %1144 = vmatpush.bf16.msra.mxu0 %v1121
      %1145 = vmatpush.bf16.msra.mxu0 %v1120
      %1146 = vmatpush.bf16.msra.mxu0 %v1119
      %1147 = vmatmul.bf16.gmra.mxu0 %v1128
      %v1148 = vpop.f32.mrf.mxu0
      %v1149 = vadd.f32 0.0, %v1148
      %v1150 = vpop.f32.mrf.mxu0
      %v1151 = vadd.f32 0.0, %v1150
      %1152 = vmatmul.bf16.gmra.mxu0 %v1131
      %v1153 = vpop.f32.mrf.mxu0
      %v1154 = vadd.f32 0.0, %v1153
      %v1155 = vpop.f32.mrf.mxu0
      %v1156 = vadd.f32 0.0, %v1155
      %1157 = vmatmul.bf16.gmra.mxu0 %v1134
      %v1158 = vpop.f32.mrf.mxu0
      %v1159 = vadd.f32 0.0, %v1158
      %v1160 = vpop.f32.mrf.mxu0
      %v1161 = vadd.f32 0.0, %v1160
      %1162 = vmatmul.bf16.gmra.mxu0 %v1137
      %v1163 = vpop.f32.mrf.mxu0
      %v1164 = vadd.f32 0.0, %v1163
      %v1165 = vpop.f32.mrf.mxu0
      %v1166 = vadd.f32 0.0, %v1165
      %1167 = vdwg.mxu0
      %v1168 = vld [vmem:[%s4] sm:$0xf]
      %v1169 = vld [vmem:[%s4 + $0x4] sm:$0xf]
      %v1170 = vld [vmem:[%s4 + $0x8] sm:$0xf]
      %v1171 = vld [vmem:[%s4 + $0xc] sm:$0xf]
      %v1172 = vld [vmem:[%s4 + $0x10] sm:$0xf]
      %v1173 = vld [vmem:[%s4 + $0x14] sm:$0xf]
      %v1174 = vld [vmem:[%s4 + $0x18] sm:$0xf]
      %v1175 = vld [vmem:[%s4 + $0x1c] sm:$0xf]
      %v1184 = vunpack.c.l.b16 %v1168
      %v1185 = vunpack.c.l.b16 %v1169
      %v1186 = vunpack.c.l.b16 %v1170
      %v1187 = vunpack.c.l.b16 %v1171
      %v1188 = vunpack.c.l.b16 %v1172
      %v1189 = vunpack.c.l.b16 %v1173
      %v1190 = vunpack.c.l.b16 %v1174
      %v1191 = vunpack.c.l.b16 %v1175
      %v1192 = vpack.c.b16 %v1185, %v1184
      %v1193 = vpack.c.b16 %v1187, %v1186
      %v1194 = vpack.c.b16 %v1189, %v1188
      %v1195 = vpack.c.b16 %v1191, %v1190
      %v1201 = vsel %vm493, %v891, 0
      %v1204 = vsel %vm493, %v892, 0
      %v1207 = vsel %vm493, %v893, 0
      %v1210 = vsel %vm493, %v894, 0
      %v1213 = vsel %vm493, %v895, 0
      %v1216 = vsel %vm493, %v896, 0
      %v1219 = vsel %vm493, %v897, 0
      %v1222 = vsel %vm493, %v898, 0
      %1224 = vmatpush.bf16.msra.mxu0 0
      %1225 = vmatpush.bf16.msra.mxu0 0
      %1226 = vmatpush.bf16.msra.mxu0 0
      %1227 = vmatpush.bf16.msra.mxu0 0
      %1228 = vmatpush.bf16.msra.mxu0 %v1195
      %1229 = vmatpush.bf16.msra.mxu0 %v1194
      %1230 = vmatpush.bf16.msra.mxu0 %v1193
      %1231 = vmatpush.bf16.msra.mxu0 %v1192
      %1232 = vmatmul.bf16.gmra.mxu0 %v1201
      %v1233 = vpop.f32.mrf.mxu0
      %v1234 = vadd.f32 0.0, %v1233
      %v1235 = vpop.f32.mrf.mxu0
      %v1236 = vadd.f32 0.0, %v1235
      %1237 = vmatmul.bf16.gmra.mxu0 %v1204
      %v1238 = vpop.f32.mrf.mxu0
      %v1239 = vadd.f32 0.0, %v1238
      %v1240 = vpop.f32.mrf.mxu0
      %v1241 = vadd.f32 0.0, %v1240
      %1242 = vmatmul.bf16.gmra.mxu0 %v1207
      %v1243 = vpop.f32.mrf.mxu0
      %v1244 = vadd.f32 0.0, %v1243
      %v1245 = vpop.f32.mrf.mxu0
      %v1246 = vadd.f32 0.0, %v1245
      %1247 = vmatmul.bf16.gmra.mxu0 %v1210
      %v1248 = vpop.f32.mrf.mxu0
      %v1249 = vadd.f32 0.0, %v1248
      %v1250 = vpop.f32.mrf.mxu0
      %v1251 = vadd.f32 0.0, %v1250
      %1252 = vmatmul.bf16.gmra.mxu0 %v1213
      %v1253 = vpop.f32.mrf.mxu0
      %v1254 = vadd.f32 0.0, %v1253
      %v1255 = vpop.f32.mrf.mxu0
      %v1256 = vadd.f32 0.0, %v1255
      %1257 = vmatmul.bf16.gmra.mxu0 %v1216
      %v1258 = vpop.f32.mrf.mxu0
      %v1259 = vadd.f32 0.0, %v1258
      %v1260 = vpop.f32.mrf.mxu0
      %v1261 = vadd.f32 0.0, %v1260
      %1262 = vmatmul.bf16.gmra.mxu0 %v1219
      %v1263 = vpop.f32.mrf.mxu0
      %v1264 = vadd.f32 0.0, %v1263
      %v1265 = vpop.f32.mrf.mxu0
      %v1266 = vadd.f32 0.0, %v1265
      %1267 = vmatmul.bf16.gmra.mxu0 %v1222
      %v1268 = vpop.f32.mrf.mxu0
      %v1269 = vadd.f32 0.0, %v1268
      %v1270 = vpop.f32.mrf.mxu0
      %v1271 = vadd.f32 0.0, %v1270
      %1272 = vdwg.mxu0
      %1281 = vrot.lane.b32.xlu0 %v1149, 120
      %v1282 = vpop.permute.xlu0 %1281
      %1283 = vrot.lane.b32.xlu0 %v1151, 120
      %v1284 = vpop.permute.xlu0 %1283
      %1285 = vrot.lane.b32.xlu0 %v1154, 120
      %v1286 = vpop.permute.xlu0 %1285
      %1287 = vrot.lane.b32.xlu0 %v1156, 120
      %v1288 = vpop.permute.xlu0 %1287
      %1289 = vrot.lane.b32.xlu0 %v1159, 120
      %v1290 = vpop.permute.xlu0 %1289
      %1291 = vrot.lane.b32.xlu0 %v1161, 120
      %v1292 = vpop.permute.xlu0 %1291
      %1293 = vrot.lane.b32.xlu0 %v1164, 120
      %v1294 = vpop.permute.xlu0 %1293
      %1295 = vrot.lane.b32.xlu0 %v1166, 120
      %v1296 = vpop.permute.xlu0 %1295
      %1305 = vrot.lane.b32.xlu0 %v1149, 112
      %v1306 = vpop.permute.xlu0 %1305
      %1307 = vrot.lane.b32.xlu0 %v1151, 112
      %v1308 = vpop.permute.xlu0 %1307
      %1309 = vrot.lane.b32.xlu0 %v1154, 112
      %v1310 = vpop.permute.xlu0 %1309
      %1311 = vrot.lane.b32.xlu0 %v1156, 112
      %v1312 = vpop.permute.xlu0 %1311
      %1313 = vrot.lane.b32.xlu0 %v1159, 112
      %v1314 = vpop.permute.xlu0 %1313
      %1315 = vrot.lane.b32.xlu0 %v1161, 112
      %v1316 = vpop.permute.xlu0 %1315
      %1317 = vrot.lane.b32.xlu0 %v1164, 112
      %v1318 = vpop.permute.xlu0 %1317
      %1319 = vrot.lane.b32.xlu0 %v1166, 112
      %v1320 = vpop.permute.xlu0 %1319
      %1329 = vrot.lane.b32.xlu0 %v1149, 104
      %v1330 = vpop.permute.xlu0 %1329
      %1331 = vrot.lane.b32.xlu0 %v1151, 104
      %v1332 = vpop.permute.xlu0 %1331
      %1333 = vrot.lane.b32.xlu0 %v1154, 104
      %v1334 = vpop.permute.xlu0 %1333
      %1335 = vrot.lane.b32.xlu0 %v1156, 104
      %v1336 = vpop.permute.xlu0 %1335
      %1337 = vrot.lane.b32.xlu0 %v1159, 104
      %v1338 = vpop.permute.xlu0 %1337
      %1339 = vrot.lane.b32.xlu0 %v1161, 104
      %v1340 = vpop.permute.xlu0 %1339
      %1341 = vrot.lane.b32.xlu0 %v1164, 104
      %v1342 = vpop.permute.xlu0 %1341
      %1343 = vrot.lane.b32.xlu0 %v1166, 104
      %v1344 = vpop.permute.xlu0 %1343
      %1353 = vrot.lane.b32.xlu0 %v1149, 96
      %v1354 = vpop.permute.xlu0 %1353
      %1355 = vrot.lane.b32.xlu0 %v1151, 96
      %v1356 = vpop.permute.xlu0 %1355
      %1357 = vrot.lane.b32.xlu0 %v1154, 96
      %v1358 = vpop.permute.xlu0 %1357
      %1359 = vrot.lane.b32.xlu0 %v1156, 96
      %v1360 = vpop.permute.xlu0 %1359
      %1361 = vrot.lane.b32.xlu0 %v1159, 96
      %v1362 = vpop.permute.xlu0 %1361
      %1363 = vrot.lane.b32.xlu0 %v1161, 96
      %v1364 = vpop.permute.xlu0 %1363
      %1365 = vrot.lane.b32.xlu0 %v1164, 96
      %v1366 = vpop.permute.xlu0 %1365
      %1367 = vrot.lane.b32.xlu0 %v1166, 96
      %v1368 = vpop.permute.xlu0 %1367
      %1377 = vrot.lane.b32.xlu0 %v1149, 88
      %v1378 = vpop.permute.xlu0 %1377
      %1379 = vrot.lane.b32.xlu0 %v1151, 88
      %v1380 = vpop.permute.xlu0 %1379
      %1381 = vrot.lane.b32.xlu0 %v1154, 88
      %v1382 = vpop.permute.xlu0 %1381
      %1383 = vrot.lane.b32.xlu0 %v1156, 88
      %v1384 = vpop.permute.xlu0 %1383
      %1385 = vrot.lane.b32.xlu0 %v1159, 88
      %v1386 = vpop.permute.xlu0 %1385
      %1387 = vrot.lane.b32.xlu0 %v1161, 88
      %v1388 = vpop.permute.xlu0 %1387
      %1389 = vrot.lane.b32.xlu0 %v1164, 88
      %v1390 = vpop.permute.xlu0 %1389
      %1391 = vrot.lane.b32.xlu0 %v1166, 88
      %v1392 = vpop.permute.xlu0 %1391
      %1401 = vrot.lane.b32.xlu0 %v1149, 80
      %v1402 = vpop.permute.xlu0 %1401
      %1403 = vrot.lane.b32.xlu0 %v1151, 80
      %v1404 = vpop.permute.xlu0 %1403
      %1405 = vrot.lane.b32.xlu0 %v1154, 80
      %v1406 = vpop.permute.xlu0 %1405
      %1407 = vrot.lane.b32.xlu0 %v1156, 80
      %v1408 = vpop.permute.xlu0 %1407
      %1409 = vrot.lane.b32.xlu0 %v1159, 80
      %v1410 = vpop.permute.xlu0 %1409
      %1411 = vrot.lane.b32.xlu0 %v1161, 80
      %v1412 = vpop.permute.xlu0 %1411
      %1413 = vrot.lane.b32.xlu0 %v1164, 80
      %v1414 = vpop.permute.xlu0 %1413
      %1415 = vrot.lane.b32.xlu0 %v1166, 80
      %v1416 = vpop.permute.xlu0 %1415
      %1425 = vrot.lane.b32.xlu0 %v1149, 72
      %v1426 = vpop.permute.xlu0 %1425
      %1427 = vrot.lane.b32.xlu0 %v1151, 72
      %v1428 = vpop.permute.xlu0 %1427
      %1429 = vrot.lane.b32.xlu0 %v1154, 72
      %v1430 = vpop.permute.xlu0 %1429
      %1431 = vrot.lane.b32.xlu0 %v1156, 72
      %v1432 = vpop.permute.xlu0 %1431
      %1433 = vrot.lane.b32.xlu0 %v1159, 72
      %v1434 = vpop.permute.xlu0 %1433
      %1435 = vrot.lane.b32.xlu0 %v1161, 72
      %v1436 = vpop.permute.xlu0 %1435
      %1437 = vrot.lane.b32.xlu0 %v1164, 72
      %v1438 = vpop.permute.xlu0 %1437
      %1439 = vrot.lane.b32.xlu0 %v1166, 72
      %v1440 = vpop.permute.xlu0 %1439
      %v1449 = vpack.c.bf16 %v1149, %v1149
      %v1450 = vpack.c.bf16 %v1151, %v1151
      %v1451 = vpack.c.bf16 %v1154, %v1154
      %v1452 = vpack.c.bf16 %v1156, %v1156
      %v1453 = vpack.c.bf16 %v1159, %v1159
      %v1454 = vpack.c.bf16 %v1161, %v1161
      %v1455 = vpack.c.bf16 %v1164, %v1164
      %v1456 = vpack.c.bf16 %v1166, %v1166
      %v1457 = vpack.c.bf16 %v1282, %v1282
      %v1458 = vpack.c.bf16 %v1284, %v1284
      %v1459 = vpack.c.bf16 %v1286, %v1286
      %v1460 = vpack.c.bf16 %v1288, %v1288
      %v1461 = vpack.c.bf16 %v1290, %v1290
      %v1462 = vpack.c.bf16 %v1292, %v1292
      %v1463 = vpack.c.bf16 %v1294, %v1294
      %v1464 = vpack.c.bf16 %v1296, %v1296
      %v1465 = vpack.c.bf16 %v1306, %v1306
      %v1466 = vpack.c.bf16 %v1308, %v1308
      %v1467 = vpack.c.bf16 %v1310, %v1310
      %v1468 = vpack.c.bf16 %v1312, %v1312
      %v1469 = vpack.c.bf16 %v1314, %v1314
      %v1470 = vpack.c.bf16 %v1316, %v1316
      %v1471 = vpack.c.bf16 %v1318, %v1318
      %v1472 = vpack.c.bf16 %v1320, %v1320
      %v1473 = vpack.c.bf16 %v1330, %v1330
      %v1474 = vpack.c.bf16 %v1332, %v1332
      %v1475 = vpack.c.bf16 %v1334, %v1334
      %v1476 = vpack.c.bf16 %v1336, %v1336
      %v1477 = vpack.c.bf16 %v1338, %v1338
      %v1478 = vpack.c.bf16 %v1340, %v1340
      %v1479 = vpack.c.bf16 %v1342, %v1342
      %v1480 = vpack.c.bf16 %v1344, %v1344
      %v1481 = vpack.c.bf16 %v1354, %v1354
      %v1482 = vpack.c.bf16 %v1356, %v1356
      %v1483 = vpack.c.bf16 %v1358, %v1358
      %v1484 = vpack.c.bf16 %v1360, %v1360
      %v1485 = vpack.c.bf16 %v1362, %v1362
      %v1486 = vpack.c.bf16 %v1364, %v1364
      %v1487 = vpack.c.bf16 %v1366, %v1366
      %v1488 = vpack.c.bf16 %v1368, %v1368
      %v1489 = vpack.c.bf16 %v1378, %v1378
      %v1490 = vpack.c.bf16 %v1380, %v1380
      %v1491 = vpack.c.bf16 %v1382, %v1382
      %v1492 = vpack.c.bf16 %v1384, %v1384
      %v1493 = vpack.c.bf16 %v1386, %v1386
      %v1494 = vpack.c.bf16 %v1388, %v1388
      %v1495 = vpack.c.bf16 %v1390, %v1390
      %v1496 = vpack.c.bf16 %v1392, %v1392
      %v1497 = vpack.c.bf16 %v1402, %v1402
      %v1498 = vpack.c.bf16 %v1404, %v1404
      %v1499 = vpack.c.bf16 %v1406, %v1406
      %v1500 = vpack.c.bf16 %v1408, %v1408
      %v1501 = vpack.c.bf16 %v1410, %v1410
      %v1502 = vpack.c.bf16 %v1412, %v1412
      %v1503 = vpack.c.bf16 %v1414, %v1414
      %v1504 = vpack.c.bf16 %v1416, %v1416
      %v1505 = vpack.c.bf16 %v1426, %v1426
      %v1506 = vpack.c.bf16 %v1428, %v1428
      %v1507 = vpack.c.bf16 %v1430, %v1430
      %v1508 = vpack.c.bf16 %v1432, %v1432
      %v1509 = vpack.c.bf16 %v1434, %v1434
      %v1510 = vpack.c.bf16 %v1436, %v1436
      %v1511 = vpack.c.bf16 %v1438, %v1438
      %v1512 = vpack.c.bf16 %v1440, %v1440
      %1529 = vrot.lane.b32.xlu0 %v1234, 120
      %v1530 = vpop.permute.xlu0 %1529
      %1531 = vrot.lane.b32.xlu0 %v1236, 120
      %v1532 = vpop.permute.xlu0 %1531
      %1533 = vrot.lane.b32.xlu0 %v1239, 120
      %v1534 = vpop.permute.xlu0 %1533
      %1535 = vrot.lane.b32.xlu0 %v1241, 120
      %v1536 = vpop.permute.xlu0 %1535
      %1537 = vrot.lane.b32.xlu0 %v1244, 120
      %v1538 = vpop.permute.xlu0 %1537
      %1539 = vrot.lane.b32.xlu0 %v1246, 120
      %v1540 = vpop.permute.xlu0 %1539
      %1541 = vrot.lane.b32.xlu0 %v1249, 120
      %v1542 = vpop.permute.xlu0 %1541
      %1543 = vrot.lane.b32.xlu0 %v1251, 120
      %v1544 = vpop.permute.xlu0 %1543
      %1545 = vrot.lane.b32.xlu0 %v1254, 120
      %v1546 = vpop.permute.xlu0 %1545
      %1547 = vrot.lane.b32.xlu0 %v1256, 120
      %v1548 = vpop.permute.xlu0 %1547
      %1549 = vrot.lane.b32.xlu0 %v1259, 120
      %v1550 = vpop.permute.xlu0 %1549
      %1551 = vrot.lane.b32.xlu0 %v1261, 120
      %v1552 = vpop.permute.xlu0 %1551
      %1553 = vrot.lane.b32.xlu0 %v1264, 120
      %v1554 = vpop.permute.xlu0 %1553
      %1555 = vrot.lane.b32.xlu0 %v1266, 120
      %v1556 = vpop.permute.xlu0 %1555
      %1557 = vrot.lane.b32.xlu0 %v1269, 120
      %v1558 = vpop.permute.xlu0 %1557
      %1559 = vrot.lane.b32.xlu0 %v1271, 120
      %v1560 = vpop.permute.xlu0 %1559
      %1577 = vrot.lane.b32.xlu0 %v1234, 112
      %v1578 = vpop.permute.xlu0 %1577
      %1579 = vrot.lane.b32.xlu0 %v1236, 112
      %v1580 = vpop.permute.xlu0 %1579
      %1581 = vrot.lane.b32.xlu0 %v1239, 112
      %v1582 = vpop.permute.xlu0 %1581
      %1583 = vrot.lane.b32.xlu0 %v1241, 112
      %v1584 = vpop.permute.xlu0 %1583
      %1585 = vrot.lane.b32.xlu0 %v1244, 112
      %v1586 = vpop.permute.xlu0 %1585
      %1587 = vrot.lane.b32.xlu0 %v1246, 112
      %v1588 = vpop.permute.xlu0 %1587
      %1589 = vrot.lane.b32.xlu0 %v1249, 112
      %v1590 = vpop.permute.xlu0 %1589
      %1591 = vrot.lane.b32.xlu0 %v1251, 112
      %v1592 = vpop.permute.xlu0 %1591
      %1593 = vrot.lane.b32.xlu0 %v1254, 112
      %v1594 = vpop.permute.xlu0 %1593
      %1595 = vrot.lane.b32.xlu0 %v1256, 112
      %v1596 = vpop.permute.xlu0 %1595
      %1597 = vrot.lane.b32.xlu0 %v1259, 112
      %v1598 = vpop.permute.xlu0 %1597
      %1599 = vrot.lane.b32.xlu0 %v1261, 112
      %v1600 = vpop.permute.xlu0 %1599
      %1601 = vrot.lane.b32.xlu0 %v1264, 112
      %v1602 = vpop.permute.xlu0 %1601
      %1603 = vrot.lane.b32.xlu0 %v1266, 112
      %v1604 = vpop.permute.xlu0 %1603
      %1605 = vrot.lane.b32.xlu0 %v1269, 112
      %v1606 = vpop.permute.xlu0 %1605
      %1607 = vrot.lane.b32.xlu0 %v1271, 112
      %v1608 = vpop.permute.xlu0 %1607
      %1625 = vrot.lane.b32.xlu0 %v1234, 104
      %v1626 = vpop.permute.xlu0 %1625
      %1627 = vrot.lane.b32.xlu0 %v1236, 104
      %v1628 = vpop.permute.xlu0 %1627
      %1629 = vrot.lane.b32.xlu0 %v1239, 104
      %v1630 = vpop.permute.xlu0 %1629
      %1631 = vrot.lane.b32.xlu0 %v1241, 104
      %v1632 = vpop.permute.xlu0 %1631
      %1633 = vrot.lane.b32.xlu0 %v1244, 104
      %v1634 = vpop.permute.xlu0 %1633
      %1635 = vrot.lane.b32.xlu0 %v1246, 104
      %v1636 = vpop.permute.xlu0 %1635
      %1637 = vrot.lane.b32.xlu0 %v1249, 104
      %v1638 = vpop.permute.xlu0 %1637
      %1639 = vrot.lane.b32.xlu0 %v1251, 104
      %v1640 = vpop.permute.xlu0 %1639
      %1641 = vrot.lane.b32.xlu0 %v1254, 104
      %v1642 = vpop.permute.xlu0 %1641
      %1643 = vrot.lane.b32.xlu0 %v1256, 104
      %v1644 = vpop.permute.xlu0 %1643
      %1645 = vrot.lane.b32.xlu0 %v1259, 104
      %v1646 = vpop.permute.xlu0 %1645
      %1647 = vrot.lane.b32.xlu0 %v1261, 104
      %v1648 = vpop.permute.xlu0 %1647
      %1649 = vrot.lane.b32.xlu0 %v1264, 104
      %v1650 = vpop.permute.xlu0 %1649
      %1651 = vrot.lane.b32.xlu0 %v1266, 104
      %v1652 = vpop.permute.xlu0 %1651
      %1653 = vrot.lane.b32.xlu0 %v1269, 104
      %v1654 = vpop.permute.xlu0 %1653
      %1655 = vrot.lane.b32.xlu0 %v1271, 104
      %v1656 = vpop.permute.xlu0 %1655
      %1673 = vrot.lane.b32.xlu0 %v1234, 96
      %v1674 = vpop.permute.xlu0 %1673
      %1675 = vrot.lane.b32.xlu0 %v1236, 96
      %v1676 = vpop.permute.xlu0 %1675
      %1677 = vrot.lane.b32.xlu0 %v1239, 96
      %v1678 = vpop.permute.xlu0 %1677
      %1679 = vrot.lane.b32.xlu0 %v1241, 96
      %v1680 = vpop.permute.xlu0 %1679
      %1681 = vrot.lane.b32.xlu0 %v1244, 96
      %v1682 = vpop.permute.xlu0 %1681
      %1683 = vrot.lane.b32.xlu0 %v1246, 96
      %v1684 = vpop.permute.xlu0 %1683
      %1685 = vrot.lane.b32.xlu0 %v1249, 96
      %v1686 = vpop.permute.xlu0 %1685
      %1687 = vrot.lane.b32.xlu0 %v1251, 96
      %v1688 = vpop.permute.xlu0 %1687
      %1689 = vrot.lane.b32.xlu0 %v1254, 96
      %v1690 = vpop.permute.xlu0 %1689
      %1691 = vrot.lane.b32.xlu0 %v1256, 96
      %v1692 = vpop.permute.xlu0 %1691
      %1693 = vrot.lane.b32.xlu0 %v1259, 96
      %v1694 = vpop.permute.xlu0 %1693
      %1695 = vrot.lane.b32.xlu0 %v1261, 96
      %v1696 = vpop.permute.xlu0 %1695
      %1697 = vrot.lane.b32.xlu0 %v1264, 96
      %v1698 = vpop.permute.xlu0 %1697
      %1699 = vrot.lane.b32.xlu0 %v1266, 96
      %v1700 = vpop.permute.xlu0 %1699
      %1701 = vrot.lane.b32.xlu0 %v1269, 96
      %v1702 = vpop.permute.xlu0 %1701
      %1703 = vrot.lane.b32.xlu0 %v1271, 96
      %v1704 = vpop.permute.xlu0 %1703
      %1721 = vrot.lane.b32.xlu0 %v1234, 88
      %v1722 = vpop.permute.xlu0 %1721
      %1723 = vrot.lane.b32.xlu0 %v1236, 88
      %v1724 = vpop.permute.xlu0 %1723
      %1725 = vrot.lane.b32.xlu0 %v1239, 88
      %v1726 = vpop.permute.xlu0 %1725
      %1727 = vrot.lane.b32.xlu0 %v1241, 88
      %v1728 = vpop.permute.xlu0 %1727
      %1729 = vrot.lane.b32.xlu0 %v1244, 88
      %v1730 = vpop.permute.xlu0 %1729
      %1731 = vrot.lane.b32.xlu0 %v1246, 88
      %v1732 = vpop.permute.xlu0 %1731
      %1733 = vrot.lane.b32.xlu0 %v1249, 88
      %v1734 = vpop.permute.xlu0 %1733
      %1735 = vrot.lane.b32.xlu0 %v1251, 88
      %v1736 = vpop.permute.xlu0 %1735
      %1737 = vrot.lane.b32.xlu0 %v1254, 88
      %v1738 = vpop.permute.xlu0 %1737
      %1739 = vrot.lane.b32.xlu0 %v1256, 88
      %v1740 = vpop.permute.xlu0 %1739
      %1741 = vrot.lane.b32.xlu0 %v1259, 88
      %v1742 = vpop.permute.xlu0 %1741
      %1743 = vrot.lane.b32.xlu0 %v1261, 88
      %v1744 = vpop.permute.xlu0 %1743
      %1745 = vrot.lane.b32.xlu0 %v1264, 88
      %v1746 = vpop.permute.xlu0 %1745
      %1747 = vrot.lane.b32.xlu0 %v1266, 88
      %v1748 = vpop.permute.xlu0 %1747
      %1749 = vrot.lane.b32.xlu0 %v1269, 88
      %v1750 = vpop.permute.xlu0 %1749
      %1751 = vrot.lane.b32.xlu0 %v1271, 88
      %v1752 = vpop.permute.xlu0 %1751
      %1769 = vrot.lane.b32.xlu0 %v1234, 80
      %v1770 = vpop.permute.xlu0 %1769
      %1771 = vrot.lane.b32.xlu0 %v1236, 80
      %v1772 = vpop.permute.xlu0 %1771
      %1773 = vrot.lane.b32.xlu0 %v1239, 80
      %v1774 = vpop.permute.xlu0 %1773
      %1775 = vrot.lane.b32.xlu0 %v1241, 80
      %v1776 = vpop.permute.xlu0 %1775
      %1777 = vrot.lane.b32.xlu0 %v1244, 80
      %v1778 = vpop.permute.xlu0 %1777
      %1779 = vrot.lane.b32.xlu0 %v1246, 80
      %v1780 = vpop.permute.xlu0 %1779
      %1781 = vrot.lane.b32.xlu0 %v1249, 80
      %v1782 = vpop.permute.xlu0 %1781
      %1783 = vrot.lane.b32.xlu0 %v1251, 80
      %v1784 = vpop.permute.xlu0 %1783
      %1785 = vrot.lane.b32.xlu0 %v1254, 80
      %v1786 = vpop.permute.xlu0 %1785
      %1787 = vrot.lane.b32.xlu0 %v1256, 80
      %v1788 = vpop.permute.xlu0 %1787
      %1789 = vrot.lane.b32.xlu0 %v1259, 80
      %v1790 = vpop.permute.xlu0 %1789
      %1791 = vrot.lane.b32.xlu0 %v1261, 80
      %v1792 = vpop.permute.xlu0 %1791
      %1793 = vrot.lane.b32.xlu0 %v1264, 80
      %v1794 = vpop.permute.xlu0 %1793
      %1795 = vrot.lane.b32.xlu0 %v1266, 80
      %v1796 = vpop.permute.xlu0 %1795
      %1797 = vrot.lane.b32.xlu0 %v1269, 80
      %v1798 = vpop.permute.xlu0 %1797
      %1799 = vrot.lane.b32.xlu0 %v1271, 80
      %v1800 = vpop.permute.xlu0 %1799
      %1817 = vrot.lane.b32.xlu0 %v1234, 72
      %v1818 = vpop.permute.xlu0 %1817
      %1819 = vrot.lane.b32.xlu0 %v1236, 72
      %v1820 = vpop.permute.xlu0 %1819
      %1821 = vrot.lane.b32.xlu0 %v1239, 72
      %v1822 = vpop.permute.xlu0 %1821
      %1823 = vrot.lane.b32.xlu0 %v1241, 72
      %v1824 = vpop.permute.xlu0 %1823
      %1825 = vrot.lane.b32.xlu0 %v1244, 72
      %v1826 = vpop.permute.xlu0 %1825
      %1827 = vrot.lane.b32.xlu0 %v1246, 72
      %v1828 = vpop.permute.xlu0 %1827
      %1829 = vrot.lane.b32.xlu0 %v1249, 72
      %v1830 = vpop.permute.xlu0 %1829
      %1831 = vrot.lane.b32.xlu0 %v1251, 72
      %v1832 = vpop.permute.xlu0 %1831
      %1833 = vrot.lane.b32.xlu0 %v1254, 72
      %v1834 = vpop.permute.xlu0 %1833
      %1835 = vrot.lane.b32.xlu0 %v1256, 72
      %v1836 = vpop.permute.xlu0 %1835
      %1837 = vrot.lane.b32.xlu0 %v1259, 72
      %v1838 = vpop.permute.xlu0 %1837
      %1839 = vrot.lane.b32.xlu0 %v1261, 72
      %v1840 = vpop.permute.xlu0 %1839
      %1841 = vrot.lane.b32.xlu0 %v1264, 72
      %v1842 = vpop.permute.xlu0 %1841
      %1843 = vrot.lane.b32.xlu0 %v1266, 72
      %v1844 = vpop.permute.xlu0 %1843
      %1845 = vrot.lane.b32.xlu0 %v1269, 72
      %v1846 = vpop.permute.xlu0 %1845
      %1847 = vrot.lane.b32.xlu0 %v1271, 72
      %v1848 = vpop.permute.xlu0 %1847
      %v1865 = vpack.c.bf16 %v1234, %v1234
      %v1866 = vpack.c.bf16 %v1236, %v1236
      %v1867 = vpack.c.bf16 %v1239, %v1239
      %v1868 = vpack.c.bf16 %v1241, %v1241
      %v1869 = vpack.c.bf16 %v1244, %v1244
      %v1870 = vpack.c.bf16 %v1246, %v1246
      %v1871 = vpack.c.bf16 %v1249, %v1249
      %v1872 = vpack.c.bf16 %v1251, %v1251
      %v1873 = vpack.c.bf16 %v1254, %v1254
      %v1874 = vpack.c.bf16 %v1256, %v1256
      %v1875 = vpack.c.bf16 %v1259, %v1259
      %v1876 = vpack.c.bf16 %v1261, %v1261
      %v1877 = vpack.c.bf16 %v1264, %v1264
      %v1878 = vpack.c.bf16 %v1266, %v1266
      %v1879 = vpack.c.bf16 %v1269, %v1269
      %v1880 = vpack.c.bf16 %v1271, %v1271
      %v1881 = vpack.c.bf16 %v1530, %v1530
      %v1882 = vpack.c.bf16 %v1532, %v1532
      %v1883 = vpack.c.bf16 %v1534, %v1534
      %v1884 = vpack.c.bf16 %v1536, %v1536
      %v1885 = vpack.c.bf16 %v1538, %v1538
      %v1886 = vpack.c.bf16 %v1540, %v1540
      %v1887 = vpack.c.bf16 %v1542, %v1542
      %v1888 = vpack.c.bf16 %v1544, %v1544
      %v1889 = vpack.c.bf16 %v1546, %v1546
      %v1890 = vpack.c.bf16 %v1548, %v1548
      %v1891 = vpack.c.bf16 %v1550, %v1550
      %v1892 = vpack.c.bf16 %v1552, %v1552
      %v1893 = vpack.c.bf16 %v1554, %v1554
      %v1894 = vpack.c.bf16 %v1556, %v1556
      %v1895 = vpack.c.bf16 %v1558, %v1558
      %v1896 = vpack.c.bf16 %v1560, %v1560
      %v1897 = vpack.c.bf16 %v1578, %v1578
      %v1898 = vpack.c.bf16 %v1580, %v1580
      %v1899 = vpack.c.bf16 %v1582, %v1582
      %v1900 = vpack.c.bf16 %v1584, %v1584
      %v1901 = vpack.c.bf16 %v1586, %v1586
      %v1902 = vpack.c.bf16 %v1588, %v1588
      %v1903 = vpack.c.bf16 %v1590, %v1590
      %v1904 = vpack.c.bf16 %v1592, %v1592
      %v1905 = vpack.c.bf16 %v1594, %v1594
      %v1906 = vpack.c.bf16 %v1596, %v1596
      %v1907 = vpack.c.bf16 %v1598, %v1598
      %v1908 = vpack.c.bf16 %v1600, %v1600
      %v1909 = vpack.c.bf16 %v1602, %v1602
      %v1910 = vpack.c.bf16 %v1604, %v1604
      %v1911 = vpack.c.bf16 %v1606, %v1606
      %v1912 = vpack.c.bf16 %v1608, %v1608
      %v1913 = vpack.c.bf16 %v1626, %v1626
      %v1914 = vpack.c.bf16 %v1628, %v1628
      %v1915 = vpack.c.bf16 %v1630, %v1630
      %v1916 = vpack.c.bf16 %v1632, %v1632
      %v1917 = vpack.c.bf16 %v1634, %v1634
      %v1918 = vpack.c.bf16 %v1636, %v1636
      %v1919 = vpack.c.bf16 %v1638, %v1638
      %v1920 = vpack.c.bf16 %v1640, %v1640
      %v1921 = vpack.c.bf16 %v1642, %v1642
      %v1922 = vpack.c.bf16 %v1644, %v1644
      %v1923 = vpack.c.bf16 %v1646, %v1646
      %v1924 = vpack.c.bf16 %v1648, %v1648
      %v1925 = vpack.c.bf16 %v1650, %v1650
      %v1926 = vpack.c.bf16 %v1652, %v1652
      %v1927 = vpack.c.bf16 %v1654, %v1654
      %v1928 = vpack.c.bf16 %v1656, %v1656
      %v1929 = vpack.c.bf16 %v1674, %v1674
      %v1930 = vpack.c.bf16 %v1676, %v1676
      %v1931 = vpack.c.bf16 %v1678, %v1678
      %v1932 = vpack.c.bf16 %v1680, %v1680
      %v1933 = vpack.c.bf16 %v1682, %v1682
      %v1934 = vpack.c.bf16 %v1684, %v1684
      %v1935 = vpack.c.bf16 %v1686, %v1686
      %v1936 = vpack.c.bf16 %v1688, %v1688
      %v1937 = vpack.c.bf16 %v1690, %v1690
      %v1938 = vpack.c.bf16 %v1692, %v1692
      %v1939 = vpack.c.bf16 %v1694, %v1694
      %v1940 = vpack.c.bf16 %v1696, %v1696
      %v1941 = vpack.c.bf16 %v1698, %v1698
      %v1942 = vpack.c.bf16 %v1700, %v1700
      %v1943 = vpack.c.bf16 %v1702, %v1702
      %v1944 = vpack.c.bf16 %v1704, %v1704
      %v1945 = vpack.c.bf16 %v1722, %v1722
      %v1946 = vpack.c.bf16 %v1724, %v1724
      %v1947 = vpack.c.bf16 %v1726, %v1726
      %v1948 = vpack.c.bf16 %v1728, %v1728
      %v1949 = vpack.c.bf16 %v1730, %v1730
      %v1950 = vpack.c.bf16 %v1732, %v1732
      %v1951 = vpack.c.bf16 %v1734, %v1734
      %v1952 = vpack.c.bf16 %v1736, %v1736
      %v1953 = vpack.c.bf16 %v1738, %v1738
      %v1954 = vpack.c.bf16 %v1740, %v1740
      %v1955 = vpack.c.bf16 %v1742, %v1742
      %v1956 = vpack.c.bf16 %v1744, %v1744
      %v1957 = vpack.c.bf16 %v1746, %v1746
      %v1958 = vpack.c.bf16 %v1748, %v1748
      %v1959 = vpack.c.bf16 %v1750, %v1750
      %v1960 = vpack.c.bf16 %v1752, %v1752
      %v1961 = vpack.c.bf16 %v1770, %v1770
      %v1962 = vpack.c.bf16 %v1772, %v1772
      %v1963 = vpack.c.bf16 %v1774, %v1774
      %v1964 = vpack.c.bf16 %v1776, %v1776
      %v1965 = vpack.c.bf16 %v1778, %v1778
      %v1966 = vpack.c.bf16 %v1780, %v1780
      %v1967 = vpack.c.bf16 %v1782, %v1782
      %v1968 = vpack.c.bf16 %v1784, %v1784
      %v1969 = vpack.c.bf16 %v1786, %v1786
      %v1970 = vpack.c.bf16 %v1788, %v1788
      %v1971 = vpack.c.bf16 %v1790, %v1790
      %v1972 = vpack.c.bf16 %v1792, %v1792
      %v1973 = vpack.c.bf16 %v1794, %v1794
      %v1974 = vpack.c.bf16 %v1796, %v1796
      %v1975 = vpack.c.bf16 %v1798, %v1798
      %v1976 = vpack.c.bf16 %v1800, %v1800
      %v1977 = vpack.c.bf16 %v1818, %v1818
      %v1978 = vpack.c.bf16 %v1820, %v1820
      %v1979 = vpack.c.bf16 %v1822, %v1822
      %v1980 = vpack.c.bf16 %v1824, %v1824
      %v1981 = vpack.c.bf16 %v1826, %v1826
      %v1982 = vpack.c.bf16 %v1828, %v1828
      %v1983 = vpack.c.bf16 %v1830, %v1830
      %v1984 = vpack.c.bf16 %v1832, %v1832
      %v1985 = vpack.c.bf16 %v1834, %v1834
      %v1986 = vpack.c.bf16 %v1836, %v1836
      %v1987 = vpack.c.bf16 %v1838, %v1838
      %v1988 = vpack.c.bf16 %v1840, %v1840
      %v1989 = vpack.c.bf16 %v1842, %v1842
      %v1990 = vpack.c.bf16 %v1844, %v1844
      %v1991 = vpack.c.bf16 %v1846, %v1846
      %v1992 = vpack.c.bf16 %v1848, %v1848
      %v2001 = vunpack.c.l.b16 %v1449
      %v2002 = vunpack.c.l.b16 %v1450
      %v2003 = vunpack.c.l.b16 %v1451
      %v2004 = vunpack.c.l.b16 %v1452
      %v2005 = vunpack.c.l.b16 %v1453
      %v2006 = vunpack.c.l.b16 %v1454
      %v2007 = vunpack.c.l.b16 %v1455
      %v2008 = vunpack.c.l.b16 %v1456
      %v2009 = vpack.c.b16 %v2002, %v2001
      %v2010 = vpack.c.b16 %v2004, %v2003
      %v2011 = vpack.c.b16 %v2006, %v2005
      %v2012 = vpack.c.b16 %v2008, %v2007
      %v2029 = vunpack.c.l.b16 %v1865
      %v2030 = vunpack.c.l.b16 %v1866
      %v2031 = vunpack.c.l.b16 %v1867
      %v2032 = vunpack.c.l.b16 %v1868
      %v2033 = vunpack.c.l.b16 %v1869
      %v2034 = vunpack.c.l.b16 %v1870
      %v2035 = vunpack.c.l.b16 %v1871
      %v2036 = vunpack.c.l.b16 %v1872
      %v2037 = vunpack.c.l.b16 %v1873
      %v2038 = vunpack.c.l.b16 %v1874
      %v2039 = vunpack.c.l.b16 %v1875
      %v2040 = vunpack.c.l.b16 %v1876
      %v2041 = vunpack.c.l.b16 %v1877
      %v2042 = vunpack.c.l.b16 %v1878
      %v2043 = vunpack.c.l.b16 %v1879
      %v2044 = vunpack.c.l.b16 %v1880
      %v2045 = vpack.c.b16 %v2030, %v2029
      %v2046 = vpack.c.b16 %v2032, %v2031
      %v2047 = vpack.c.b16 %v2034, %v2033
      %v2048 = vpack.c.b16 %v2036, %v2035
      %v2049 = vpack.c.b16 %v2038, %v2037
      %v2050 = vpack.c.b16 %v2040, %v2039
      %v2051 = vpack.c.b16 %v2042, %v2041
      %v2052 = vpack.c.b16 %v2044, %v2043
      %vm2053 = vcmask 64512
      %v2055 = vsel %vm2053, %v2009, 0
      %v2058 = vsel %vm2053, %v2010, 0
      %v2061 = vsel %vm2053, %v2011, 0
      %v2064 = vsel %vm2053, %v2012, 0
      %v2067 = vsel %vm2053, %v2045, 0
      %v2070 = vsel %vm2053, %v2046, 0
      %v2073 = vsel %vm2053, %v2047, 0
      %v2076 = vsel %vm2053, %v2048, 0
      %v2079 = vsel %vm2053, %v2049, 0
      %v2082 = vsel %vm2053, %v2050, 0
      %v2085 = vsel %vm2053, %v2051, 0
      %v2088 = vsel %vm2053, %v2052, 0
      %2090 = vmatpush.bf16.xpose.msra.mxu0 %v2088
      %2091 = vmatpush.bf16.xpose.msra.mxu0 %v2085
      %2092 = vmatpush.bf16.xpose.msra.mxu0 %v2082
      %2093 = vmatpush.bf16.xpose.msra.mxu0 %v2079
      %2094 = vmatpush.bf16.xpose.msra.mxu0 %v2076
      %2095 = vmatpush.bf16.xpose.msra.mxu0 %v2073
      %2096 = vmatpush.bf16.xpose.msra.mxu0 %v2070
      %2097 = vmatpush.bf16.xpose.msra.mxu0 %v2067
      %2098 = vmatmul.bf16.gmra.mxu0 %v2055
      %v2099 = vpop.f32.mrf.mxu0
      %v2100 = vadd.f32 0.0, %v2099
      %v2101 = vpop.f32.mrf.mxu0
      %v2102 = vadd.f32 0.0, %v2101
      %2103 = vmatmul.bf16.gmra.mxu0 %v2058
      %v2104 = vpop.f32.mrf.mxu0
      %v2105 = vadd.f32 0.0, %v2104
      %v2106 = vpop.f32.mrf.mxu0
      %v2107 = vadd.f32 0.0, %v2106
      %2108 = vmatmul.bf16.gmra.mxu0 %v2061
      %v2109 = vpop.f32.mrf.mxu0
      %v2110 = vadd.f32 0.0, %v2109
      %v2111 = vpop.f32.mrf.mxu0
      %v2112 = vadd.f32 0.0, %v2111
      %2113 = vmatmul.bf16.gmra.mxu0 %v2064
      %v2114 = vpop.f32.mrf.mxu0
      %v2115 = vadd.f32 0.0, %v2114
      %v2116 = vpop.f32.mrf.mxu0
      %v2117 = vadd.f32 0.0, %v2116
      %2118 = vdwg.mxu0
      %v2127 = vunpack.c.l.b16 %v1457
      %v2128 = vunpack.c.l.b16 %v1458
      %v2129 = vunpack.c.l.b16 %v1459
      %v2130 = vunpack.c.l.b16 %v1460
      %v2131 = vunpack.c.l.b16 %v1461
      %v2132 = vunpack.c.l.b16 %v1462
      %v2133 = vunpack.c.l.b16 %v1463
      %v2134 = vunpack.c.l.b16 %v1464
      %v2135 = vpack.c.b16 %v2128, %v2127
      %v2136 = vpack.c.b16 %v2130, %v2129
      %v2137 = vpack.c.b16 %v2132, %v2131
      %v2138 = vpack.c.b16 %v2134, %v2133
      %v2155 = vunpack.c.l.b16 %v1881
      %v2156 = vunpack.c.l.b16 %v1882
      %v2157 = vunpack.c.l.b16 %v1883
      %v2158 = vunpack.c.l.b16 %v1884
      %v2159 = vunpack.c.l.b16 %v1885
      %v2160 = vunpack.c.l.b16 %v1886
      %v2161 = vunpack.c.l.b16 %v1887
      %v2162 = vunpack.c.l.b16 %v1888
      %v2163 = vunpack.c.l.b16 %v1889
      %v2164 = vunpack.c.l.b16 %v1890
      %v2165 = vunpack.c.l.b16 %v1891
      %v2166 = vunpack.c.l.b16 %v1892
      %v2167 = vunpack.c.l.b16 %v1893
      %v2168 = vunpack.c.l.b16 %v1894
      %v2169 = vunpack.c.l.b16 %v1895
      %v2170 = vunpack.c.l.b16 %v1896
      %v2171 = vpack.c.b16 %v2156, %v2155
      %v2172 = vpack.c.b16 %v2158, %v2157
      %v2173 = vpack.c.b16 %v2160, %v2159
      %v2174 = vpack.c.b16 %v2162, %v2161
      %v2175 = vpack.c.b16 %v2164, %v2163
      %v2176 = vpack.c.b16 %v2166, %v2165
      %v2177 = vpack.c.b16 %v2168, %v2167
      %v2178 = vpack.c.b16 %v2170, %v2169
      %v2180 = vsel %vm2053, %v2135, 0
      %v2183 = vsel %vm2053, %v2136, 0
      %v2186 = vsel %vm2053, %v2137, 0
      %v2189 = vsel %vm2053, %v2138, 0
      %v2192 = vsel %vm2053, %v2171, 0
      %v2195 = vsel %vm2053, %v2172, 0
      %v2198 = vsel %vm2053, %v2173, 0
      %v2201 = vsel %vm2053, %v2174, 0
      %v2204 = vsel %vm2053, %v2175, 0
      %v2207 = vsel %vm2053, %v2176, 0
      %v2210 = vsel %vm2053, %v2177, 0
      %v2213 = vsel %vm2053, %v2178, 0
      %2215 = vmatpush.bf16.xpose.msra.mxu0 %v2213
      %2216 = vmatpush.bf16.xpose.msra.mxu0 %v2210
      %2217 = vmatpush.bf16.xpose.msra.mxu0 %v2207
      %2218 = vmatpush.bf16.xpose.msra.mxu0 %v2204
      %2219 = vmatpush.bf16.xpose.msra.mxu0 %v2201
      %2220 = vmatpush.bf16.xpose.msra.mxu0 %v2198
      %2221 = vmatpush.bf16.xpose.msra.mxu0 %v2195
      %2222 = vmatpush.bf16.xpose.msra.mxu0 %v2192
      %2223 = vmatmul.bf16.gmra.mxu0 %v2180
      %v2224 = vpop.f32.mrf.mxu0
      %v2225 = vadd.f32 0.0, %v2224
      %v2226 = vpop.f32.mrf.mxu0
      %v2227 = vadd.f32 0.0, %v2226
      %2228 = vmatmul.bf16.gmra.mxu0 %v2183
      %v2229 = vpop.f32.mrf.mxu0
      %v2230 = vadd.f32 0.0, %v2229
      %v2231 = vpop.f32.mrf.mxu0
      %v2232 = vadd.f32 0.0, %v2231
      %2233 = vmatmul.bf16.gmra.mxu0 %v2186
      %v2234 = vpop.f32.mrf.mxu0
      %v2235 = vadd.f32 0.0, %v2234
      %v2236 = vpop.f32.mrf.mxu0
      %v2237 = vadd.f32 0.0, %v2236
      %2238 = vmatmul.bf16.gmra.mxu0 %v2189
      %v2239 = vpop.f32.mrf.mxu0
      %v2240 = vadd.f32 0.0, %v2239
      %v2241 = vpop.f32.mrf.mxu0
      %v2242 = vadd.f32 0.0, %v2241
      %2243 = vdwg.mxu0
      %v2252 = vunpack.c.l.b16 %v1465
      %v2253 = vunpack.c.l.b16 %v1466
      %v2254 = vunpack.c.l.b16 %v1467
      %v2255 = vunpack.c.l.b16 %v1468
      %v2256 = vunpack.c.l.b16 %v1469
      %v2257 = vunpack.c.l.b16 %v1470
      %v2258 = vunpack.c.l.b16 %v1471
      %v2259 = vunpack.c.l.b16 %v1472
      %v2260 = vpack.c.b16 %v2253, %v2252
      %v2261 = vpack.c.b16 %v2255, %v2254
      %v2262 = vpack.c.b16 %v2257, %v2256
      %v2263 = vpack.c.b16 %v2259, %v2258
      %v2280 = vunpack.c.l.b16 %v1897
      %v2281 = vunpack.c.l.b16 %v1898
      %v2282 = vunpack.c.l.b16 %v1899
      %v2283 = vunpack.c.l.b16 %v1900
      %v2284 = vunpack.c.l.b16 %v1901
      %v2285 = vunpack.c.l.b16 %v1902
      %v2286 = vunpack.c.l.b16 %v1903
      %v2287 = vunpack.c.l.b16 %v1904
      %v2288 = vunpack.c.l.b16 %v1905
      %v2289 = vunpack.c.l.b16 %v1906
      %v2290 = vunpack.c.l.b16 %v1907
      %v2291 = vunpack.c.l.b16 %v1908
      %v2292 = vunpack.c.l.b16 %v1909
      %v2293 = vunpack.c.l.b16 %v1910
      %v2294 = vunpack.c.l.b16 %v1911
      %v2295 = vunpack.c.l.b16 %v1912
      %v2296 = vpack.c.b16 %v2281, %v2280
      %v2297 = vpack.c.b16 %v2283, %v2282
      %v2298 = vpack.c.b16 %v2285, %v2284
      %v2299 = vpack.c.b16 %v2287, %v2286
      %v2300 = vpack.c.b16 %v2289, %v2288
      %v2301 = vpack.c.b16 %v2291, %v2290
      %v2302 = vpack.c.b16 %v2293, %v2292
      %v2303 = vpack.c.b16 %v2295, %v2294
      %v2305 = vsel %vm2053, %v2260, 0
      %v2308 = vsel %vm2053, %v2261, 0
      %v2311 = vsel %vm2053, %v2262, 0
      %v2314 = vsel %vm2053, %v2263, 0
      %v2317 = vsel %vm2053, %v2296, 0
      %v2320 = vsel %vm2053, %v2297, 0
      %v2323 = vsel %vm2053, %v2298, 0
      %v2326 = vsel %vm2053, %v2299, 0
      %v2329 = vsel %vm2053, %v2300, 0
      %v2332 = vsel %vm2053, %v2301, 0
      %v2335 = vsel %vm2053, %v2302, 0
      %v2338 = vsel %vm2053, %v2303, 0
      %2340 = vmatpush.bf16.xpose.msra.mxu0 %v2338
      %2341 = vmatpush.bf16.xpose.msra.mxu0 %v2335
      %2342 = vmatpush.bf16.xpose.msra.mxu0 %v2332
      %2343 = vmatpush.bf16.xpose.msra.mxu0 %v2329
      %2344 = vmatpush.bf16.xpose.msra.mxu0 %v2326
      %2345 = vmatpush.bf16.xpose.msra.mxu0 %v2323
      %2346 = vmatpush.bf16.xpose.msra.mxu0 %v2320
      %2347 = vmatpush.bf16.xpose.msra.mxu0 %v2317
      %2348 = vmatmul.bf16.gmra.mxu0 %v2305
      %v2349 = vpop.f32.mrf.mxu0
      %v2350 = vadd.f32 0.0, %v2349
      %v2351 = vpop.f32.mrf.mxu0
      %v2352 = vadd.f32 0.0, %v2351
      %2353 = vmatmul.bf16.gmra.mxu0 %v2308
      %v2354 = vpop.f32.mrf.mxu0
      %v2355 = vadd.f32 0.0, %v2354
      %v2356 = vpop.f32.mrf.mxu0
      %v2357 = vadd.f32 0.0, %v2356
      %2358 = vmatmul.bf16.gmra.mxu0 %v2311
      %v2359 = vpop.f32.mrf.mxu0
      %v2360 = vadd.f32 0.0, %v2359
      %v2361 = vpop.f32.mrf.mxu0
      %v2362 = vadd.f32 0.0, %v2361
      %2363 = vmatmul.bf16.gmra.mxu0 %v2314
      %v2364 = vpop.f32.mrf.mxu0
      %v2365 = vadd.f32 0.0, %v2364
      %v2366 = vpop.f32.mrf.mxu0
      %v2367 = vadd.f32 0.0, %v2366
      %2368 = vdwg.mxu0
      %v2377 = vunpack.c.l.b16 %v1473
      %v2378 = vunpack.c.l.b16 %v1474
      %v2379 = vunpack.c.l.b16 %v1475
      %v2380 = vunpack.c.l.b16 %v1476
      %v2381 = vunpack.c.l.b16 %v1477
      %v2382 = vunpack.c.l.b16 %v1478
      %v2383 = vunpack.c.l.b16 %v1479
      %v2384 = vunpack.c.l.b16 %v1480
      %v2385 = vpack.c.b16 %v2378, %v2377
      %v2386 = vpack.c.b16 %v2380, %v2379
      %v2387 = vpack.c.b16 %v2382, %v2381
      %v2388 = vpack.c.b16 %v2384, %v2383
      %v2405 = vunpack.c.l.b16 %v1913
      %v2406 = vunpack.c.l.b16 %v1914
      %v2407 = vunpack.c.l.b16 %v1915
      %v2408 = vunpack.c.l.b16 %v1916
      %v2409 = vunpack.c.l.b16 %v1917
      %v2410 = vunpack.c.l.b16 %v1918
      %v2411 = vunpack.c.l.b16 %v1919
      %v2412 = vunpack.c.l.b16 %v1920
      %v2413 = vunpack.c.l.b16 %v1921
      %v2414 = vunpack.c.l.b16 %v1922
      %v2415 = vunpack.c.l.b16 %v1923
      %v2416 = vunpack.c.l.b16 %v1924
      %v2417 = vunpack.c.l.b16 %v1925
      %v2418 = vunpack.c.l.b16 %v1926
      %v2419 = vunpack.c.l.b16 %v1927
      %v2420 = vunpack.c.l.b16 %v1928
      %v2421 = vpack.c.b16 %v2406, %v2405
      %v2422 = vpack.c.b16 %v2408, %v2407
      %v2423 = vpack.c.b16 %v2410, %v2409
      %v2424 = vpack.c.b16 %v2412, %v2411
      %v2425 = vpack.c.b16 %v2414, %v2413
      %v2426 = vpack.c.b16 %v2416, %v2415
      %v2427 = vpack.c.b16 %v2418, %v2417
      %v2428 = vpack.c.b16 %v2420, %v2419
      %v2430 = vsel %vm2053, %v2385, 0
      %v2433 = vsel %vm2053, %v2386, 0
      %v2436 = vsel %vm2053, %v2387, 0
      %v2439 = vsel %vm2053, %v2388, 0
      %v2442 = vsel %vm2053, %v2421, 0
      %v2445 = vsel %vm2053, %v2422, 0
      %v2448 = vsel %vm2053, %v2423, 0
      %v2451 = vsel %vm2053, %v2424, 0
      %v2454 = vsel %vm2053, %v2425, 0
      %v2457 = vsel %vm2053, %v2426, 0
      %v2460 = vsel %vm2053, %v2427, 0
      %v2463 = vsel %vm2053, %v2428, 0
      %2465 = vmatpush.bf16.xpose.msra.mxu0 %v2463
      %2466 = vmatpush.bf16.xpose.msra.mxu0 %v2460
      %2467 = vmatpush.bf16.xpose.msra.mxu0 %v2457
      %2468 = vmatpush.bf16.xpose.msra.mxu0 %v2454
      %2469 = vmatpush.bf16.xpose.msra.mxu0 %v2451
      %2470 = vmatpush.bf16.xpose.msra.mxu0 %v2448
      %2471 = vmatpush.bf16.xpose.msra.mxu0 %v2445
      %2472 = vmatpush.bf16.xpose.msra.mxu0 %v2442
      %2473 = vmatmul.bf16.gmra.mxu0 %v2430
      %v2474 = vpop.f32.mrf.mxu0
      %v2475 = vadd.f32 0.0, %v2474
      %v2476 = vpop.f32.mrf.mxu0
      %v2477 = vadd.f32 0.0, %v2476
      %2478 = vmatmul.bf16.gmra.mxu0 %v2433
      %v2479 = vpop.f32.mrf.mxu0
      %v2480 = vadd.f32 0.0, %v2479
      %v2481 = vpop.f32.mrf.mxu0
      %v2482 = vadd.f32 0.0, %v2481
      %2483 = vmatmul.bf16.gmra.mxu0 %v2436
      %v2484 = vpop.f32.mrf.mxu0
      %v2485 = vadd.f32 0.0, %v2484
      %v2486 = vpop.f32.mrf.mxu0
      %v2487 = vadd.f32 0.0, %v2486
      %2488 = vmatmul.bf16.gmra.mxu0 %v2439
      %v2489 = vpop.f32.mrf.mxu0
      %v2490 = vadd.f32 0.0, %v2489
      %v2491 = vpop.f32.mrf.mxu0
      %v2492 = vadd.f32 0.0, %v2491
      %2493 = vdwg.mxu0
      %v2502 = vunpack.c.l.b16 %v1481
      %v2503 = vunpack.c.l.b16 %v1482
      %v2504 = vunpack.c.l.b16 %v1483
      %v2505 = vunpack.c.l.b16 %v1484
      %v2506 = vunpack.c.l.b16 %v1485
      %v2507 = vunpack.c.l.b16 %v1486
      %v2508 = vunpack.c.l.b16 %v1487
      %v2509 = vunpack.c.l.b16 %v1488
      %v2510 = vpack.c.b16 %v2503, %v2502
      %v2511 = vpack.c.b16 %v2505, %v2504
      %v2512 = vpack.c.b16 %v2507, %v2506
      %v2513 = vpack.c.b16 %v2509, %v2508
      %v2530 = vunpack.c.l.b16 %v1929
      %v2531 = vunpack.c.l.b16 %v1930
      %v2532 = vunpack.c.l.b16 %v1931
      %v2533 = vunpack.c.l.b16 %v1932
      %v2534 = vunpack.c.l.b16 %v1933
      %v2535 = vunpack.c.l.b16 %v1934
      %v2536 = vunpack.c.l.b16 %v1935
      %v2537 = vunpack.c.l.b16 %v1936
      %v2538 = vunpack.c.l.b16 %v1937
      %v2539 = vunpack.c.l.b16 %v1938
      %v2540 = vunpack.c.l.b16 %v1939
      %v2541 = vunpack.c.l.b16 %v1940
      %v2542 = vunpack.c.l.b16 %v1941
      %v2543 = vunpack.c.l.b16 %v1942
      %v2544 = vunpack.c.l.b16 %v1943
      %v2545 = vunpack.c.l.b16 %v1944
      %v2546 = vpack.c.b16 %v2531, %v2530
      %v2547 = vpack.c.b16 %v2533, %v2532
      %v2548 = vpack.c.b16 %v2535, %v2534
      %v2549 = vpack.c.b16 %v2537, %v2536
      %v2550 = vpack.c.b16 %v2539, %v2538
      %v2551 = vpack.c.b16 %v2541, %v2540
      %v2552 = vpack.c.b16 %v2543, %v2542
      %v2553 = vpack.c.b16 %v2545, %v2544
      %v2555 = vsel %vm2053, %v2510, 0
      %v2558 = vsel %vm2053, %v2511, 0
      %v2561 = vsel %vm2053, %v2512, 0
      %v2564 = vsel %vm2053, %v2513, 0
      %v2567 = vsel %vm2053, %v2546, 0
      %v2570 = vsel %vm2053, %v2547, 0
      %v2573 = vsel %vm2053, %v2548, 0
      %v2576 = vsel %vm2053, %v2549, 0
      %v2579 = vsel %vm2053, %v2550, 0
      %v2582 = vsel %vm2053, %v2551, 0
      %v2585 = vsel %vm2053, %v2552, 0
      %v2588 = vsel %vm2053, %v2553, 0
      %2590 = vmatpush.bf16.xpose.msra.mxu0 %v2588
      %2591 = vmatpush.bf16.xpose.msra.mxu0 %v2585
      %2592 = vmatpush.bf16.xpose.msra.mxu0 %v2582
      %2593 = vmatpush.bf16.xpose.msra.mxu0 %v2579
      %2594 = vmatpush.bf16.xpose.msra.mxu0 %v2576
      %2595 = vmatpush.bf16.xpose.msra.mxu0 %v2573
      %2596 = vmatpush.bf16.xpose.msra.mxu0 %v2570
      %2597 = vmatpush.bf16.xpose.msra.mxu0 %v2567
      %2598 = vmatmul.bf16.gmra.mxu0 %v2555
      %v2599 = vpop.f32.mrf.mxu0
      %v2600 = vadd.f32 0.0, %v2599
      %v2601 = vpop.f32.mrf.mxu0
      %v2602 = vadd.f32 0.0, %v2601
      %2603 = vmatmul.bf16.gmra.mxu0 %v2558
      %v2604 = vpop.f32.mrf.mxu0
      %v2605 = vadd.f32 0.0, %v2604
      %v2606 = vpop.f32.mrf.mxu0
      %v2607 = vadd.f32 0.0, %v2606
      %2608 = vmatmul.bf16.gmra.mxu0 %v2561
      %v2609 = vpop.f32.mrf.mxu0
      %v2610 = vadd.f32 0.0, %v2609
      %v2611 = vpop.f32.mrf.mxu0
      %v2612 = vadd.f32 0.0, %v2611
      %2613 = vmatmul.bf16.gmra.mxu0 %v2564
      %v2614 = vpop.f32.mrf.mxu0
      %v2615 = vadd.f32 0.0, %v2614
      %v2616 = vpop.f32.mrf.mxu0
      %v2617 = vadd.f32 0.0, %v2616
      %2618 = vdwg.mxu0
      %v2627 = vunpack.c.l.b16 %v1489
      %v2628 = vunpack.c.l.b16 %v1490
      %v2629 = vunpack.c.l.b16 %v1491
      %v2630 = vunpack.c.l.b16 %v1492
      %v2631 = vunpack.c.l.b16 %v1493
      %v2632 = vunpack.c.l.b16 %v1494
      %v2633 = vunpack.c.l.b16 %v1495
      %v2634 = vunpack.c.l.b16 %v1496
      %v2635 = vpack.c.b16 %v2628, %v2627
      %v2636 = vpack.c.b16 %v2630, %v2629
      %v2637 = vpack.c.b16 %v2632, %v2631
      %v2638 = vpack.c.b16 %v2634, %v2633
      %v2655 = vunpack.c.l.b16 %v1945
      %v2656 = vunpack.c.l.b16 %v1946
      %v2657 = vunpack.c.l.b16 %v1947
      %v2658 = vunpack.c.l.b16 %v1948
      %v2659 = vunpack.c.l.b16 %v1949
      %v2660 = vunpack.c.l.b16 %v1950
      %v2661 = vunpack.c.l.b16 %v1951
      %v2662 = vunpack.c.l.b16 %v1952
      %v2663 = vunpack.c.l.b16 %v1953
      %v2664 = vunpack.c.l.b16 %v1954
      %v2665 = vunpack.c.l.b16 %v1955
      %v2666 = vunpack.c.l.b16 %v1956
      %v2667 = vunpack.c.l.b16 %v1957
      %v2668 = vunpack.c.l.b16 %v1958
      %v2669 = vunpack.c.l.b16 %v1959
      %v2670 = vunpack.c.l.b16 %v1960
      %v2671 = vpack.c.b16 %v2656, %v2655
      %v2672 = vpack.c.b16 %v2658, %v2657
      %v2673 = vpack.c.b16 %v2660, %v2659
      %v2674 = vpack.c.b16 %v2662, %v2661
      %v2675 = vpack.c.b16 %v2664, %v2663
      %v2676 = vpack.c.b16 %v2666, %v2665
      %v2677 = vpack.c.b16 %v2668, %v2667
      %v2678 = vpack.c.b16 %v2670, %v2669
      %v2680 = vsel %vm2053, %v2635, 0
      %v2683 = vsel %vm2053, %v2636, 0
      %v2686 = vsel %vm2053, %v2637, 0
      %v2689 = vsel %vm2053, %v2638, 0
      %v2692 = vsel %vm2053, %v2671, 0
      %v2695 = vsel %vm2053, %v2672, 0
      %v2698 = vsel %vm2053, %v2673, 0
      %v2701 = vsel %vm2053, %v2674, 0
      %v2704 = vsel %vm2053, %v2675, 0
      %v2707 = vsel %vm2053, %v2676, 0
      %v2710 = vsel %vm2053, %v2677, 0
      %v2713 = vsel %vm2053, %v2678, 0
      %2715 = vmatpush.bf16.xpose.msra.mxu0 %v2713
      %2716 = vmatpush.bf16.xpose.msra.mxu0 %v2710
      %2717 = vmatpush.bf16.xpose.msra.mxu0 %v2707
      %2718 = vmatpush.bf16.xpose.msra.mxu0 %v2704
      %2719 = vmatpush.bf16.xpose.msra.mxu0 %v2701
      %2720 = vmatpush.bf16.xpose.msra.mxu0 %v2698
      %2721 = vmatpush.bf16.xpose.msra.mxu0 %v2695
      %2722 = vmatpush.bf16.xpose.msra.mxu0 %v2692
      %2723 = vmatmul.bf16.gmra.mxu0 %v2680
      %v2724 = vpop.f32.mrf.mxu0
      %v2725 = vadd.f32 0.0, %v2724
      %v2726 = vpop.f32.mrf.mxu0
      %v2727 = vadd.f32 0.0, %v2726
      %2728 = vmatmul.bf16.gmra.mxu0 %v2683
      %v2729 = vpop.f32.mrf.mxu0
      %v2730 = vadd.f32 0.0, %v2729
      %v2731 = vpop.f32.mrf.mxu0
      %v2732 = vadd.f32 0.0, %v2731
      %2733 = vmatmul.bf16.gmra.mxu0 %v2686
      %v2734 = vpop.f32.mrf.mxu0
      %v2735 = vadd.f32 0.0, %v2734
      %v2736 = vpop.f32.mrf.mxu0
      %v2737 = vadd.f32 0.0, %v2736
      %2738 = vmatmul.bf16.gmra.mxu0 %v2689
      %v2739 = vpop.f32.mrf.mxu0
      %v2740 = vadd.f32 0.0, %v2739
      %v2741 = vpop.f32.mrf.mxu0
      %v2742 = vadd.f32 0.0, %v2741
      %2743 = vdwg.mxu0
      %v2752 = vunpack.c.l.b16 %v1497
      %v2753 = vunpack.c.l.b16 %v1498
      %v2754 = vunpack.c.l.b16 %v1499
      %v2755 = vunpack.c.l.b16 %v1500
      %v2756 = vunpack.c.l.b16 %v1501
      %v2757 = vunpack.c.l.b16 %v1502
      %v2758 = vunpack.c.l.b16 %v1503
      %v2759 = vunpack.c.l.b16 %v1504
      %v2760 = vpack.c.b16 %v2753, %v2752
      %v2761 = vpack.c.b16 %v2755, %v2754
      %v2762 = vpack.c.b16 %v2757, %v2756
      %v2763 = vpack.c.b16 %v2759, %v2758
      %v2780 = vunpack.c.l.b16 %v1961
      %v2781 = vunpack.c.l.b16 %v1962
      %v2782 = vunpack.c.l.b16 %v1963
      %v2783 = vunpack.c.l.b16 %v1964
      %v2784 = vunpack.c.l.b16 %v1965
      %v2785 = vunpack.c.l.b16 %v1966
      %v2786 = vunpack.c.l.b16 %v1967
      %v2787 = vunpack.c.l.b16 %v1968
      %v2788 = vunpack.c.l.b16 %v1969
      %v2789 = vunpack.c.l.b16 %v1970
      %v2790 = vunpack.c.l.b16 %v1971
      %v2791 = vunpack.c.l.b16 %v1972
      %v2792 = vunpack.c.l.b16 %v1973
      %v2793 = vunpack.c.l.b16 %v1974
      %v2794 = vunpack.c.l.b16 %v1975
      %v2795 = vunpack.c.l.b16 %v1976
      %v2796 = vpack.c.b16 %v2781, %v2780
      %v2797 = vpack.c.b16 %v2783, %v2782
      %v2798 = vpack.c.b16 %v2785, %v2784
      %v2799 = vpack.c.b16 %v2787, %v2786
      %v2800 = vpack.c.b16 %v2789, %v2788
      %v2801 = vpack.c.b16 %v2791, %v2790
      %v2802 = vpack.c.b16 %v2793, %v2792
      %v2803 = vpack.c.b16 %v2795, %v2794
      %v2805 = vsel %vm2053, %v2760, 0
      %v2808 = vsel %vm2053, %v2761, 0
      %v2811 = vsel %vm2053, %v2762, 0
      %v2814 = vsel %vm2053, %v2763, 0
      %v2817 = vsel %vm2053, %v2796, 0
      %v2820 = vsel %vm2053, %v2797, 0
      %v2823 = vsel %vm2053, %v2798, 0
      %v2826 = vsel %vm2053, %v2799, 0
      %v2829 = vsel %vm2053, %v2800, 0
      %v2832 = vsel %vm2053, %v2801, 0
      %v2835 = vsel %vm2053, %v2802, 0
      %v2838 = vsel %vm2053, %v2803, 0
      %2840 = vmatpush.bf16.xpose.msra.mxu0 %v2838
      %2841 = vmatpush.bf16.xpose.msra.mxu0 %v2835
      %2842 = vmatpush.bf16.xpose.msra.mxu0 %v2832
      %2843 = vmatpush.bf16.xpose.msra.mxu0 %v2829
      %2844 = vmatpush.bf16.xpose.msra.mxu0 %v2826
      %2845 = vmatpush.bf16.xpose.msra.mxu0 %v2823
      %2846 = vmatpush.bf16.xpose.msra.mxu0 %v2820
      %2847 = vmatpush.bf16.xpose.msra.mxu0 %v2817
      %2848 = vmatmul.bf16.gmra.mxu0 %v2805
      %v2849 = vpop.f32.mrf.mxu0
      %v2850 = vadd.f32 0.0, %v2849
      %v2851 = vpop.f32.mrf.mxu0
      %v2852 = vadd.f32 0.0, %v2851
      %2853 = vmatmul.bf16.gmra.mxu0 %v2808
      %v2854 = vpop.f32.mrf.mxu0
      %v2855 = vadd.f32 0.0, %v2854
      %v2856 = vpop.f32.mrf.mxu0
      %v2857 = vadd.f32 0.0, %v2856
      %2858 = vmatmul.bf16.gmra.mxu0 %v2811
      %v2859 = vpop.f32.mrf.mxu0
      %v2860 = vadd.f32 0.0, %v2859
      %v2861 = vpop.f32.mrf.mxu0
      %v2862 = vadd.f32 0.0, %v2861
      %2863 = vmatmul.bf16.gmra.mxu0 %v2814
      %v2864 = vpop.f32.mrf.mxu0
      %v2865 = vadd.f32 0.0, %v2864
      %v2866 = vpop.f32.mrf.mxu0
      %v2867 = vadd.f32 0.0, %v2866
      %2868 = vdwg.mxu0
      %v2877 = vunpack.c.l.b16 %v1505
      %v2878 = vunpack.c.l.b16 %v1506
      %v2879 = vunpack.c.l.b16 %v1507
      %v2880 = vunpack.c.l.b16 %v1508
      %v2881 = vunpack.c.l.b16 %v1509
      %v2882 = vunpack.c.l.b16 %v1510
      %v2883 = vunpack.c.l.b16 %v1511
      %v2884 = vunpack.c.l.b16 %v1512
      %v2885 = vpack.c.b16 %v2878, %v2877
      %v2886 = vpack.c.b16 %v2880, %v2879
      %v2887 = vpack.c.b16 %v2882, %v2881
      %v2888 = vpack.c.b16 %v2884, %v2883
      %v2905 = vunpack.c.l.b16 %v1977
      %v2906 = vunpack.c.l.b16 %v1978
      %v2907 = vunpack.c.l.b16 %v1979
      %v2908 = vunpack.c.l.b16 %v1980
      %v2909 = vunpack.c.l.b16 %v1981
      %v2910 = vunpack.c.l.b16 %v1982
      %v2911 = vunpack.c.l.b16 %v1983
      %v2912 = vunpack.c.l.b16 %v1984
      %v2913 = vunpack.c.l.b16 %v1985
      %v2914 = vunpack.c.l.b16 %v1986
      %v2915 = vunpack.c.l.b16 %v1987
      %v2916 = vunpack.c.l.b16 %v1988
      %v2917 = vunpack.c.l.b16 %v1989
      %v2918 = vunpack.c.l.b16 %v1990
      %v2919 = vunpack.c.l.b16 %v1991
      %v2920 = vunpack.c.l.b16 %v1992
      %v2921 = vpack.c.b16 %v2906, %v2905
      %v2922 = vpack.c.b16 %v2908, %v2907
      %v2923 = vpack.c.b16 %v2910, %v2909
      %v2924 = vpack.c.b16 %v2912, %v2911
      %v2925 = vpack.c.b16 %v2914, %v2913
      %v2926 = vpack.c.b16 %v2916, %v2915
      %v2927 = vpack.c.b16 %v2918, %v2917
      %v2928 = vpack.c.b16 %v2920, %v2919
      %v2930 = vsel %vm2053, %v2885, 0
      %v2933 = vsel %vm2053, %v2886, 0
      %v2936 = vsel %vm2053, %v2887, 0
      %v2939 = vsel %vm2053, %v2888, 0
      %v2942 = vsel %vm2053, %v2921, 0
      %v2945 = vsel %vm2053, %v2922, 0
      %v2948 = vsel %vm2053, %v2923, 0
      %v2951 = vsel %vm2053, %v2924, 0
      %v2954 = vsel %vm2053, %v2925, 0
      %v2957 = vsel %vm2053, %v2926, 0
      %v2960 = vsel %vm2053, %v2927, 0
      %v2963 = vsel %vm2053, %v2928, 0
      %2965 = vmatpush.bf16.xpose.msra.mxu0 %v2963
      %2966 = vmatpush.bf16.xpose.msra.mxu0 %v2960
      %2967 = vmatpush.bf16.xpose.msra.mxu0 %v2957
      %2968 = vmatpush.bf16.xpose.msra.mxu0 %v2954
      %2969 = vmatpush.bf16.xpose.msra.mxu0 %v2951
      %2970 = vmatpush.bf16.xpose.msra.mxu0 %v2948
      %2971 = vmatpush.bf16.xpose.msra.mxu0 %v2945
      %2972 = vmatpush.bf16.xpose.msra.mxu0 %v2942
      %2973 = vmatmul.bf16.gmra.mxu0 %v2930
      %v2974 = vpop.f32.mrf.mxu0
      %v2975 = vadd.f32 0.0, %v2974
      %v2976 = vpop.f32.mrf.mxu0
      %v2977 = vadd.f32 0.0, %v2976
      %2978 = vmatmul.bf16.gmra.mxu0 %v2933
      %v2979 = vpop.f32.mrf.mxu0
      %v2980 = vadd.f32 0.0, %v2979
      %v2981 = vpop.f32.mrf.mxu0
      %v2982 = vadd.f32 0.0, %v2981
      %2983 = vmatmul.bf16.gmra.mxu0 %v2936
      %v2984 = vpop.f32.mrf.mxu0
      %v2985 = vadd.f32 0.0, %v2984
      %v2986 = vpop.f32.mrf.mxu0
      %v2987 = vadd.f32 0.0, %v2986
      %2988 = vmatmul.bf16.gmra.mxu0 %v2939
      %v2989 = vpop.f32.mrf.mxu0
      %v2990 = vadd.f32 0.0, %v2989
      %v2991 = vpop.f32.mrf.mxu0
      %v2992 = vadd.f32 0.0, %v2991
      %2993 = vdwg.mxu0
      %2994 = vmax.xlane.f32.xlu0 %v2100
      %v2995 = vpop.xlane.xlu0 %2994
      %2996 = vmax.xlane.f32.xlu0 %v2102
      %v2997 = vpop.xlane.xlu0 %2996
      %2998 = vmax.xlane.f32.xlu0 %v2105
      %v2999 = vpop.xlane.xlu0 %2998
      %3000 = vmax.xlane.f32.xlu0 %v2107
      %v3001 = vpop.xlane.xlu0 %3000
      %3002 = vmax.xlane.f32.xlu0 %v2110
      %v3003 = vpop.xlane.xlu0 %3002
      %3004 = vmax.xlane.f32.xlu0 %v2112
      %v3005 = vpop.xlane.xlu0 %3004
      %3006 = vmax.xlane.f32.xlu0 %v2115
      %v3007 = vpop.xlane.xlu0 %3006
      %3008 = vmax.xlane.f32.xlu0 %v2117
      %v3009 = vpop.xlane.xlu0 %3008
      %3010 = vmax.xlane.f32.xlu0 %v2225
      %v3011 = vpop.xlane.xlu0 %3010
      %3012 = vmax.xlane.f32.xlu0 %v2227
      %v3013 = vpop.xlane.xlu0 %3012
      %3014 = vmax.xlane.f32.xlu0 %v2230
      %v3015 = vpop.xlane.xlu0 %3014
      %3016 = vmax.xlane.f32.xlu0 %v2232
      %v3017 = vpop.xlane.xlu0 %3016
      %3018 = vmax.xlane.f32.xlu0 %v2235
      %v3019 = vpop.xlane.xlu0 %3018
      %3020 = vmax.xlane.f32.xlu0 %v2237
      %v3021 = vpop.xlane.xlu0 %3020
      %3022 = vmax.xlane.f32.xlu0 %v2240
      %v3023 = vpop.xlane.xlu0 %3022
      %3024 = vmax.xlane.f32.xlu0 %v2242
      %v3025 = vpop.xlane.xlu0 %3024
      %3026 = vmax.xlane.f32.xlu0 %v2350
      %v3027 = vpop.xlane.xlu0 %3026
      %3028 = vmax.xlane.f32.xlu0 %v2352
      %v3029 = vpop.xlane.xlu0 %3028
      %3030 = vmax.xlane.f32.xlu0 %v2355
      %v3031 = vpop.xlane.xlu0 %3030
      %3032 = vmax.xlane.f32.xlu0 %v2357
      %v3033 = vpop.xlane.xlu0 %3032
      %3034 = vmax.xlane.f32.xlu0 %v2360
      %v3035 = vpop.xlane.xlu0 %3034
      %3036 = vmax.xlane.f32.xlu0 %v2362
      %v3037 = vpop.xlane.xlu0 %3036
      %3038 = vmax.xlane.f32.xlu0 %v2365
      %v3039 = vpop.xlane.xlu0 %3038
      %3040 = vmax.xlane.f32.xlu0 %v2367
      %v3041 = vpop.xlane.xlu0 %3040
      %3042 = vmax.xlane.f32.xlu0 %v2475
      %v3043 = vpop.xlane.xlu0 %3042
      %3044 = vmax.xlane.f32.xlu0 %v2477
      %v3045 = vpop.xlane.xlu0 %3044
      %3046 = vmax.xlane.f32.xlu0 %v2480
      %v3047 = vpop.xlane.xlu0 %3046
      %3048 = vmax.xlane.f32.xlu0 %v2482
      %v3049 = vpop.xlane.xlu0 %3048
      %3050 = vmax.xlane.f32.xlu0 %v2485
      %v3051 = vpop.xlane.xlu0 %3050
      %3052 = vmax.xlane.f32.xlu0 %v2487
      %v3053 = vpop.xlane.xlu0 %3052
      %3054 = vmax.xlane.f32.xlu0 %v2490
      %v3055 = vpop.xlane.xlu0 %3054
      %3056 = vmax.xlane.f32.xlu0 %v2492
      %v3057 = vpop.xlane.xlu0 %3056
      %3058 = vmax.xlane.f32.xlu0 %v2600
      %v3059 = vpop.xlane.xlu0 %3058
      %3060 = vmax.xlane.f32.xlu0 %v2602
      %v3061 = vpop.xlane.xlu0 %3060
      %3062 = vmax.xlane.f32.xlu0 %v2605
      %v3063 = vpop.xlane.xlu0 %3062
      %3064 = vmax.xlane.f32.xlu0 %v2607
      %v3065 = vpop.xlane.xlu0 %3064
      %3066 = vmax.xlane.f32.xlu0 %v2610
      %v3067 = vpop.xlane.xlu0 %3066
      %3068 = vmax.xlane.f32.xlu0 %v2612
      %v3069 = vpop.xlane.xlu0 %3068
      %3070 = vmax.xlane.f32.xlu0 %v2615
      %v3071 = vpop.xlane.xlu0 %3070
      %3072 = vmax.xlane.f32.xlu0 %v2617
      %v3073 = vpop.xlane.xlu0 %3072
      %3074 = vmax.xlane.f32.xlu0 %v2725
      %v3075 = vpop.xlane.xlu0 %3074
      %3076 = vmax.xlane.f32.xlu0 %v2727
      %v3077 = vpop.xlane.xlu0 %3076
      %3078 = vmax.xlane.f32.xlu0 %v2730
      %v3079 = vpop.xlane.xlu0 %3078
      %3080 = vmax.xlane.f32.xlu0 %v2732
      %v3081 = vpop.xlane.xlu0 %3080
      %3082 = vmax.xlane.f32.xlu0 %v2735
      %v3083 = vpop.xlane.xlu0 %3082
      %3084 = vmax.xlane.f32.xlu0 %v2737
      %v3085 = vpop.xlane.xlu0 %3084
      %3086 = vmax.xlane.f32.xlu0 %v2740
      %v3087 = vpop.xlane.xlu0 %3086
      %3088 = vmax.xlane.f32.xlu0 %v2742
      %v3089 = vpop.xlane.xlu0 %3088
      %3090 = vmax.xlane.f32.xlu0 %v2850
      %v3091 = vpop.xlane.xlu0 %3090
      %3092 = vmax.xlane.f32.xlu0 %v2852
      %v3093 = vpop.xlane.xlu0 %3092
      %3094 = vmax.xlane.f32.xlu0 %v2855
      %v3095 = vpop.xlane.xlu0 %3094
      %3096 = vmax.xlane.f32.xlu0 %v2857
      %v3097 = vpop.xlane.xlu0 %3096
      %3098 = vmax.xlane.f32.xlu0 %v2860
      %v3099 = vpop.xlane.xlu0 %3098
      %3100 = vmax.xlane.f32.xlu0 %v2862
      %v3101 = vpop.xlane.xlu0 %3100
      %3102 = vmax.xlane.f32.xlu0 %v2865
      %v3103 = vpop.xlane.xlu0 %3102
      %3104 = vmax.xlane.f32.xlu0 %v2867
      %v3105 = vpop.xlane.xlu0 %3104
      %3106 = vmax.xlane.f32.xlu0 %v2975
      %v3107 = vpop.xlane.xlu0 %3106
      %3108 = vmax.xlane.f32.xlu0 %v2977
      %v3109 = vpop.xlane.xlu0 %3108
      %3110 = vmax.xlane.f32.xlu0 %v2980
      %v3111 = vpop.xlane.xlu0 %3110
      %3112 = vmax.xlane.f32.xlu0 %v2982
      %v3113 = vpop.xlane.xlu0 %3112
      %3114 = vmax.xlane.f32.xlu0 %v2985
      %v3115 = vpop.xlane.xlu0 %3114
      %3116 = vmax.xlane.f32.xlu0 %v2987
      %v3117 = vpop.xlane.xlu0 %3116
      %3118 = vmax.xlane.f32.xlu0 %v2990
      %v3119 = vpop.xlane.xlu0 %3118
      %3120 = vmax.xlane.f32.xlu0 %v2992
      %v3121 = vpop.xlane.xlu0 %3120
      %v3122 = vsub.f32 %v2100, %v2995
      %v3123 = vsub.f32 %v2102, %v2997
      %v3124 = vsub.f32 %v2105, %v2999
      %v3125 = vsub.f32 %v2107, %v3001
      %v3126 = vsub.f32 %v2110, %v3003
      %v3127 = vsub.f32 %v2112, %v3005
      %v3128 = vsub.f32 %v2115, %v3007
      %v3129 = vsub.f32 %v2117, %v3009
      %v3130 = vsub.f32 %v2225, %v3011
      %v3131 = vsub.f32 %v2227, %v3013
      %v3132 = vsub.f32 %v2230, %v3015
      %v3133 = vsub.f32 %v2232, %v3017
      %v3134 = vsub.f32 %v2235, %v3019
      %v3135 = vsub.f32 %v2237, %v3021
      %v3136 = vsub.f32 %v2240, %v3023
      %v3137 = vsub.f32 %v2242, %v3025
      %v3138 = vsub.f32 %v2350, %v3027
      %v3139 = vsub.f32 %v2352, %v3029
      %v3140 = vsub.f32 %v2355, %v3031
      %v3141 = vsub.f32 %v2357, %v3033
      %v3142 = vsub.f32 %v2360, %v3035
      %v3143 = vsub.f32 %v2362, %v3037
      %v3144 = vsub.f32 %v2365, %v3039
      %v3145 = vsub.f32 %v2367, %v3041
      %v3146 = vsub.f32 %v2475, %v3043
      %v3147 = vsub.f32 %v2477, %v3045
      %v3148 = vsub.f32 %v2480, %v3047
      %v3149 = vsub.f32 %v2482, %v3049
      %v3150 = vsub.f32 %v2485, %v3051
      %v3151 = vsub.f32 %v2487, %v3053
      %v3152 = vsub.f32 %v2490, %v3055
      %v3153 = vsub.f32 %v2492, %v3057
      %v3154 = vsub.f32 %v2600, %v3059
      %v3155 = vsub.f32 %v2602, %v3061
      %v3156 = vsub.f32 %v2605, %v3063
      %v3157 = vsub.f32 %v2607, %v3065
      %v3158 = vsub.f32 %v2610, %v3067
      %v3159 = vsub.f32 %v2612, %v3069
      %v3160 = vsub.f32 %v2615, %v3071
      %v3161 = vsub.f32 %v2617, %v3073
      %v3162 = vsub.f32 %v2725, %v3075
      %v3163 = vsub.f32 %v2727, %v3077
      %v3164 = vsub.f32 %v2730, %v3079
      %v3165 = vsub.f32 %v2732, %v3081
      %v3166 = vsub.f32 %v2735, %v3083
      %v3167 = vsub.f32 %v2737, %v3085
      %v3168 = vsub.f32 %v2740, %v3087
      %v3169 = vsub.f32 %v2742, %v3089
      %v3170 = vsub.f32 %v2850, %v3091
      %v3171 = vsub.f32 %v2852, %v3093
      %v3172 = vsub.f32 %v2855, %v3095
      %v3173 = vsub.f32 %v2857, %v3097
      %v3174 = vsub.f32 %v2860, %v3099
      %v3175 = vsub.f32 %v2862, %v3101
      %v3176 = vsub.f32 %v2865, %v3103
      %v3177 = vsub.f32 %v2867, %v3105
      %v3178 = vsub.f32 %v2975, %v3107
      %v3179 = vsub.f32 %v2977, %v3109
      %v3180 = vsub.f32 %v2980, %v3111
      %v3181 = vsub.f32 %v2982, %v3113
      %v3182 = vsub.f32 %v2985, %v3115
      %v3183 = vsub.f32 %v2987, %v3117
      %v3184 = vsub.f32 %v2990, %v3119
      %v3185 = vsub.f32 %v2992, %v3121
      %v3186 = vmul.f32 %v3122, 1.442695
      %v3187 = vpow.pop %v3186
      %v3188 = vmul.f32 %v3123, 1.442695
      %v3189 = vpow.pop %v3188
      %v3190 = vmul.f32 %v3124, 1.442695
      %v3191 = vpow.pop %v3190
      %v3192 = vmul.f32 %v3125, 1.442695
      %v3193 = vpow.pop %v3192
      %v3194 = vmul.f32 %v3126, 1.442695
      %v3195 = vpow.pop %v3194
      %v3196 = vmul.f32 %v3127, 1.442695
      %v3197 = vpow.pop %v3196
      %v3198 = vmul.f32 %v3128, 1.442695
      %v3199 = vpow.pop %v3198
      %v3200 = vmul.f32 %v3129, 1.442695
      %v3201 = vpow.pop %v3200
      %v3202 = vmul.f32 %v3130, 1.442695
      %v3203 = vpow.pop %v3202
      %v3204 = vmul.f32 %v3131, 1.442695
      %v3205 = vpow.pop %v3204
      %v3206 = vmul.f32 %v3132, 1.442695
      %v3207 = vpow.pop %v3206
      %v3208 = vmul.f32 %v3133, 1.442695
      %v3209 = vpow.pop %v3208
      %v3210 = vmul.f32 %v3134, 1.442695
      %v3211 = vpow.pop %v3210
      %v3212 = vmul.f32 %v3135, 1.442695
      %v3213 = vpow.pop %v3212
      %v3214 = vmul.f32 %v3136, 1.442695
      %v3215 = vpow.pop %v3214
      %v3216 = vmul.f32 %v3137, 1.442695
      %v3217 = vpow.pop %v3216
      %v3218 = vmul.f32 %v3138, 1.442695
      %v3219 = vpow.pop %v3218
      %v3220 = vmul.f32 %v3139, 1.442695
      %v3221 = vpow.pop %v3220
      %v3222 = vmul.f32 %v3140, 1.442695
      %v3223 = vpow.pop %v3222
      %v3224 = vmul.f32 %v3141, 1.442695
      %v3225 = vpow.pop %v3224
      %v3226 = vmul.f32 %v3142, 1.442695
      %v3227 = vpow.pop %v3226
      %v3228 = vmul.f32 %v3143, 1.442695
      %v3229 = vpow.pop %v3228
      %v3230 = vmul.f32 %v3144, 1.442695
      %v3231 = vpow.pop %v3230
      %v3232 = vmul.f32 %v3145, 1.442695
      %v3233 = vpow.pop %v3232
      %v3234 = vmul.f32 %v3146, 1.442695
      %v3235 = vpow.pop %v3234
      %v3236 = vmul.f32 %v3147, 1.442695
      %v3237 = vpow.pop %v3236
      %v3238 = vmul.f32 %v3148, 1.442695
      %v3239 = vpow.pop %v3238
      %v3240 = vmul.f32 %v3149, 1.442695
      %v3241 = vpow.pop %v3240
      %v3242 = vmul.f32 %v3150, 1.442695
      %v3243 = vpow.pop %v3242
      %v3244 = vmul.f32 %v3151, 1.442695
      %v3245 = vpow.pop %v3244
      %v3246 = vmul.f32 %v3152, 1.442695
      %v3247 = vpow.pop %v3246
      %v3248 = vmul.f32 %v3153, 1.442695
      %v3249 = vpow.pop %v3248
      %v3250 = vmul.f32 %v3154, 1.442695
      %v3251 = vpow.pop %v3250
      %v3252 = vmul.f32 %v3155, 1.442695
      %v3253 = vpow.pop %v3252
      %v3254 = vmul.f32 %v3156, 1.442695
      %v3255 = vpow.pop %v3254
      %v3256 = vmul.f32 %v3157, 1.442695
      %v3257 = vpow.pop %v3256
      %v3258 = vmul.f32 %v3158, 1.442695
      %v3259 = vpow.pop %v3258
      %v3260 = vmul.f32 %v3159, 1.442695
      %v3261 = vpow.pop %v3260
      %v3262 = vmul.f32 %v3160, 1.442695
      %v3263 = vpow.pop %v3262
      %v3264 = vmul.f32 %v3161, 1.442695
      %v3265 = vpow.pop %v3264
      %v3266 = vmul.f32 %v3162, 1.442695
      %v3267 = vpow.pop %v3266
      %v3268 = vmul.f32 %v3163, 1.442695
      %v3269 = vpow.pop %v3268
      %v3270 = vmul.f32 %v3164, 1.442695
      %v3271 = vpow.pop %v3270
      %v3272 = vmul.f32 %v3165, 1.442695
      %v3273 = vpow.pop %v3272
      %v3274 = vmul.f32 %v3166, 1.442695
      %v3275 = vpow.pop %v3274
      %v3276 = vmul.f32 %v3167, 1.442695
      %v3277 = vpow.pop %v3276
      %v3278 = vmul.f32 %v3168, 1.442695
      %v3279 = vpow.pop %v3278
      %v3280 = vmul.f32 %v3169, 1.442695
      %v3281 = vpow.pop %v3280
      %v3282 = vmul.f32 %v3170, 1.442695
      %v3283 = vpow.pop %v3282
      %v3284 = vmul.f32 %v3171, 1.442695
      %v3285 = vpow.pop %v3284
      %v3286 = vmul.f32 %v3172, 1.442695
      %v3287 = vpow.pop %v3286
      %v3288 = vmul.f32 %v3173, 1.442695
      %v3289 = vpow.pop %v3288
      %v3290 = vmul.f32 %v3174, 1.442695
      %v3291 = vpow.pop %v3290
      %v3292 = vmul.f32 %v3175, 1.442695
      %v3293 = vpow.pop %v3292
      %v3294 = vmul.f32 %v3176, 1.442695
      %v3295 = vpow.pop %v3294
      %v3296 = vmul.f32 %v3177, 1.442695
      %v3297 = vpow.pop %v3296
      %v3298 = vmul.f32 %v3178, 1.442695
      %v3299 = vpow.pop %v3298
      %v3300 = vmul.f32 %v3179, 1.442695
      %v3301 = vpow.pop %v3300
      %v3302 = vmul.f32 %v3180, 1.442695
      %v3303 = vpow.pop %v3302
      %v3304 = vmul.f32 %v3181, 1.442695
      %v3305 = vpow.pop %v3304
      %v3306 = vmul.f32 %v3182, 1.442695
      %v3307 = vpow.pop %v3306
      %v3308 = vmul.f32 %v3183, 1.442695
      %v3309 = vpow.pop %v3308
      %v3310 = vmul.f32 %v3184, 1.442695
      %v3311 = vpow.pop %v3310
      %v3312 = vmul.f32 %v3185, 1.442695
      %v3313 = vpow.pop %v3312
      %3314 = vadd.xlane.f32.xlu0 %v3187
      %v3315 = vpop.xlane.xlu0 %3314
      %3316 = vadd.xlane.f32.xlu0 %v3189
      %v3317 = vpop.xlane.xlu0 %3316
      %3318 = vadd.xlane.f32.xlu0 %v3191
      %v3319 = vpop.xlane.xlu0 %3318
      %3320 = vadd.xlane.f32.xlu0 %v3193
      %v3321 = vpop.xlane.xlu0 %3320
      %3322 = vadd.xlane.f32.xlu0 %v3195
      %v3323 = vpop.xlane.xlu0 %3322
      %3324 = vadd.xlane.f32.xlu0 %v3197
      %v3325 = vpop.xlane.xlu0 %3324
      %3326 = vadd.xlane.f32.xlu0 %v3199
      %v3327 = vpop.xlane.xlu0 %3326
      %3328 = vadd.xlane.f32.xlu0 %v3201
      %v3329 = vpop.xlane.xlu0 %3328
      %3330 = vadd.xlane.f32.xlu0 %v3203
      %v3331 = vpop.xlane.xlu0 %3330
      %3332 = vadd.xlane.f32.xlu0 %v3205
      %v3333 = vpop.xlane.xlu0 %3332
      %3334 = vadd.xlane.f32.xlu0 %v3207
      %v3335 = vpop.xlane.xlu0 %3334
      %3336 = vadd.xlane.f32.xlu0 %v3209
      %v3337 = vpop.xlane.xlu0 %3336
      %3338 = vadd.xlane.f32.xlu0 %v3211
      %v3339 = vpop.xlane.xlu0 %3338
      %3340 = vadd.xlane.f32.xlu0 %v3213
      %v3341 = vpop.xlane.xlu0 %3340
      %3342 = vadd.xlane.f32.xlu0 %v3215
      %v3343 = vpop.xlane.xlu0 %3342
      %3344 = vadd.xlane.f32.xlu0 %v3217
      %v3345 = vpop.xlane.xlu0 %3344
      %3346 = vadd.xlane.f32.xlu0 %v3219
      %v3347 = vpop.xlane.xlu0 %3346
      %3348 = vadd.xlane.f32.xlu0 %v3221
      %v3349 = vpop.xlane.xlu0 %3348
      %3350 = vadd.xlane.f32.xlu0 %v3223
      %v3351 = vpop.xlane.xlu0 %3350
      %3352 = vadd.xlane.f32.xlu0 %v3225
      %v3353 = vpop.xlane.xlu0 %3352
      %3354 = vadd.xlane.f32.xlu0 %v3227
      %v3355 = vpop.xlane.xlu0 %3354
      %3356 = vadd.xlane.f32.xlu0 %v3229
      %v3357 = vpop.xlane.xlu0 %3356
      %3358 = vadd.xlane.f32.xlu0 %v3231
      %v3359 = vpop.xlane.xlu0 %3358
      %3360 = vadd.xlane.f32.xlu0 %v3233
      %v3361 = vpop.xlane.xlu0 %3360
      %3362 = vadd.xlane.f32.xlu0 %v3235
      %v3363 = vpop.xlane.xlu0 %3362
      %3364 = vadd.xlane.f32.xlu0 %v3237
      %v3365 = vpop.xlane.xlu0 %3364
      %3366 = vadd.xlane.f32.xlu0 %v3239
      %v3367 = vpop.xlane.xlu0 %3366
      %3368 = vadd.xlane.f32.xlu0 %v3241
      %v3369 = vpop.xlane.xlu0 %3368
      %3370 = vadd.xlane.f32.xlu0 %v3243
      %v3371 = vpop.xlane.xlu0 %3370
      %3372 = vadd.xlane.f32.xlu0 %v3245
      %v3373 = vpop.xlane.xlu0 %3372
      %3374 = vadd.xlane.f32.xlu0 %v3247
      %v3375 = vpop.xlane.xlu0 %3374
      %3376 = vadd.xlane.f32.xlu0 %v3249
      %v3377 = vpop.xlane.xlu0 %3376
      %3378 = vadd.xlane.f32.xlu0 %v3251
      %v3379 = vpop.xlane.xlu0 %3378
      %3380 = vadd.xlane.f32.xlu0 %v3253
      %v3381 = vpop.xlane.xlu0 %3380
      %3382 = vadd.xlane.f32.xlu0 %v3255
      %v3383 = vpop.xlane.xlu0 %3382
      %3384 = vadd.xlane.f32.xlu0 %v3257
      %v3385 = vpop.xlane.xlu0 %3384
      %3386 = vadd.xlane.f32.xlu0 %v3259
      %v3387 = vpop.xlane.xlu0 %3386
      %3388 = vadd.xlane.f32.xlu0 %v3261
      %v3389 = vpop.xlane.xlu0 %3388
      %3390 = vadd.xlane.f32.xlu0 %v3263
      %v3391 = vpop.xlane.xlu0 %3390
      %3392 = vadd.xlane.f32.xlu0 %v3265
      %v3393 = vpop.xlane.xlu0 %3392
      %3394 = vadd.xlane.f32.xlu0 %v3267
      %v3395 = vpop.xlane.xlu0 %3394
      %3396 = vadd.xlane.f32.xlu0 %v3269
      %v3397 = vpop.xlane.xlu0 %3396
      %3398 = vadd.xlane.f32.xlu0 %v3271
      %v3399 = vpop.xlane.xlu0 %3398
      %3400 = vadd.xlane.f32.xlu0 %v3273
      %v3401 = vpop.xlane.xlu0 %3400
      %3402 = vadd.xlane.f32.xlu0 %v3275
      %v3403 = vpop.xlane.xlu0 %3402
      %3404 = vadd.xlane.f32.xlu0 %v3277
      %v3405 = vpop.xlane.xlu0 %3404
      %3406 = vadd.xlane.f32.xlu0 %v3279
      %v3407 = vpop.xlane.xlu0 %3406
      %3408 = vadd.xlane.f32.xlu0 %v3281
      %v3409 = vpop.xlane.xlu0 %3408
      %3410 = vadd.xlane.f32.xlu0 %v3283
      %v3411 = vpop.xlane.xlu0 %3410
      %3412 = vadd.xlane.f32.xlu0 %v3285
      %v3413 = vpop.xlane.xlu0 %3412
      %3414 = vadd.xlane.f32.xlu0 %v3287
      %v3415 = vpop.xlane.xlu0 %3414
      %3416 = vadd.xlane.f32.xlu0 %v3289
      %v3417 = vpop.xlane.xlu0 %3416
      %3418 = vadd.xlane.f32.xlu0 %v3291
      %v3419 = vpop.xlane.xlu0 %3418
      %3420 = vadd.xlane.f32.xlu0 %v3293
      %v3421 = vpop.xlane.xlu0 %3420
      %3422 = vadd.xlane.f32.xlu0 %v3295
      %v3423 = vpop.xlane.xlu0 %3422
      %3424 = vadd.xlane.f32.xlu0 %v3297
      %v3425 = vpop.xlane.xlu0 %3424
      %3426 = vadd.xlane.f32.xlu0 %v3299
      %v3427 = vpop.xlane.xlu0 %3426
      %3428 = vadd.xlane.f32.xlu0 %v3301
      %v3429 = vpop.xlane.xlu0 %3428
      %3430 = vadd.xlane.f32.xlu0 %v3303
      %v3431 = vpop.xlane.xlu0 %3430
      %3432 = vadd.xlane.f32.xlu0 %v3305
      %v3433 = vpop.xlane.xlu0 %3432
      %3434 = vadd.xlane.f32.xlu0 %v3307
      %v3435 = vpop.xlane.xlu0 %3434
      %3436 = vadd.xlane.f32.xlu0 %v3309
      %v3437 = vpop.xlane.xlu0 %3436
      %3438 = vadd.xlane.f32.xlu0 %v3311
      %v3439 = vpop.xlane.xlu0 %3438
      %3440 = vadd.xlane.f32.xlu0 %v3313
      %v3441 = vpop.xlane.xlu0 %3440
      %v3442 = vrcp.pop %v3315
      %v3443 = vrcp.pop %v3317
      %v3444 = vrcp.pop %v3319
      %v3445 = vrcp.pop %v3321
      %v3446 = vrcp.pop %v3323
      %v3447 = vrcp.pop %v3325
      %v3448 = vrcp.pop %v3327
      %v3449 = vrcp.pop %v3329
      %v3450 = vrcp.pop %v3331
      %v3451 = vrcp.pop %v3333
      %v3452 = vrcp.pop %v3335
      %v3453 = vrcp.pop %v3337
      %v3454 = vrcp.pop %v3339
      %v3455 = vrcp.pop %v3341
      %v3456 = vrcp.pop %v3343
      %v3457 = vrcp.pop %v3345
      %v3458 = vrcp.pop %v3347
      %v3459 = vrcp.pop %v3349
      %v3460 = vrcp.pop %v3351
      %v3461 = vrcp.pop %v3353
      %v3462 = vrcp.pop %v3355
      %v3463 = vrcp.pop %v3357
      %v3464 = vrcp.pop %v3359
      %v3465 = vrcp.pop %v3361
      %v3466 = vrcp.pop %v3363
      %v3467 = vrcp.pop %v3365
      %v3468 = vrcp.pop %v3367
      %v3469 = vrcp.pop %v3369
      %v3470 = vrcp.pop %v3371
      %v3471 = vrcp.pop %v3373
      %v3472 = vrcp.pop %v3375
      %v3473 = vrcp.pop %v3377
      %v3474 = vrcp.pop %v3379
      %v3475 = vrcp.pop %v3381
      %v3476 = vrcp.pop %v3383
      %v3477 = vrcp.pop %v3385
      %v3478 = vrcp.pop %v3387
      %v3479 = vrcp.pop %v3389
      %v3480 = vrcp.pop %v3391
      %v3481 = vrcp.pop %v3393
      %v3482 = vrcp.pop %v3395
      %v3483 = vrcp.pop %v3397
      %v3484 = vrcp.pop %v3399
      %v3485 = vrcp.pop %v3401
      %v3486 = vrcp.pop %v3403
      %v3487 = vrcp.pop %v3405
      %v3488 = vrcp.pop %v3407
      %v3489 = vrcp.pop %v3409
      %v3490 = vrcp.pop %v3411
      %v3491 = vrcp.pop %v3413
      %v3492 = vrcp.pop %v3415
      %v3493 = vrcp.pop %v3417
      %v3494 = vrcp.pop %v3419
      %v3495 = vrcp.pop %v3421
      %v3496 = vrcp.pop %v3423
      %v3497 = vrcp.pop %v3425
      %v3498 = vrcp.pop %v3427
      %v3499 = vrcp.pop %v3429
      %v3500 = vrcp.pop %v3431
      %v3501 = vrcp.pop %v3433
      %v3502 = vrcp.pop %v3435
      %v3503 = vrcp.pop %v3437
      %v3504 = vrcp.pop %v3439
      %v3505 = vrcp.pop %v3441
      %v3506 = vmul.f32 %v3187, %v3442
      %v3507 = vmul.f32 %v3189, %v3443
      %v3508 = vmul.f32 %v3191, %v3444
      %v3509 = vmul.f32 %v3193, %v3445
      %v3510 = vmul.f32 %v3195, %v3446
      %v3511 = vmul.f32 %v3197, %v3447
      %v3512 = vmul.f32 %v3199, %v3448
      %v3513 = vmul.f32 %v3201, %v3449
      %v3514 = vmul.f32 %v3203, %v3450
      %v3515 = vmul.f32 %v3205, %v3451
      %v3516 = vmul.f32 %v3207, %v3452
      %v3517 = vmul.f32 %v3209, %v3453
      %v3518 = vmul.f32 %v3211, %v3454
      %v3519 = vmul.f32 %v3213, %v3455
      %v3520 = vmul.f32 %v3215, %v3456
      %v3521 = vmul.f32 %v3217, %v3457
      %v3522 = vmul.f32 %v3219, %v3458
      %v3523 = vmul.f32 %v3221, %v3459
      %v3524 = vmul.f32 %v3223, %v3460
      %v3525 = vmul.f32 %v3225, %v3461
      %v3526 = vmul.f32 %v3227, %v3462
      %v3527 = vmul.f32 %v3229, %v3463
      %v3528 = vmul.f32 %v3231, %v3464
      %v3529 = vmul.f32 %v3233, %v3465
      %v3530 = vmul.f32 %v3235, %v3466
      %v3531 = vmul.f32 %v3237, %v3467
      %v3532 = vmul.f32 %v3239, %v3468
      %v3533 = vmul.f32 %v3241, %v3469
      %v3534 = vmul.f32 %v3243, %v3470
      %v3535 = vmul.f32 %v3245, %v3471
      %v3536 = vmul.f32 %v3247, %v3472
      %v3537 = vmul.f32 %v3249, %v3473
      %v3538 = vmul.f32 %v3251, %v3474
      %v3539 = vmul.f32 %v3253, %v3475
      %v3540 = vmul.f32 %v3255, %v3476
      %v3541 = vmul.f32 %v3257, %v3477
      %v3542 = vmul.f32 %v3259, %v3478
      %v3543 = vmul.f32 %v3261, %v3479
      %v3544 = vmul.f32 %v3263, %v3480
      %v3545 = vmul.f32 %v3265, %v3481
      %v3546 = vmul.f32 %v3267, %v3482
      %v3547 = vmul.f32 %v3269, %v3483
      %v3548 = vmul.f32 %v3271, %v3484
      %v3549 = vmul.f32 %v3273, %v3485
      %v3550 = vmul.f32 %v3275, %v3486
      %v3551 = vmul.f32 %v3277, %v3487
      %v3552 = vmul.f32 %v3279, %v3488
      %v3553 = vmul.f32 %v3281, %v3489
      %v3554 = vmul.f32 %v3283, %v3490
      %v3555 = vmul.f32 %v3285, %v3491
      %v3556 = vmul.f32 %v3287, %v3492
      %v3557 = vmul.f32 %v3289, %v3493
      %v3558 = vmul.f32 %v3291, %v3494
      %v3559 = vmul.f32 %v3293, %v3495
      %v3560 = vmul.f32 %v3295, %v3496
      %v3561 = vmul.f32 %v3297, %v3497
      %v3562 = vmul.f32 %v3299, %v3498
      %v3563 = vmul.f32 %v3301, %v3499
      %v3564 = vmul.f32 %v3303, %v3500
      %v3565 = vmul.f32 %v3305, %v3501
      %v3566 = vmul.f32 %v3307, %v3502
      %v3567 = vmul.f32 %v3309, %v3503
      %v3568 = vmul.f32 %v3311, %v3504
      %v3569 = vmul.f32 %v3313, %v3505
      %v3570 = vpack.c.bf16 %v3506, %v3506
      %v3571 = vpack.c.bf16 %v3507, %v3507
      %v3572 = vpack.c.bf16 %v3508, %v3508
      %v3573 = vpack.c.bf16 %v3509, %v3509
      %v3574 = vpack.c.bf16 %v3510, %v3510
      %v3575 = vpack.c.bf16 %v3511, %v3511
      %v3576 = vpack.c.bf16 %v3512, %v3512
      %v3577 = vpack.c.bf16 %v3513, %v3513
      %v3578 = vpack.c.bf16 %v3514, %v3514
      %v3579 = vpack.c.bf16 %v3515, %v3515
      %v3580 = vpack.c.bf16 %v3516, %v3516
      %v3581 = vpack.c.bf16 %v3517, %v3517
      %v3582 = vpack.c.bf16 %v3518, %v3518
      %v3583 = vpack.c.bf16 %v3519, %v3519
      %v3584 = vpack.c.bf16 %v3520, %v3520
      %v3585 = vpack.c.bf16 %v3521, %v3521
      %v3586 = vpack.c.bf16 %v3522, %v3522
      %v3587 = vpack.c.bf16 %v3523, %v3523
      %v3588 = vpack.c.bf16 %v3524, %v3524
      %v3589 = vpack.c.bf16 %v3525, %v3525
      %v3590 = vpack.c.bf16 %v3526, %v3526
      %v3591 = vpack.c.bf16 %v3527, %v3527
      %v3592 = vpack.c.bf16 %v3528, %v3528
      %v3593 = vpack.c.bf16 %v3529, %v3529
      %v3594 = vpack.c.bf16 %v3530, %v3530
      %v3595 = vpack.c.bf16 %v3531, %v3531
      %v3596 = vpack.c.bf16 %v3532, %v3532
      %v3597 = vpack.c.bf16 %v3533, %v3533
      %v3598 = vpack.c.bf16 %v3534, %v3534
      %v3599 = vpack.c.bf16 %v3535, %v3535
      %v3600 = vpack.c.bf16 %v3536, %v3536
      %v3601 = vpack.c.bf16 %v3537, %v3537
      %v3602 = vpack.c.bf16 %v3538, %v3538
      %v3603 = vpack.c.bf16 %v3539, %v3539
      %v3604 = vpack.c.bf16 %v3540, %v3540
      %v3605 = vpack.c.bf16 %v3541, %v3541
      %v3606 = vpack.c.bf16 %v3542, %v3542
      %v3607 = vpack.c.bf16 %v3543, %v3543
      %v3608 = vpack.c.bf16 %v3544, %v3544
      %v3609 = vpack.c.bf16 %v3545, %v3545
      %v3610 = vpack.c.bf16 %v3546, %v3546
      %v3611 = vpack.c.bf16 %v3547, %v3547
      %v3612 = vpack.c.bf16 %v3548, %v3548
      %v3613 = vpack.c.bf16 %v3549, %v3549
      %v3614 = vpack.c.bf16 %v3550, %v3550
      %v3615 = vpack.c.bf16 %v3551, %v3551
      %v3616 = vpack.c.bf16 %v3552, %v3552
      %v3617 = vpack.c.bf16 %v3553, %v3553
      %v3618 = vpack.c.bf16 %v3554, %v3554
      %v3619 = vpack.c.bf16 %v3555, %v3555
      %v3620 = vpack.c.bf16 %v3556, %v3556
      %v3621 = vpack.c.bf16 %v3557, %v3557
      %v3622 = vpack.c.bf16 %v3558, %v3558
      %v3623 = vpack.c.bf16 %v3559, %v3559
      %v3624 = vpack.c.bf16 %v3560, %v3560
      %v3625 = vpack.c.bf16 %v3561, %v3561
      %v3626 = vpack.c.bf16 %v3562, %v3562
      %v3627 = vpack.c.bf16 %v3563, %v3563
      %v3628 = vpack.c.bf16 %v3564, %v3564
      %v3629 = vpack.c.bf16 %v3565, %v3565
      %v3630 = vpack.c.bf16 %v3566, %v3566
      %v3631 = vpack.c.bf16 %v3567, %v3567
      %v3632 = vpack.c.bf16 %v3568, %v3568
      %v3633 = vpack.c.bf16 %v3569, %v3569
      %v3642 = vunpack.c.l.b16 %v3570
      %v3643 = vunpack.c.l.b16 %v3571
      %v3644 = vunpack.c.l.b16 %v3572
      %v3645 = vunpack.c.l.b16 %v3573
      %v3646 = vunpack.c.l.b16 %v3574
      %v3647 = vunpack.c.l.b16 %v3575
      %v3648 = vunpack.c.l.b16 %v3576
      %v3649 = vunpack.c.l.b16 %v3577
      %v3650 = vpack.c.b16 %v3643, %v3642
      %v3651 = vpack.c.b16 %v3645, %v3644
      %v3652 = vpack.c.b16 %v3647, %v3646
      %v3653 = vpack.c.b16 %v3649, %v3648
      %3658 = vrot.lane.b32.xlu0 %v2045, 64
      %v3659 = vpop.permute.xlu0 %3658
      %3660 = vrot.lane.b32.xlu0 %v2046, 64
      %v3661 = vpop.permute.xlu0 %3660
      %3662 = vrot.lane.b32.xlu0 %v2047, 64
      %v3663 = vpop.permute.xlu0 %3662
      %3664 = vrot.lane.b32.xlu0 %v2048, 64
      %v3665 = vpop.permute.xlu0 %3664
      %3666 = vrot.lane.b32.xlu0 %v2049, 64
      %v3667 = vpop.permute.xlu0 %3666
      %3668 = vrot.lane.b32.xlu0 %v2050, 64
      %v3669 = vpop.permute.xlu0 %3668
      %3670 = vrot.lane.b32.xlu0 %v2051, 64
      %v3671 = vpop.permute.xlu0 %3670
      %3672 = vrot.lane.b32.xlu0 %v2052, 64
      %v3673 = vpop.permute.xlu0 %3672
      %3682 = vmatpush.bf16.msra.mxu0 %v3673
      %3683 = vmatpush.bf16.msra.mxu0 %v3671
      %3684 = vmatpush.bf16.msra.mxu0 %v3669
      %3685 = vmatpush.bf16.msra.mxu0 %v3667
      %3686 = vmatpush.bf16.msra.mxu0 %v3665
      %3687 = vmatpush.bf16.msra.mxu0 %v3663
      %3688 = vmatpush.bf16.msra.mxu0 %v3661
      %3689 = vmatpush.bf16.msra.mxu0 %v3659
      %3690 = vmatmul.bf16.gmra.mxu0 %v3650
      %v3691 = vpop.f32.mrf.mxu0
      %v3692 = vadd.f32 0.0, %v3691
      %v3693 = vpop.f32.mrf.mxu0
      %v3694 = vadd.f32 0.0, %v3693
      %3695 = vmatmul.bf16.gmra.mxu0 %v3651
      %v3696 = vpop.f32.mrf.mxu0
      %v3697 = vadd.f32 0.0, %v3696
      %v3698 = vpop.f32.mrf.mxu0
      %v3699 = vadd.f32 0.0, %v3698
      %3700 = vmatmul.bf16.gmra.mxu0 %v3652
      %v3701 = vpop.f32.mrf.mxu0
      %v3702 = vadd.f32 0.0, %v3701
      %v3703 = vpop.f32.mrf.mxu0
      %v3704 = vadd.f32 0.0, %v3703
      %3705 = vmatmul.bf16.gmra.mxu0 %v3653
      %v3706 = vpop.f32.mrf.mxu0
      %v3707 = vadd.f32 0.0, %v3706
      %v3708 = vpop.f32.mrf.mxu0
      %v3709 = vadd.f32 0.0, %v3708
      %3710 = vdwg.mxu0
      %v3719 = vunpack.c.l.b16 %v3578
      %v3720 = vunpack.c.l.b16 %v3579
      %v3721 = vunpack.c.l.b16 %v3580
      %v3722 = vunpack.c.l.b16 %v3581
      %v3723 = vunpack.c.l.b16 %v3582
      %v3724 = vunpack.c.l.b16 %v3583
      %v3725 = vunpack.c.l.b16 %v3584
      %v3726 = vunpack.c.l.b16 %v3585
      %v3727 = vpack.c.b16 %v3720, %v3719
      %v3728 = vpack.c.b16 %v3722, %v3721
      %v3729 = vpack.c.b16 %v3724, %v3723
      %v3730 = vpack.c.b16 %v3726, %v3725
      %3735 = vrot.lane.b32.xlu0 %v2171, 64
      %v3736 = vpop.permute.xlu0 %3735
      %3737 = vrot.lane.b32.xlu0 %v2172, 64
      %v3738 = vpop.permute.xlu0 %3737
      %3739 = vrot.lane.b32.xlu0 %v2173, 64
      %v3740 = vpop.permute.xlu0 %3739
      %3741 = vrot.lane.b32.xlu0 %v2174, 64
      %v3742 = vpop.permute.xlu0 %3741
      %3743 = vrot.lane.b32.xlu0 %v2175, 64
      %v3744 = vpop.permute.xlu0 %3743
      %3745 = vrot.lane.b32.xlu0 %v2176, 64
      %v3746 = vpop.permute.xlu0 %3745
      %3747 = vrot.lane.b32.xlu0 %v2177, 64
      %v3748 = vpop.permute.xlu0 %3747
      %3749 = vrot.lane.b32.xlu0 %v2178, 64
      %v3750 = vpop.permute.xlu0 %3749
      %3759 = vmatpush.bf16.msra.mxu0 %v3750
      %3760 = vmatpush.bf16.msra.mxu0 %v3748
      %3761 = vmatpush.bf16.msra.mxu0 %v3746
      %3762 = vmatpush.bf16.msra.mxu0 %v3744
      %3763 = vmatpush.bf16.msra.mxu0 %v3742
      %3764 = vmatpush.bf16.msra.mxu0 %v3740
      %3765 = vmatpush.bf16.msra.mxu0 %v3738
      %3766 = vmatpush.bf16.msra.mxu0 %v3736
      %3767 = vmatmul.bf16.gmra.mxu0 %v3727
      %v3768 = vpop.f32.mrf.mxu0
      %v3769 = vadd.f32 0.0, %v3768
      %v3770 = vpop.f32.mrf.mxu0
      %v3771 = vadd.f32 0.0, %v3770
      %3772 = vmatmul.bf16.gmra.mxu0 %v3728
      %v3773 = vpop.f32.mrf.mxu0
      %v3774 = vadd.f32 0.0, %v3773
      %v3775 = vpop.f32.mrf.mxu0
      %v3776 = vadd.f32 0.0, %v3775
      %3777 = vmatmul.bf16.gmra.mxu0 %v3729
      %v3778 = vpop.f32.mrf.mxu0
      %v3779 = vadd.f32 0.0, %v3778
      %v3780 = vpop.f32.mrf.mxu0
      %v3781 = vadd.f32 0.0, %v3780
      %3782 = vmatmul.bf16.gmra.mxu0 %v3730
      %v3783 = vpop.f32.mrf.mxu0
      %v3784 = vadd.f32 0.0, %v3783
      %v3785 = vpop.f32.mrf.mxu0
      %v3786 = vadd.f32 0.0, %v3785
      %3787 = vdwg.mxu0
      %v3796 = vunpack.c.l.b16 %v3586
      %v3797 = vunpack.c.l.b16 %v3587
      %v3798 = vunpack.c.l.b16 %v3588
      %v3799 = vunpack.c.l.b16 %v3589
      %v3800 = vunpack.c.l.b16 %v3590
      %v3801 = vunpack.c.l.b16 %v3591
      %v3802 = vunpack.c.l.b16 %v3592
      %v3803 = vunpack.c.l.b16 %v3593
      %v3804 = vpack.c.b16 %v3797, %v3796
      %v3805 = vpack.c.b16 %v3799, %v3798
      %v3806 = vpack.c.b16 %v3801, %v3800
      %v3807 = vpack.c.b16 %v3803, %v3802
      %3812 = vrot.lane.b32.xlu0 %v2296, 64
      %v3813 = vpop.permute.xlu0 %3812
      %3814 = vrot.lane.b32.xlu0 %v2297, 64
      %v3815 = vpop.permute.xlu0 %3814
      %3816 = vrot.lane.b32.xlu0 %v2298, 64
      %v3817 = vpop.permute.xlu0 %3816
      %3818 = vrot.lane.b32.xlu0 %v2299, 64
      %v3819 = vpop.permute.xlu0 %3818
      %3820 = vrot.lane.b32.xlu0 %v2300, 64
      %v3821 = vpop.permute.xlu0 %3820
      %3822 = vrot.lane.b32.xlu0 %v2301, 64
      %v3823 = vpop.permute.xlu0 %3822
      %3824 = vrot.lane.b32.xlu0 %v2302, 64
      %v3825 = vpop.permute.xlu0 %3824
      %3826 = vrot.lane.b32.xlu0 %v2303, 64
      %v3827 = vpop.permute.xlu0 %3826
      %3836 = vmatpush.bf16.msra.mxu0 %v3827
      %3837 = vmatpush.bf16.msra.mxu0 %v3825
      %3838 = vmatpush.bf16.msra.mxu0 %v3823
      %3839 = vmatpush.bf16.msra.mxu0 %v3821
      %3840 = vmatpush.bf16.msra.mxu0 %v3819
      %3841 = vmatpush.bf16.msra.mxu0 %v3817
      %3842 = vmatpush.bf16.msra.mxu0 %v3815
      %3843 = vmatpush.bf16.msra.mxu0 %v3813
      %3844 = vmatmul.bf16.gmra.mxu0 %v3804
      %v3845 = vpop.f32.mrf.mxu0
      %v3846 = vadd.f32 0.0, %v3845
      %v3847 = vpop.f32.mrf.mxu0
      %v3848 = vadd.f32 0.0, %v3847
      %3849 = vmatmul.bf16.gmra.mxu0 %v3805
      %v3850 = vpop.f32.mrf.mxu0
      %v3851 = vadd.f32 0.0, %v3850
      %v3852 = vpop.f32.mrf.mxu0
      %v3853 = vadd.f32 0.0, %v3852
      %3854 = vmatmul.bf16.gmra.mxu0 %v3806
      %v3855 = vpop.f32.mrf.mxu0
      %v3856 = vadd.f32 0.0, %v3855
      %v3857 = vpop.f32.mrf.mxu0
      %v3858 = vadd.f32 0.0, %v3857
      %3859 = vmatmul.bf16.gmra.mxu0 %v3807
      %v3860 = vpop.f32.mrf.mxu0
      %v3861 = vadd.f32 0.0, %v3860
      %v3862 = vpop.f32.mrf.mxu0
      %v3863 = vadd.f32 0.0, %v3862
      %3864 = vdwg.mxu0
      %v3873 = vunpack.c.l.b16 %v3594
      %v3874 = vunpack.c.l.b16 %v3595
      %v3875 = vunpack.c.l.b16 %v3596
      %v3876 = vunpack.c.l.b16 %v3597
      %v3877 = vunpack.c.l.b16 %v3598
      %v3878 = vunpack.c.l.b16 %v3599
      %v3879 = vunpack.c.l.b16 %v3600
      %v3880 = vunpack.c.l.b16 %v3601
      %v3881 = vpack.c.b16 %v3874, %v3873
      %v3882 = vpack.c.b16 %v3876, %v3875
      %v3883 = vpack.c.b16 %v3878, %v3877
      %v3884 = vpack.c.b16 %v3880, %v3879
      %3889 = vrot.lane.b32.xlu0 %v2421, 64
      %v3890 = vpop.permute.xlu0 %3889
      %3891 = vrot.lane.b32.xlu0 %v2422, 64
      %v3892 = vpop.permute.xlu0 %3891
      %3893 = vrot.lane.b32.xlu0 %v2423, 64
      %v3894 = vpop.permute.xlu0 %3893
      %3895 = vrot.lane.b32.xlu0 %v2424, 64
      %v3896 = vpop.permute.xlu0 %3895
      %3897 = vrot.lane.b32.xlu0 %v2425, 64
      %v3898 = vpop.permute.xlu0 %3897
      %3899 = vrot.lane.b32.xlu0 %v2426, 64
      %v3900 = vpop.permute.xlu0 %3899
      %3901 = vrot.lane.b32.xlu0 %v2427, 64
      %v3902 = vpop.permute.xlu0 %3901
      %3903 = vrot.lane.b32.xlu0 %v2428, 64
      %v3904 = vpop.permute.xlu0 %3903
      %3913 = vmatpush.bf16.msra.mxu0 %v3904
      %3914 = vmatpush.bf16.msra.mxu0 %v3902
      %3915 = vmatpush.bf16.msra.mxu0 %v3900
      %3916 = vmatpush.bf16.msra.mxu0 %v3898
      %3917 = vmatpush.bf16.msra.mxu0 %v3896
      %3918 = vmatpush.bf16.msra.mxu0 %v3894
      %3919 = vmatpush.bf16.msra.mxu0 %v3892
      %3920 = vmatpush.bf16.msra.mxu0 %v3890
      %3921 = vmatmul.bf16.gmra.mxu0 %v3881
      %v3922 = vpop.f32.mrf.mxu0
      %v3923 = vadd.f32 0.0, %v3922
      %v3924 = vpop.f32.mrf.mxu0
      %v3925 = vadd.f32 0.0, %v3924
      %3926 = vmatmul.bf16.gmra.mxu0 %v3882
      %v3927 = vpop.f32.mrf.mxu0
      %v3928 = vadd.f32 0.0, %v3927
      %v3929 = vpop.f32.mrf.mxu0
      %v3930 = vadd.f32 0.0, %v3929
      %3931 = vmatmul.bf16.gmra.mxu0 %v3883
      %v3932 = vpop.f32.mrf.mxu0
      %v3933 = vadd.f32 0.0, %v3932
      %v3934 = vpop.f32.mrf.mxu0
      %v3935 = vadd.f32 0.0, %v3934
      %3936 = vmatmul.bf16.gmra.mxu0 %v3884
      %v3937 = vpop.f32.mrf.mxu0
      %v3938 = vadd.f32 0.0, %v3937
      %v3939 = vpop.f32.mrf.mxu0
      %v3940 = vadd.f32 0.0, %v3939
      %3941 = vdwg.mxu0
      %v3950 = vunpack.c.l.b16 %v3602
      %v3951 = vunpack.c.l.b16 %v3603
      %v3952 = vunpack.c.l.b16 %v3604
      %v3953 = vunpack.c.l.b16 %v3605
      %v3954 = vunpack.c.l.b16 %v3606
      %v3955 = vunpack.c.l.b16 %v3607
      %v3956 = vunpack.c.l.b16 %v3608
      %v3957 = vunpack.c.l.b16 %v3609
      %v3958 = vpack.c.b16 %v3951, %v3950
      %v3959 = vpack.c.b16 %v3953, %v3952
      %v3960 = vpack.c.b16 %v3955, %v3954
      %v3961 = vpack.c.b16 %v3957, %v3956
      %3966 = vrot.lane.b32.xlu0 %v2546, 64
      %v3967 = vpop.permute.xlu0 %3966
      %3968 = vrot.lane.b32.xlu0 %v2547, 64
      %v3969 = vpop.permute.xlu0 %3968
      %3970 = vrot.lane.b32.xlu0 %v2548, 64
      %v3971 = vpop.permute.xlu0 %3970
      %3972 = vrot.lane.b32.xlu0 %v2549, 64
      %v3973 = vpop.permute.xlu0 %3972
      %3974 = vrot.lane.b32.xlu0 %v2550, 64
      %v3975 = vpop.permute.xlu0 %3974
      %3976 = vrot.lane.b32.xlu0 %v2551, 64
      %v3977 = vpop.permute.xlu0 %3976
      %3978 = vrot.lane.b32.xlu0 %v2552, 64
      %v3979 = vpop.permute.xlu0 %3978
      %3980 = vrot.lane.b32.xlu0 %v2553, 64
      %v3981 = vpop.permute.xlu0 %3980
      %3990 = vmatpush.bf16.msra.mxu0 %v3981
      %3991 = vmatpush.bf16.msra.mxu0 %v3979
      %3992 = vmatpush.bf16.msra.mxu0 %v3977
      %3993 = vmatpush.bf16.msra.mxu0 %v3975
      %3994 = vmatpush.bf16.msra.mxu0 %v3973
      %3995 = vmatpush.bf16.msra.mxu0 %v3971
      %3996 = vmatpush.bf16.msra.mxu0 %v3969
      %3997 = vmatpush.bf16.msra.mxu0 %v3967
      %3998 = vmatmul.bf16.gmra.mxu0 %v3958
      %v3999 = vpop.f32.mrf.mxu0
      %v4000 = vadd.f32 0.0, %v3999
      %v4001 = vpop.f32.mrf.mxu0
      %v4002 = vadd.f32 0.0, %v4001
      %4003 = vmatmul.bf16.gmra.mxu0 %v3959
      %v4004 = vpop.f32.mrf.mxu0
      %v4005 = vadd.f32 0.0, %v4004
      %v4006 = vpop.f32.mrf.mxu0
      %v4007 = vadd.f32 0.0, %v4006
      %4008 = vmatmul.bf16.gmra.mxu0 %v3960
      %v4009 = vpop.f32.mrf.mxu0
      %v4010 = vadd.f32 0.0, %v4009
      %v4011 = vpop.f32.mrf.mxu0
      %v4012 = vadd.f32 0.0, %v4011
      %4013 = vmatmul.bf16.gmra.mxu0 %v3961
      %v4014 = vpop.f32.mrf.mxu0
      %v4015 = vadd.f32 0.0, %v4014
      %v4016 = vpop.f32.mrf.mxu0
      %v4017 = vadd.f32 0.0, %v4016
      %4018 = vdwg.mxu0
      %v4027 = vunpack.c.l.b16 %v3610
      %v4028 = vunpack.c.l.b16 %v3611
      %v4029 = vunpack.c.l.b16 %v3612
      %v4030 = vunpack.c.l.b16 %v3613
      %v4031 = vunpack.c.l.b16 %v3614
      %v4032 = vunpack.c.l.b16 %v3615
      %v4033 = vunpack.c.l.b16 %v3616
      %v4034 = vunpack.c.l.b16 %v3617
      %v4035 = vpack.c.b16 %v4028, %v4027
      %v4036 = vpack.c.b16 %v4030, %v4029
      %v4037 = vpack.c.b16 %v4032, %v4031
      %v4038 = vpack.c.b16 %v4034, %v4033
      %4043 = vrot.lane.b32.xlu0 %v2671, 64
      %v4044 = vpop.permute.xlu0 %4043
      %4045 = vrot.lane.b32.xlu0 %v2672, 64
      %v4046 = vpop.permute.xlu0 %4045
      %4047 = vrot.lane.b32.xlu0 %v2673, 64
      %v4048 = vpop.permute.xlu0 %4047
      %4049 = vrot.lane.b32.xlu0 %v2674, 64
      %v4050 = vpop.permute.xlu0 %4049
      %4051 = vrot.lane.b32.xlu0 %v2675, 64
      %v4052 = vpop.permute.xlu0 %4051
      %4053 = vrot.lane.b32.xlu0 %v2676, 64
      %v4054 = vpop.permute.xlu0 %4053
      %4055 = vrot.lane.b32.xlu0 %v2677, 64
      %v4056 = vpop.permute.xlu0 %4055
      %4057 = vrot.lane.b32.xlu0 %v2678, 64
      %v4058 = vpop.permute.xlu0 %4057
      %4067 = vmatpush.bf16.msra.mxu0 %v4058
      %4068 = vmatpush.bf16.msra.mxu0 %v4056
      %4069 = vmatpush.bf16.msra.mxu0 %v4054
      %4070 = vmatpush.bf16.msra.mxu0 %v4052
      %4071 = vmatpush.bf16.msra.mxu0 %v4050
      %4072 = vmatpush.bf16.msra.mxu0 %v4048
      %4073 = vmatpush.bf16.msra.mxu0 %v4046
      %4074 = vmatpush.bf16.msra.mxu0 %v4044
      %4075 = vmatmul.bf16.gmra.mxu0 %v4035
      %v4076 = vpop.f32.mrf.mxu0
      %v4077 = vadd.f32 0.0, %v4076
      %v4078 = vpop.f32.mrf.mxu0
      %v4079 = vadd.f32 0.0, %v4078
      %4080 = vmatmul.bf16.gmra.mxu0 %v4036
      %v4081 = vpop.f32.mrf.mxu0
      %v4082 = vadd.f32 0.0, %v4081
      %v4083 = vpop.f32.mrf.mxu0
      %v4084 = vadd.f32 0.0, %v4083
      %4085 = vmatmul.bf16.gmra.mxu0 %v4037
      %v4086 = vpop.f32.mrf.mxu0
      %v4087 = vadd.f32 0.0, %v4086
      %v4088 = vpop.f32.mrf.mxu0
      %v4089 = vadd.f32 0.0, %v4088
      %4090 = vmatmul.bf16.gmra.mxu0 %v4038
      %v4091 = vpop.f32.mrf.mxu0
      %v4092 = vadd.f32 0.0, %v4091
      %v4093 = vpop.f32.mrf.mxu0
      %v4094 = vadd.f32 0.0, %v4093
      %4095 = vdwg.mxu0
      %v4104 = vunpack.c.l.b16 %v3618
      %v4105 = vunpack.c.l.b16 %v3619
      %v4106 = vunpack.c.l.b16 %v3620
      %v4107 = vunpack.c.l.b16 %v3621
      %v4108 = vunpack.c.l.b16 %v3622
      %v4109 = vunpack.c.l.b16 %v3623
      %v4110 = vunpack.c.l.b16 %v3624
      %v4111 = vunpack.c.l.b16 %v3625
      %v4112 = vpack.c.b16 %v4105, %v4104
      %v4113 = vpack.c.b16 %v4107, %v4106
      %v4114 = vpack.c.b16 %v4109, %v4108
      %v4115 = vpack.c.b16 %v4111, %v4110
      %4120 = vrot.lane.b32.xlu0 %v2796, 64
      %v4121 = vpop.permute.xlu0 %4120
      %4122 = vrot.lane.b32.xlu0 %v2797, 64
      %v4123 = vpop.permute.xlu0 %4122
      %4124 = vrot.lane.b32.xlu0 %v2798, 64
      %v4125 = vpop.permute.xlu0 %4124
      %4126 = vrot.lane.b32.xlu0 %v2799, 64
      %v4127 = vpop.permute.xlu0 %4126
      %4128 = vrot.lane.b32.xlu0 %v2800, 64
      %v4129 = vpop.permute.xlu0 %4128
      %4130 = vrot.lane.b32.xlu0 %v2801, 64
      %v4131 = vpop.permute.xlu0 %4130
      %4132 = vrot.lane.b32.xlu0 %v2802, 64
      %v4133 = vpop.permute.xlu0 %4132
      %4134 = vrot.lane.b32.xlu0 %v2803, 64
      %v4135 = vpop.permute.xlu0 %4134
      %4144 = vmatpush.bf16.msra.mxu0 %v4135
      %4145 = vmatpush.bf16.msra.mxu0 %v4133
      %4146 = vmatpush.bf16.msra.mxu0 %v4131
      %4147 = vmatpush.bf16.msra.mxu0 %v4129
      %4148 = vmatpush.bf16.msra.mxu0 %v4127
      %4149 = vmatpush.bf16.msra.mxu0 %v4125
      %4150 = vmatpush.bf16.msra.mxu0 %v4123
      %4151 = vmatpush.bf16.msra.mxu0 %v4121
      %4152 = vmatmul.bf16.gmra.mxu0 %v4112
      %v4153 = vpop.f32.mrf.mxu0
      %v4154 = vadd.f32 0.0, %v4153
      %v4155 = vpop.f32.mrf.mxu0
      %v4156 = vadd.f32 0.0, %v4155
      %4157 = vmatmul.bf16.gmra.mxu0 %v4113
      %v4158 = vpop.f32.mrf.mxu0
      %v4159 = vadd.f32 0.0, %v4158
      %v4160 = vpop.f32.mrf.mxu0
      %v4161 = vadd.f32 0.0, %v4160
      %4162 = vmatmul.bf16.gmra.mxu0 %v4114
      %v4163 = vpop.f32.mrf.mxu0
      %v4164 = vadd.f32 0.0, %v4163
      %v4165 = vpop.f32.mrf.mxu0
      %v4166 = vadd.f32 0.0, %v4165
      %4167 = vmatmul.bf16.gmra.mxu0 %v4115
      %v4168 = vpop.f32.mrf.mxu0
      %v4169 = vadd.f32 0.0, %v4168
      %v4170 = vpop.f32.mrf.mxu0
      %v4171 = vadd.f32 0.0, %v4170
      %4172 = vdwg.mxu0
      %v4181 = vunpack.c.l.b16 %v3626
      %v4182 = vunpack.c.l.b16 %v3627
      %v4183 = vunpack.c.l.b16 %v3628
      %v4184 = vunpack.c.l.b16 %v3629
      %v4185 = vunpack.c.l.b16 %v3630
      %v4186 = vunpack.c.l.b16 %v3631
      %v4187 = vunpack.c.l.b16 %v3632
      %v4188 = vunpack.c.l.b16 %v3633
      %v4189 = vpack.c.b16 %v4182, %v4181
      %v4190 = vpack.c.b16 %v4184, %v4183
      %v4191 = vpack.c.b16 %v4186, %v4185
      %v4192 = vpack.c.b16 %v4188, %v4187
      %4197 = vrot.lane.b32.xlu0 %v2921, 64
      %v4198 = vpop.permute.xlu0 %4197
      %4199 = vrot.lane.b32.xlu0 %v2922, 64
      %v4200 = vpop.permute.xlu0 %4199
      %4201 = vrot.lane.b32.xlu0 %v2923, 64
      %v4202 = vpop.permute.xlu0 %4201
      %4203 = vrot.lane.b32.xlu0 %v2924, 64
      %v4204 = vpop.permute.xlu0 %4203
      %4205 = vrot.lane.b32.xlu0 %v2925, 64
      %v4206 = vpop.permute.xlu0 %4205
      %4207 = vrot.lane.b32.xlu0 %v2926, 64
      %v4208 = vpop.permute.xlu0 %4207
      %4209 = vrot.lane.b32.xlu0 %v2927, 64
      %v4210 = vpop.permute.xlu0 %4209
      %4211 = vrot.lane.b32.xlu0 %v2928, 64
      %v4212 = vpop.permute.xlu0 %4211
      %4221 = vmatpush.bf16.msra.mxu0 %v4212
      %4222 = vmatpush.bf16.msra.mxu0 %v4210
      %4223 = vmatpush.bf16.msra.mxu0 %v4208
      %4224 = vmatpush.bf16.msra.mxu0 %v4206
      %4225 = vmatpush.bf16.msra.mxu0 %v4204
      %4226 = vmatpush.bf16.msra.mxu0 %v4202
      %4227 = vmatpush.bf16.msra.mxu0 %v4200
      %4228 = vmatpush.bf16.msra.mxu0 %v4198
      %4229 = vmatmul.bf16.gmra.mxu0 %v4189
      %v4230 = vpop.f32.mrf.mxu0
      %v4231 = vadd.f32 0.0, %v4230
      %v4232 = vpop.f32.mrf.mxu0
      %v4233 = vadd.f32 0.0, %v4232
      %4234 = vmatmul.bf16.gmra.mxu0 %v4190
      %v4235 = vpop.f32.mrf.mxu0
      %v4236 = vadd.f32 0.0, %v4235
      %v4237 = vpop.f32.mrf.mxu0
      %v4238 = vadd.f32 0.0, %v4237
      %4239 = vmatmul.bf16.gmra.mxu0 %v4191
      %v4240 = vpop.f32.mrf.mxu0
      %v4241 = vadd.f32 0.0, %v4240
      %v4242 = vpop.f32.mrf.mxu0
      %v4243 = vadd.f32 0.0, %v4242
      %4244 = vmatmul.bf16.gmra.mxu0 %v4192
      %v4245 = vpop.f32.mrf.mxu0
      %v4246 = vadd.f32 0.0, %v4245
      %v4247 = vpop.f32.mrf.mxu0
      %v4248 = vadd.f32 0.0, %v4247
      %4249 = vdwg.mxu0
      %4258 = vrot.lane.b32.xlu0 %v3769, 8
      %v4259 = vpop.permute.xlu0 %4258
      %4260 = vrot.lane.b32.xlu0 %v3771, 8
      %v4261 = vpop.permute.xlu0 %4260
      %4262 = vrot.lane.b32.xlu0 %v3774, 8
      %v4263 = vpop.permute.xlu0 %4262
      %4264 = vrot.lane.b32.xlu0 %v3776, 8
      %v4265 = vpop.permute.xlu0 %4264
      %4266 = vrot.lane.b32.xlu0 %v3779, 8
      %v4267 = vpop.permute.xlu0 %4266
      %4268 = vrot.lane.b32.xlu0 %v3781, 8
      %v4269 = vpop.permute.xlu0 %4268
      %4270 = vrot.lane.b32.xlu0 %v3784, 8
      %v4271 = vpop.permute.xlu0 %4270
      %4272 = vrot.lane.b32.xlu0 %v3786, 8
      %v4273 = vpop.permute.xlu0 %4272
      %4290 = vrot.lane.b32.xlu0 %v3846, 16
      %v4291 = vpop.permute.xlu0 %4290
      %4292 = vrot.lane.b32.xlu0 %v3848, 16
      %v4293 = vpop.permute.xlu0 %4292
      %4294 = vrot.lane.b32.xlu0 %v3851, 16
      %v4295 = vpop.permute.xlu0 %4294
      %4296 = vrot.lane.b32.xlu0 %v3853, 16
      %v4297 = vpop.permute.xlu0 %4296
      %4298 = vrot.lane.b32.xlu0 %v3856, 16
      %v4299 = vpop.permute.xlu0 %4298
      %4300 = vrot.lane.b32.xlu0 %v3858, 16
      %v4301 = vpop.permute.xlu0 %4300
      %4302 = vrot.lane.b32.xlu0 %v3861, 16
      %v4303 = vpop.permute.xlu0 %4302
      %4304 = vrot.lane.b32.xlu0 %v3863, 16
      %v4305 = vpop.permute.xlu0 %4304
      %4322 = vrot.lane.b32.xlu0 %v3923, 24
      %v4323 = vpop.permute.xlu0 %4322
      %4324 = vrot.lane.b32.xlu0 %v3925, 24
      %v4325 = vpop.permute.xlu0 %4324
      %4326 = vrot.lane.b32.xlu0 %v3928, 24
      %v4327 = vpop.permute.xlu0 %4326
      %4328 = vrot.lane.b32.xlu0 %v3930, 24
      %v4329 = vpop.permute.xlu0 %4328
      %4330 = vrot.lane.b32.xlu0 %v3933, 24
      %v4331 = vpop.permute.xlu0 %4330
      %4332 = vrot.lane.b32.xlu0 %v3935, 24
      %v4333 = vpop.permute.xlu0 %4332
      %4334 = vrot.lane.b32.xlu0 %v3938, 24
      %v4335 = vpop.permute.xlu0 %4334
      %4336 = vrot.lane.b32.xlu0 %v3940, 24
      %v4337 = vpop.permute.xlu0 %4336
      %4354 = vrot.lane.b32.xlu0 %v4000, 32
      %v4355 = vpop.permute.xlu0 %4354
      %4356 = vrot.lane.b32.xlu0 %v4002, 32
      %v4357 = vpop.permute.xlu0 %4356
      %4358 = vrot.lane.b32.xlu0 %v4005, 32
      %v4359 = vpop.permute.xlu0 %4358
      %4360 = vrot.lane.b32.xlu0 %v4007, 32
      %v4361 = vpop.permute.xlu0 %4360
      %4362 = vrot.lane.b32.xlu0 %v4010, 32
      %v4363 = vpop.permute.xlu0 %4362
      %4364 = vrot.lane.b32.xlu0 %v4012, 32
      %v4365 = vpop.permute.xlu0 %4364
      %4366 = vrot.lane.b32.xlu0 %v4015, 32
      %v4367 = vpop.permute.xlu0 %4366
      %4368 = vrot.lane.b32.xlu0 %v4017, 32
      %v4369 = vpop.permute.xlu0 %4368
      %4386 = vrot.lane.b32.xlu0 %v4077, 40
      %v4387 = vpop.permute.xlu0 %4386
      %4388 = vrot.lane.b32.xlu0 %v4079, 40
      %v4389 = vpop.permute.xlu0 %4388
      %4390 = vrot.lane.b32.xlu0 %v4082, 40
      %v4391 = vpop.permute.xlu0 %4390
      %4392 = vrot.lane.b32.xlu0 %v4084, 40
      %v4393 = vpop.permute.xlu0 %4392
      %4394 = vrot.lane.b32.xlu0 %v4087, 40
      %v4395 = vpop.permute.xlu0 %4394
      %4396 = vrot.lane.b32.xlu0 %v4089, 40
      %v4397 = vpop.permute.xlu0 %4396
      %4398 = vrot.lane.b32.xlu0 %v4092, 40
      %v4399 = vpop.permute.xlu0 %4398
      %4400 = vrot.lane.b32.xlu0 %v4094, 40
      %v4401 = vpop.permute.xlu0 %4400
      %4418 = vrot.lane.b32.xlu0 %v4154, 48
      %v4419 = vpop.permute.xlu0 %4418
      %4420 = vrot.lane.b32.xlu0 %v4156, 48
      %v4421 = vpop.permute.xlu0 %4420
      %4422 = vrot.lane.b32.xlu0 %v4159, 48
      %v4423 = vpop.permute.xlu0 %4422
      %4424 = vrot.lane.b32.xlu0 %v4161, 48
      %v4425 = vpop.permute.xlu0 %4424
      %4426 = vrot.lane.b32.xlu0 %v4164, 48
      %v4427 = vpop.permute.xlu0 %4426
      %4428 = vrot.lane.b32.xlu0 %v4166, 48
      %v4429 = vpop.permute.xlu0 %4428
      %4430 = vrot.lane.b32.xlu0 %v4169, 48
      %v4431 = vpop.permute.xlu0 %4430
      %4432 = vrot.lane.b32.xlu0 %v4171, 48
      %v4433 = vpop.permute.xlu0 %4432
      %4450 = vrot.lane.b32.xlu0 %v4231, 56
      %v4451 = vpop.permute.xlu0 %4450
      %4452 = vrot.lane.b32.xlu0 %v4233, 56
      %v4453 = vpop.permute.xlu0 %4452
      %4454 = vrot.lane.b32.xlu0 %v4236, 56
      %v4455 = vpop.permute.xlu0 %4454
      %4456 = vrot.lane.b32.xlu0 %v4238, 56
      %v4457 = vpop.permute.xlu0 %4456
      %4458 = vrot.lane.b32.xlu0 %v4241, 56
      %v4459 = vpop.permute.xlu0 %4458
      %4460 = vrot.lane.b32.xlu0 %v4243, 56
      %v4461 = vpop.permute.xlu0 %4460
      %4462 = vrot.lane.b32.xlu0 %v4246, 56
      %v4463 = vpop.permute.xlu0 %4462
      %4464 = vrot.lane.b32.xlu0 %v4248, 56
      %v4465 = vpop.permute.xlu0 %4464
      %v4474 = vsel %vm2053, %v3692, %v4259
      %v4475 = vsel %vm2053, %v3694, %v4261
      %v4476 = vsel %vm2053, %v3697, %v4263
      %v4477 = vsel %vm2053, %v3699, %v4265
      %v4478 = vsel %vm2053, %v3702, %v4267
      %v4479 = vsel %vm2053, %v3704, %v4269
      %v4480 = vsel %vm2053, %v3707, %v4271
      %v4481 = vsel %vm2053, %v3709, %v4273
      %vm4482 = vcmask 130048
      %v4483 = vsel %vm4482, %v4474, %v4291
      %v4484 = vsel %vm4482, %v4475, %v4293
      %v4485 = vsel %vm4482, %v4476, %v4295
      %v4486 = vsel %vm4482, %v4477, %v4297
      %v4487 = vsel %vm4482, %v4478, %v4299
      %v4488 = vsel %vm4482, %v4479, %v4301
      %v4489 = vsel %vm4482, %v4480, %v4303
      %v4490 = vsel %vm4482, %v4481, %v4305
      %vm4491 = vcmask 195584
      %v4492 = vsel %vm4491, %v4483, %v4323
      %v4493 = vsel %vm4491, %v4484, %v4325
      %v4494 = vsel %vm4491, %v4485, %v4327
      %v4495 = vsel %vm4491, %v4486, %v4329
      %v4496 = vsel %vm4491, %v4487, %v4331
      %v4497 = vsel %vm4491, %v4488, %v4333
      %v4498 = vsel %vm4491, %v4489, %v4335
      %v4499 = vsel %vm4491, %v4490, %v4337
      %vm4500 = vcmask 261120
      %v4501 = vsel %vm4500, %v4492, %v4355
      %v4502 = vsel %vm4500, %v4493, %v4357
      %v4503 = vsel %vm4500, %v4494, %v4359
      %v4504 = vsel %vm4500, %v4495, %v4361
      %v4505 = vsel %vm4500, %v4496, %v4363
      %v4506 = vsel %vm4500, %v4497, %v4365
      %v4507 = vsel %vm4500, %v4498, %v4367
      %v4508 = vsel %vm4500, %v4499, %v4369
      %vm4509 = vcmask 326656
      %v4510 = vsel %vm4509, %v4501, %v4387
      %v4511 = vsel %vm4509, %v4502, %v4389
      %v4512 = vsel %vm4509, %v4503, %v4391
      %v4513 = vsel %vm4509, %v4504, %v4393
      %v4514 = vsel %vm4509, %v4505, %v4395
      %v4515 = vsel %vm4509, %v4506, %v4397
      %v4516 = vsel %vm4509, %v4507, %v4399
      %v4517 = vsel %vm4509, %v4508, %v4401
      %vm4518 = vcmask 392192
      %v4519 = vsel %vm4518, %v4510, %v4419
      %v4520 = vsel %vm4518, %v4511, %v4421
      %v4521 = vsel %vm4518, %v4512, %v4423
      %v4522 = vsel %vm4518, %v4513, %v4425
      %v4523 = vsel %vm4518, %v4514, %v4427
      %v4524 = vsel %vm4518, %v4515, %v4429
      %v4525 = vsel %vm4518, %v4516, %v4431
      %v4526 = vsel %vm4518, %v4517, %v4433
      %vm4527 = vcmask 457728
      %v4528 = vsel %vm4527, %v4519, %v4451
      %v4529 = vsel %vm4527, %v4520, %v4453
      %v4530 = vsel %vm4527, %v4521, %v4455
      %v4531 = vsel %vm4527, %v4522, %v4457
      %v4532 = vsel %vm4527, %v4523, %v4459
      %v4533 = vsel %vm4527, %v4524, %v4461
      %v4534 = vsel %vm4527, %v4525, %v4463
      %v4535 = vsel %vm4527, %v4526, %v4465
      %v4536 = vpack.c.bf16 %v4529, %v4528
      %v4537 = vpack.c.bf16 %v4531, %v4530
      %v4538 = vpack.c.bf16 %v4533, %v4532
      %v4539 = vpack.c.bf16 %v4535, %v4534
      %v4540 = vld [vmem:[%s5] sm:$0xf]
      %v4541 = vld [vmem:[%s5 + $0x4] sm:$0xf]
      %v4542 = vld [vmem:[%s5 + $0x8] sm:$0xf]
      %v4543 = vld [vmem:[%s5 + $0xc] sm:$0xf]
      %v4544 = vld [vmem:[%s5 + $0x10] sm:$0xf]
      %v4545 = vld [vmem:[%s5 + $0x14] sm:$0xf]
      %v4546 = vld [vmem:[%s5 + $0x18] sm:$0xf]
      %v4547 = vld [vmem:[%s5 + $0x1c] sm:$0xf]
      %v4548 = vld [vmem:[%s6] sm:$0x1]
      %v4550 = vperm.slane %v4548, 0
      %v4560 = vunpack.c.l.b16 %v4540
      %v4561 = vunpack.c.l.b16 %v4541
      %v4562 = vunpack.c.l.b16 %v4542
      %v4563 = vunpack.c.l.b16 %v4543
      %v4564 = vunpack.c.l.b16 %v4544
      %v4565 = vunpack.c.l.b16 %v4545
      %v4566 = vunpack.c.l.b16 %v4546
      %v4567 = vunpack.c.l.b16 %v4547
      %v4568 = vpack.c.b16 %v4561, %v4560
      %v4569 = vpack.c.b16 %v4563, %v4562
      %v4570 = vpack.c.b16 %v4565, %v4564
      %v4571 = vpack.c.b16 %v4567, %v4566
      %v4577 = vsel %vm493, %v4536, 0
      %v4580 = vsel %vm493, %v4537, 0
      %v4583 = vsel %vm493, %v4538, 0
      %v4586 = vsel %vm493, %v4539, 0
      %4588 = vmatpush.bf16.msra.mxu0 0
      %4589 = vmatpush.bf16.msra.mxu0 0
      %4590 = vmatpush.bf16.msra.mxu0 0
      %4591 = vmatpush.bf16.msra.mxu0 0
      %4592 = vmatpush.bf16.msra.mxu0 %v4571
      %4593 = vmatpush.bf16.msra.mxu0 %v4570
      %4594 = vmatpush.bf16.msra.mxu0 %v4569
      %4595 = vmatpush.bf16.msra.mxu0 %v4568
      %4596 = vmatmul.bf16.gmra.mxu0 %v4577
      %v4597 = vpop.f32.mrf.mxu0
      %v4598 = vadd.f32 %v4550, %v4597
      %v4599 = vpop.f32.mrf.mxu0
      %v4600 = vadd.f32 %v4550, %v4599
      %4601 = vmatmul.bf16.gmra.mxu0 %v4580
      %v4602 = vpop.f32.mrf.mxu0
      %v4603 = vadd.f32 %v4550, %v4602
      %v4604 = vpop.f32.mrf.mxu0
      %v4605 = vadd.f32 %v4550, %v4604
      %4606 = vmatmul.bf16.gmra.mxu0 %v4583
      %v4607 = vpop.f32.mrf.mxu0
      %v4608 = vadd.f32 %v4550, %v4607
      %v4609 = vpop.f32.mrf.mxu0
      %v4610 = vadd.f32 %v4550, %v4609
      %4611 = vmatmul.bf16.gmra.mxu0 %v4586
      %v4612 = vpop.f32.mrf.mxu0
      %v4613 = vadd.f32 %v4550, %v4612
      %v4614 = vpop.f32.mrf.mxu0
      %v4615 = vadd.f32 %v4550, %v4614
      %4616 = vdwg.mxu0
      %v4617 = vadd.f32 %v467, %v4598
      %v4618 = vadd.f32 %v468, %v4600
      %v4619 = vadd.f32 %v469, %v4603
      %v4620 = vadd.f32 %v470, %v4605
      %v4621 = vadd.f32 %v471, %v4608
      %v4622 = vadd.f32 %v472, %v4610
      %v4623 = vadd.f32 %v473, %v4613
      %v4624 = vadd.f32 %v474, %v4615
      %v4625 = vld [vmem:[%s7] sm:$0x1]
      %v4626 = vld [vmem:[%s8] sm:$0x1]
      %v4627 = vsel %vm493, %v4617, 0.0
      %4628 = vadd.xlane.f32.xlu0 %v4627
      %v4629 = vpop.xlane.xlu0 %4628
      %v4630 = vsel %vm493, %v4618, 0.0
      %4631 = vadd.xlane.f32.xlu0 %v4630
      %v4632 = vpop.xlane.xlu0 %4631
      %v4633 = vsel %vm493, %v4619, 0.0
      %4634 = vadd.xlane.f32.xlu0 %v4633
      %v4635 = vpop.xlane.xlu0 %4634
      %v4636 = vsel %vm493, %v4620, 0.0
      %4637 = vadd.xlane.f32.xlu0 %v4636
      %v4638 = vpop.xlane.xlu0 %4637
      %v4639 = vsel %vm493, %v4621, 0.0
      %4640 = vadd.xlane.f32.xlu0 %v4639
      %v4641 = vpop.xlane.xlu0 %4640
      %v4642 = vsel %vm493, %v4622, 0.0
      %4643 = vadd.xlane.f32.xlu0 %v4642
      %v4644 = vpop.xlane.xlu0 %4643
      %v4645 = vsel %vm493, %v4623, 0.0
      %4646 = vadd.xlane.f32.xlu0 %v4645
      %v4647 = vpop.xlane.xlu0 %4646
      %v4648 = vsel %vm493, %v4624, 0.0
      %4649 = vadd.xlane.f32.xlu0 %v4648
      %v4650 = vpop.xlane.xlu0 %4649
      %v4651 = vmul.f32 %v4629, %v548
      %v4652 = vmul.f32 %v4632, %v548
      %v4653 = vmul.f32 %v4635, %v548
      %v4654 = vmul.f32 %v4638, %v548
      %v4655 = vmul.f32 %v4641, %v548
      %v4656 = vmul.f32 %v4644, %v548
      %v4657 = vmul.f32 %v4647, %v548
      %v4658 = vmul.f32 %v4650, %v548
      %v4659 = vsub.f32 %v4617, %v4651
      %v4660 = vsub.f32 %v4618, %v4652
      %v4661 = vsub.f32 %v4619, %v4653
      %v4662 = vsub.f32 %v4620, %v4654
      %v4663 = vsub.f32 %v4621, %v4655
      %v4664 = vsub.f32 %v4622, %v4656
      %v4665 = vsub.f32 %v4623, %v4657
      %v4666 = vsub.f32 %v4624, %v4658
      %v4667 = vmul.f32 %v4659, %v4659
      %v4668 = vmul.f32 %v4660, %v4660
      %v4669 = vmul.f32 %v4661, %v4661
      %v4670 = vmul.f32 %v4662, %v4662
      %v4671 = vmul.f32 %v4663, %v4663
      %v4672 = vmul.f32 %v4664, %v4664
      %v4673 = vmul.f32 %v4665, %v4665
      %v4674 = vmul.f32 %v4666, %v4666
      %v4675 = vsel %vm493, %v4667, 0.0
      %4676 = vadd.xlane.f32.xlu0 %v4675
      %v4677 = vpop.xlane.xlu0 %4676
      %v4678 = vsel %vm493, %v4668, 0.0
      %4679 = vadd.xlane.f32.xlu0 %v4678
      %v4680 = vpop.xlane.xlu0 %4679
      %v4681 = vsel %vm493, %v4669, 0.0
      %4682 = vadd.xlane.f32.xlu0 %v4681
      %v4683 = vpop.xlane.xlu0 %4682
      %v4684 = vsel %vm493, %v4670, 0.0
      %4685 = vadd.xlane.f32.xlu0 %v4684
      %v4686 = vpop.xlane.xlu0 %4685
      %v4687 = vsel %vm493, %v4671, 0.0
      %4688 = vadd.xlane.f32.xlu0 %v4687
      %v4689 = vpop.xlane.xlu0 %4688
      %v4690 = vsel %vm493, %v4672, 0.0
      %4691 = vadd.xlane.f32.xlu0 %v4690
      %v4692 = vpop.xlane.xlu0 %4691
      %v4693 = vsel %vm493, %v4673, 0.0
      %4694 = vadd.xlane.f32.xlu0 %v4693
      %v4695 = vpop.xlane.xlu0 %4694
      %v4696 = vsel %vm493, %v4674, 0.0
      %4697 = vadd.xlane.f32.xlu0 %v4696
      %v4698 = vpop.xlane.xlu0 %4697
      %v4699 = vmul.f32 %v4677, %v548
      %v4700 = vmul.f32 %v4680, %v548
      %v4701 = vmul.f32 %v4683, %v548
      %v4702 = vmul.f32 %v4686, %v548
      %v4703 = vmul.f32 %v4689, %v548
      %v4704 = vmul.f32 %v4692, %v548
      %v4705 = vmul.f32 %v4695, %v548
      %v4706 = vmul.f32 %v4698, %v548
      %v4707 = vadd.f32 %v4699, 1e-05
      %v4708 = vadd.f32 %v4700, 1e-05
      %v4709 = vadd.f32 %v4701, 1e-05
      %v4710 = vadd.f32 %v4702, 1e-05
      %v4711 = vadd.f32 %v4703, 1e-05
      %v4712 = vadd.f32 %v4704, 1e-05
      %v4713 = vadd.f32 %v4705, 1e-05
      %v4714 = vadd.f32 %v4706, 1e-05
      %v4715 = vrsqrt.pop %v4707
      %v4716 = vmul.f32 %v4715, %v4707
      %v4717 = vmul.f32 %v4716, %v4715
      %v4718 = vmul.f32 0.5, %v4717
      %v4719 = vsub.f32 1.5, %v4718
      %v4720 = vmul.f32 %v4715, %v4719
      %vm4721 = vweird.f32 %v4707
      %vm4722 = vweird.f32 %v4715
      %vm4723 = vmor %vm4721, %vm4722
      %v4724 = vsel %vm4723, %v4715, %v4720
      %v4725 = vrsqrt.pop %v4708
      %v4726 = vmul.f32 %v4725, %v4708
      %v4727 = vmul.f32 %v4726, %v4725
      %v4728 = vmul.f32 0.5, %v4727
      %v4729 = vsub.f32 1.5, %v4728
      %v4730 = vmul.f32 %v4725, %v4729
      %vm4731 = vweird.f32 %v4708
      %vm4732 = vweird.f32 %v4725
      %vm4733 = vmor %vm4731, %vm4732
      %v4734 = vsel %vm4733, %v4725, %v4730
      %v4735 = vrsqrt.pop %v4709
      %v4736 = vmul.f32 %v4735, %v4709
      %v4737 = vmul.f32 %v4736, %v4735
      %v4738 = vmul.f32 0.5, %v4737
      %v4739 = vsub.f32 1.5, %v4738
      %v4740 = vmul.f32 %v4735, %v4739
      %vm4741 = vweird.f32 %v4709
      %vm4742 = vweird.f32 %v4735
      %vm4743 = vmor %vm4741, %vm4742
      %v4744 = vsel %vm4743, %v4735, %v4740
      %v4745 = vrsqrt.pop %v4710
      %v4746 = vmul.f32 %v4745, %v4710
      %v4747 = vmul.f32 %v4746, %v4745
      %v4748 = vmul.f32 0.5, %v4747
      %v4749 = vsub.f32 1.5, %v4748
      %v4750 = vmul.f32 %v4745, %v4749
      %vm4751 = vweird.f32 %v4710
      %vm4752 = vweird.f32 %v4745
      %vm4753 = vmor %vm4751, %vm4752
      %v4754 = vsel %vm4753, %v4745, %v4750
      %v4755 = vrsqrt.pop %v4711
      %v4756 = vmul.f32 %v4755, %v4711
      %v4757 = vmul.f32 %v4756, %v4755
      %v4758 = vmul.f32 0.5, %v4757
      %v4759 = vsub.f32 1.5, %v4758
      %v4760 = vmul.f32 %v4755, %v4759
      %vm4761 = vweird.f32 %v4711
      %vm4762 = vweird.f32 %v4755
      %vm4763 = vmor %vm4761, %vm4762
      %v4764 = vsel %vm4763, %v4755, %v4760
      %v4765 = vrsqrt.pop %v4712
      %v4766 = vmul.f32 %v4765, %v4712
      %v4767 = vmul.f32 %v4766, %v4765
      %v4768 = vmul.f32 0.5, %v4767
      %v4769 = vsub.f32 1.5, %v4768
      %v4770 = vmul.f32 %v4765, %v4769
      %vm4771 = vweird.f32 %v4712
      %vm4772 = vweird.f32 %v4765
      %vm4773 = vmor %vm4771, %vm4772
      %v4774 = vsel %vm4773, %v4765, %v4770
      %v4775 = vrsqrt.pop %v4713
      %v4776 = vmul.f32 %v4775, %v4713
      %v4777 = vmul.f32 %v4776, %v4775
      %v4778 = vmul.f32 0.5, %v4777
      %v4779 = vsub.f32 1.5, %v4778
      %v4780 = vmul.f32 %v4775, %v4779
      %vm4781 = vweird.f32 %v4713
      %vm4782 = vweird.f32 %v4775
      %vm4783 = vmor %vm4781, %vm4782
      %v4784 = vsel %vm4783, %v4775, %v4780
      %v4785 = vrsqrt.pop %v4714
      %v4786 = vmul.f32 %v4785, %v4714
      %v4787 = vmul.f32 %v4786, %v4785
      %v4788 = vmul.f32 0.5, %v4787
      %v4789 = vsub.f32 1.5, %v4788
      %v4790 = vmul.f32 %v4785, %v4789
      %vm4791 = vweird.f32 %v4714
      %vm4792 = vweird.f32 %v4785
      %vm4793 = vmor %vm4791, %vm4792
      %v4794 = vsel %vm4793, %v4785, %v4790
      %v4795 = vmul.f32 %v4659, %v4724
      %v4796 = vmul.f32 %v4660, %v4734
      %v4797 = vmul.f32 %v4661, %v4744
      %v4798 = vmul.f32 %v4662, %v4754
      %v4799 = vmul.f32 %v4663, %v4764
      %v4800 = vmul.f32 %v4664, %v4774
      %v4801 = vmul.f32 %v4665, %v4784
      %v4802 = vmul.f32 %v4666, %v4794
      %v4804 = vperm.slane %v4625, 0
      %v4806 = vmul.f32 %v4795, %v4804
      %v4807 = vmul.f32 %v4796, %v4804
      %v4808 = vmul.f32 %v4797, %v4804
      %v4809 = vmul.f32 %v4798, %v4804
      %v4810 = vmul.f32 %v4799, %v4804
      %v4811 = vmul.f32 %v4800, %v4804
      %v4812 = vmul.f32 %v4801, %v4804
      %v4813 = vmul.f32 %v4802, %v4804
      %v4815 = vperm.slane %v4626, 0
      %v4817 = vadd.f32 %v4806, %v4815
      %v4818 = vadd.f32 %v4807, %v4815
      %v4819 = vadd.f32 %v4808, %v4815
      %v4820 = vadd.f32 %v4809, %v4815
      %v4821 = vadd.f32 %v4810, %v4815
      %v4822 = vadd.f32 %v4811, %v4815
      %v4823 = vadd.f32 %v4812, %v4815
      %v4824 = vadd.f32 %v4813, %v4815
      %v4825 = vpack.c.bf16 %v4818, %v4817
      %v4826 = vpack.c.bf16 %v4820, %v4819
      %v4827 = vpack.c.bf16 %v4822, %v4821
      %v4828 = vpack.c.bf16 %v4824, %v4823
      %v4829 = vld [vmem:[%s9] sm:$0xff]
      %v4830 = vld [vmem:[%s9 + $0x8] sm:$0xff]
      %v4831 = vld [vmem:[%s9 + $0x10] sm:$0xff]
      %v4832 = vld [vmem:[%s9 + $0x18] sm:$0xff]
      %v4833 = vld [vmem:[%s9 + $0x20] sm:$0xff]
      %v4834 = vld [vmem:[%s9 + $0x28] sm:$0xff]
      %v4835 = vld [vmem:[%s9 + $0x30] sm:$0xff]
      %v4836 = vld [vmem:[%s9 + $0x38] sm:$0xff]
      %v4837 = vld [vmem:[%s10] sm:$0x3]
      %v4839 = vperm.slane %v4837, 0
      %v4840 = vperm.slane %v4837, 1
      %v4851 = vunpack.c.l.b16 %v4829
      %v4852 = vunpack.c.h.b16 %v4829
      %v4853 = vunpack.c.l.b16 %v4830
      %v4854 = vunpack.c.h.b16 %v4830
      %v4855 = vunpack.c.l.b16 %v4831
      %v4856 = vunpack.c.h.b16 %v4831
      %v4857 = vunpack.c.l.b16 %v4832
      %v4858 = vunpack.c.h.b16 %v4832
      %v4859 = vunpack.c.l.b16 %v4833
      %v4860 = vunpack.c.h.b16 %v4833
      %v4861 = vunpack.c.l.b16 %v4834
      %v4862 = vunpack.c.h.b16 %v4834
      %v4863 = vunpack.c.l.b16 %v4835
      %v4864 = vunpack.c.h.b16 %v4835
      %v4865 = vunpack.c.l.b16 %v4836
      %v4866 = vunpack.c.h.b16 %v4836
      %v4867 = vpack.c.b16 %v4853, %v4851
      %v4868 = vpack.c.b16 %v4854, %v4852
      %v4869 = vpack.c.b16 %v4857, %v4855
      %v4870 = vpack.c.b16 %v4858, %v4856
      %v4871 = vpack.c.b16 %v4861, %v4859
      %v4872 = vpack.c.b16 %v4862, %v4860
      %v4873 = vpack.c.b16 %v4865, %v4863
      %v4874 = vpack.c.b16 %v4866, %v4864
      %v4884 = vsel %vm493, %v4825, 0
      %v4887 = vsel %vm493, %v4826, 0
      %v4890 = vsel %vm493, %v4827, 0
      %v4893 = vsel %vm493, %v4828, 0
      %4895 = vmatpush.bf16.msra.mxu0 0
      %4896 = vmatpush.bf16.msra.mxu0 0
      %4897 = vmatpush.bf16.msra.mxu0 0
      %4898 = vmatpush.bf16.msra.mxu0 0
      %4899 = vmatpush.bf16.msra.mxu0 %v4873
      %4900 = vmatpush.bf16.msra.mxu0 %v4871
      %4901 = vmatpush.bf16.msra.mxu0 %v4869
      %4902 = vmatpush.bf16.msra.mxu0 %v4867
      %4903 = vmatmul.bf16.gmra.mxu0 %v4884
      %v4904 = vpop.f32.mrf.mxu0
      %v4905 = vadd.f32 %v4839, %v4904
      %v4906 = vpop.f32.mrf.mxu0
      %v4907 = vadd.f32 %v4839, %v4906
      %4908 = vmatmul.bf16.gmra.mxu0 %v4887
      %v4909 = vpop.f32.mrf.mxu0
      %v4910 = vadd.f32 %v4839, %v4909
      %v4911 = vpop.f32.mrf.mxu0
      %v4912 = vadd.f32 %v4839, %v4911
      %4913 = vmatmul.bf16.gmra.mxu0 %v4890
      %v4914 = vpop.f32.mrf.mxu0
      %v4915 = vadd.f32 %v4839, %v4914
      %v4916 = vpop.f32.mrf.mxu0
      %v4917 = vadd.f32 %v4839, %v4916
      %4918 = vmatmul.bf16.gmra.mxu0 %v4893
      %v4919 = vpop.f32.mrf.mxu0
      %v4920 = vadd.f32 %v4839, %v4919
      %v4921 = vpop.f32.mrf.mxu0
      %v4922 = vadd.f32 %v4839, %v4921
      %4923 = vdwg.mxu0
      %4924 = vmatpush.bf16.msra.mxu0 0
      %4925 = vmatpush.bf16.msra.mxu0 0
      %4926 = vmatpush.bf16.msra.mxu0 0
      %4927 = vmatpush.bf16.msra.mxu0 0
      %4928 = vmatpush.bf16.msra.mxu0 %v4874
      %4929 = vmatpush.bf16.msra.mxu0 %v4872
      %4930 = vmatpush.bf16.msra.mxu0 %v4870
      %4931 = vmatpush.bf16.msra.mxu0 %v4868
      %4932 = vmatmul.bf16.gmra.mxu0 %v4884
      %v4933 = vpop.f32.mrf.mxu0
      %v4934 = vadd.f32 %v4840, %v4933
      %v4935 = vpop.f32.mrf.mxu0
      %v4936 = vadd.f32 %v4840, %v4935
      %4937 = vmatmul.bf16.gmra.mxu0 %v4887
      %v4938 = vpop.f32.mrf.mxu0
      %v4939 = vadd.f32 %v4840, %v4938
      %v4940 = vpop.f32.mrf.mxu0
      %v4941 = vadd.f32 %v4840, %v4940
      %4942 = vmatmul.bf16.gmra.mxu0 %v4890
      %v4943 = vpop.f32.mrf.mxu0
      %v4944 = vadd.f32 %v4840, %v4943
      %v4945 = vpop.f32.mrf.mxu0
      %v4946 = vadd.f32 %v4840, %v4945
      %4947 = vmatmul.bf16.gmra.mxu0 %v4893
      %v4948 = vpop.f32.mrf.mxu0
      %v4949 = vadd.f32 %v4840, %v4948
      %v4950 = vpop.f32.mrf.mxu0
      %v4951 = vadd.f32 %v4840, %v4950
      %4952 = vdwg.mxu0
      %v4953 = vmul.f32 %v4905, 0.5
      %v4954 = vmul.f32 %v4934, 0.5
      %v4955 = vmul.f32 %v4907, 0.5
      %v4956 = vmul.f32 %v4936, 0.5
      %v4957 = vmul.f32 %v4910, 0.5
      %v4958 = vmul.f32 %v4939, 0.5
      %v4959 = vmul.f32 %v4912, 0.5
      %v4960 = vmul.f32 %v4941, 0.5
      %v4961 = vmul.f32 %v4915, 0.5
      %v4962 = vmul.f32 %v4944, 0.5
      %v4963 = vmul.f32 %v4917, 0.5
      %v4964 = vmul.f32 %v4946, 0.5
      %v4965 = vmul.f32 %v4920, 0.5
      %v4966 = vmul.f32 %v4949, 0.5
      %v4967 = vmul.f32 %v4922, 0.5
      %v4968 = vmul.f32 %v4951, 0.5
      %v4969 = vmul.f32 %v4905, 0.70710677
      %v4970 = vmul.f32 %v4934, 0.70710677
      %v4971 = vmul.f32 %v4907, 0.70710677
      %v4972 = vmul.f32 %v4936, 0.70710677
      %v4973 = vmul.f32 %v4910, 0.70710677
      %v4974 = vmul.f32 %v4939, 0.70710677
      %v4975 = vmul.f32 %v4912, 0.70710677
      %v4976 = vmul.f32 %v4941, 0.70710677
      %v4977 = vmul.f32 %v4915, 0.70710677
      %v4978 = vmul.f32 %v4944, 0.70710677
      %v4979 = vmul.f32 %v4917, 0.70710677
      %v4980 = vmul.f32 %v4946, 0.70710677
      %v4981 = vmul.f32 %v4920, 0.70710677
      %v4982 = vmul.f32 %v4949, 0.70710677
      %v4983 = vmul.f32 %v4922, 0.70710677
      %v4984 = vmul.f32 %v4951, 0.70710677
      %vm4985 = vcmp.ge.f32.partialorder %v4969, 0.0
      %vm4986 = vcmp.ge.f32.partialorder %v4970, 0.0
      %vm4987 = vcmp.ge.f32.partialorder %v4971, 0.0
      %vm4988 = vcmp.ge.f32.partialorder %v4972, 0.0
      %vm4989 = vcmp.ge.f32.partialorder %v4973, 0.0
      %vm4990 = vcmp.ge.f32.partialorder %v4974, 0.0
      %vm4991 = vcmp.ge.f32.partialorder %v4975, 0.0
      %vm4992 = vcmp.ge.f32.partialorder %v4976, 0.0
      %vm4993 = vcmp.ge.f32.partialorder %v4977, 0.0
      %vm4994 = vcmp.ge.f32.partialorder %v4978, 0.0
      %vm4995 = vcmp.ge.f32.partialorder %v4979, 0.0
      %vm4996 = vcmp.ge.f32.partialorder %v4980, 0.0
      %vm4997 = vcmp.ge.f32.partialorder %v4981, 0.0
      %vm4998 = vcmp.ge.f32.partialorder %v4982, 0.0
      %vm4999 = vcmp.ge.f32.partialorder %v4983, 0.0
      %vm5000 = vcmp.ge.f32.partialorder %v4984, 0.0
      %v5001 = vsel %vm4985, 1.0, -1.0
      %v5002 = vsel %vm4986, 1.0, -1.0
      %v5003 = vsel %vm4987, 1.0, -1.0
      %v5004 = vsel %vm4988, 1.0, -1.0
      %v5005 = vsel %vm4989, 1.0, -1.0
      %v5006 = vsel %vm4990, 1.0, -1.0
      %v5007 = vsel %vm4991, 1.0, -1.0
      %v5008 = vsel %vm4992, 1.0, -1.0
      %v5009 = vsel %vm4993, 1.0, -1.0
      %v5010 = vsel %vm4994, 1.0, -1.0
      %v5011 = vsel %vm4995, 1.0, -1.0
      %v5012 = vsel %vm4996, 1.0, -1.0
      %v5013 = vsel %vm4997, 1.0, -1.0
      %v5014 = vsel %vm4998, 1.0, -1.0
      %v5015 = vsel %vm4999, 1.0, -1.0
      %v5016 = vsel %vm5000, 1.0, -1.0
      %v5017 = vand.u32 2147483647, %v4969
      %v5018 = vand.u32 2147483647, %v4970
      %v5019 = vand.u32 2147483647, %v4971
      %v5020 = vand.u32 2147483647, %v4972
      %v5021 = vand.u32 2147483647, %v4973
      %v5022 = vand.u32 2147483647, %v4974
      %v5023 = vand.u32 2147483647, %v4975
      %v5024 = vand.u32 2147483647, %v4976
      %v5025 = vand.u32 2147483647, %v4977
      %v5026 = vand.u32 2147483647, %v4978
      %v5027 = vand.u32 2147483647, %v4979
      %v5028 = vand.u32 2147483647, %v4980
      %v5029 = vand.u32 2147483647, %v4981
      %v5030 = vand.u32 2147483647, %v4982
      %v5031 = vand.u32 2147483647, %v4983
      %v5032 = vand.u32 2147483647, %v4984
      %v5033 = vmul.f32 %v5017, 0.3275911
      %v5034 = vmul.f32 %v5018, 0.3275911
      %v5035 = vmul.f32 %v5019, 0.3275911
      %v5036 = vmul.f32 %v5020, 0.3275911
      %v5037 = vmul.f32 %v5021, 0.3275911
      %v5038 = vmul.f32 %v5022, 0.3275911
      %v5039 = vmul.f32 %v5023, 0.3275911
      %v5040 = vmul.f32 %v5024, 0.3275911
      %v5041 = vmul.f32 %v5025, 0.3275911
      %v5042 = vmul.f32 %v5026, 0.3275911
      %v5043 = vmul.f32 %v5027, 0.3275911
      %v5044 = vmul.f32 %v5028, 0.3275911
      %v5045 = vmul.f32 %v5029, 0.3275911
      %v5046 = vmul.f32 %v5030, 0.3275911
      %v5047 = vmul.f32 %v5031, 0.3275911
      %v5048 = vmul.f32 %v5032, 0.3275911
      %v5049 = vadd.f32 %v5033, 1.0
      %v5050 = vadd.f32 %v5034, 1.0
      %v5051 = vadd.f32 %v5035, 1.0
      %v5052 = vadd.f32 %v5036, 1.0
      %v5053 = vadd.f32 %v5037, 1.0
      %v5054 = vadd.f32 %v5038, 1.0
      %v5055 = vadd.f32 %v5039, 1.0
      %v5056 = vadd.f32 %v5040, 1.0
      %v5057 = vadd.f32 %v5041, 1.0
      %v5058 = vadd.f32 %v5042, 1.0
      %v5059 = vadd.f32 %v5043, 1.0
      %v5060 = vadd.f32 %v5044, 1.0
      %v5061 = vadd.f32 %v5045, 1.0
      %v5062 = vadd.f32 %v5046, 1.0
      %v5063 = vadd.f32 %v5047, 1.0
      %v5064 = vadd.f32 %v5048, 1.0
      %v5065 = vrcp.pop %v5049
      %v5066 = vmul.f32 %v5049, %v5065
      %v5067 = vsub.f32 1.0, %v5066
      %v5068 = vmul.f32 %v5065, %v5067
      %v5069 = vadd.f32 %v5065, %v5068
      %vm5070 = vweird.f32 %v5049
      %vm5071 = vweird.f32 %v5065
      %vm5072 = vmor %vm5070, %vm5071
      %v5073 = vsel %vm5072, %v5065, %v5069
      %v5074 = vand.u32 2147483647, %v5049
      %vm5075 = vcmp.eq.f32.partialorder %v5074, 8.507059e+37
      %v5076 = vand.u32 %v5049, 2147483648
      %v5077 = vor.u32 1.1754944e-38, %v5076
      %v5078 = vsel %vm5075, %v5077, %v5073
      %v5079 = vmul.f32 1.0, %v5078
      %v5080 = vrcp.pop %v5050
      %v5081 = vmul.f32 %v5050, %v5080
      %v5082 = vsub.f32 1.0, %v5081
      %v5083 = vmul.f32 %v5080, %v5082
      %v5084 = vadd.f32 %v5080, %v5083
      %vm5085 = vweird.f32 %v5050
      %vm5086 = vweird.f32 %v5080
      %vm5087 = vmor %vm5085, %vm5086
      %v5088 = vsel %vm5087, %v5080, %v5084
      %v5089 = vand.u32 2147483647, %v5050
      %vm5090 = vcmp.eq.f32.partialorder %v5089, 8.507059e+37
      %v5091 = vand.u32 %v5050, 2147483648
      %v5092 = vor.u32 1.1754944e-38, %v5091
      %v5093 = vsel %vm5090, %v5092, %v5088
      %v5094 = vmul.f32 1.0, %v5093
      %v5095 = vrcp.pop %v5051
      %v5096 = vmul.f32 %v5051, %v5095
      %v5097 = vsub.f32 1.0, %v5096
      %v5098 = vmul.f32 %v5095, %v5097
      %v5099 = vadd.f32 %v5095, %v5098
      %vm5100 = vweird.f32 %v5051
      %vm5101 = vweird.f32 %v5095
      %vm5102 = vmor %vm5100, %vm5101
      %v5103 = vsel %vm5102, %v5095, %v5099
      %v5104 = vand.u32 2147483647, %v5051
      %vm5105 = vcmp.eq.f32.partialorder %v5104, 8.507059e+37
      %v5106 = vand.u32 %v5051, 2147483648
      %v5107 = vor.u32 1.1754944e-38, %v5106
      %v5108 = vsel %vm5105, %v5107, %v5103
      %v5109 = vmul.f32 1.0, %v5108
      %v5110 = vrcp.pop %v5052
      %v5111 = vmul.f32 %v5052, %v5110
      %v5112 = vsub.f32 1.0, %v5111
      %v5113 = vmul.f32 %v5110, %v5112
      %v5114 = vadd.f32 %v5110, %v5113
      %vm5115 = vweird.f32 %v5052
      %vm5116 = vweird.f32 %v5110
      %vm5117 = vmor %vm5115, %vm5116
      %v5118 = vsel %vm5117, %v5110, %v5114
      %v5119 = vand.u32 2147483647, %v5052
      %vm5120 = vcmp.eq.f32.partialorder %v5119, 8.507059e+37
      %v5121 = vand.u32 %v5052, 2147483648
      %v5122 = vor.u32 1.1754944e-38, %v5121
      %v5123 = vsel %vm5120, %v5122, %v5118
      %v5124 = vmul.f32 1.0, %v5123
      %v5125 = vrcp.pop %v5053
      %v5126 = vmul.f32 %v5053, %v5125
      %v5127 = vsub.f32 1.0, %v5126
      %v5128 = vmul.f32 %v5125, %v5127
      %v5129 = vadd.f32 %v5125, %v5128
      %vm5130 = vweird.f32 %v5053
      %vm5131 = vweird.f32 %v5125
      %vm5132 = vmor %vm5130, %vm5131
      %v5133 = vsel %vm5132, %v5125, %v5129
      %v5134 = vand.u32 2147483647, %v5053
      %vm5135 = vcmp.eq.f32.partialorder %v5134, 8.507059e+37
      %v5136 = vand.u32 %v5053, 2147483648
      %v5137 = vor.u32 1.1754944e-38, %v5136
      %v5138 = vsel %vm5135, %v5137, %v5133
      %v5139 = vmul.f32 1.0, %v5138
      %v5140 = vrcp.pop %v5054
      %v5141 = vmul.f32 %v5054, %v5140
      %v5142 = vsub.f32 1.0, %v5141
      %v5143 = vmul.f32 %v5140, %v5142
      %v5144 = vadd.f32 %v5140, %v5143
      %vm5145 = vweird.f32 %v5054
      %vm5146 = vweird.f32 %v5140
      %vm5147 = vmor %vm5145, %vm5146
      %v5148 = vsel %vm5147, %v5140, %v5144
      %v5149 = vand.u32 2147483647, %v5054
      %vm5150 = vcmp.eq.f32.partialorder %v5149, 8.507059e+37
      %v5151 = vand.u32 %v5054, 2147483648
      %v5152 = vor.u32 1.1754944e-38, %v5151
      %v5153 = vsel %vm5150, %v5152, %v5148
      %v5154 = vmul.f32 1.0, %v5153
      %v5155 = vrcp.pop %v5055
      %v5156 = vmul.f32 %v5055, %v5155
      %v5157 = vsub.f32 1.0, %v5156
      %v5158 = vmul.f32 %v5155, %v5157
      %v5159 = vadd.f32 %v5155, %v5158
      %vm5160 = vweird.f32 %v5055
      %vm5161 = vweird.f32 %v5155
      %vm5162 = vmor %vm5160, %vm5161
      %v5163 = vsel %vm5162, %v5155, %v5159
      %v5164 = vand.u32 2147483647, %v5055
      %vm5165 = vcmp.eq.f32.partialorder %v5164, 8.507059e+37
      %v5166 = vand.u32 %v5055, 2147483648
      %v5167 = vor.u32 1.1754944e-38, %v5166
      %v5168 = vsel %vm5165, %v5167, %v5163
      %v5169 = vmul.f32 1.0, %v5168
      %v5170 = vrcp.pop %v5056
      %v5171 = vmul.f32 %v5056, %v5170
      %v5172 = vsub.f32 1.0, %v5171
      %v5173 = vmul.f32 %v5170, %v5172
      %v5174 = vadd.f32 %v5170, %v5173
      %vm5175 = vweird.f32 %v5056
      %vm5176 = vweird.f32 %v5170
      %vm5177 = vmor %vm5175, %vm5176
      %v5178 = vsel %vm5177, %v5170, %v5174
      %v5179 = vand.u32 2147483647, %v5056
      %vm5180 = vcmp.eq.f32.partialorder %v5179, 8.507059e+37
      %v5181 = vand.u32 %v5056, 2147483648
      %v5182 = vor.u32 1.1754944e-38, %v5181
      %v5183 = vsel %vm5180, %v5182, %v5178
      %v5184 = vmul.f32 1.0, %v5183
      %v5185 = vrcp.pop %v5057
      %v5186 = vmul.f32 %v5057, %v5185
      %v5187 = vsub.f32 1.0, %v5186
      %v5188 = vmul.f32 %v5185, %v5187
      %v5189 = vadd.f32 %v5185, %v5188
      %vm5190 = vweird.f32 %v5057
      %vm5191 = vweird.f32 %v5185
      %vm5192 = vmor %vm5190, %vm5191
      %v5193 = vsel %vm5192, %v5185, %v5189
      %v5194 = vand.u32 2147483647, %v5057
      %vm5195 = vcmp.eq.f32.partialorder %v5194, 8.507059e+37
      %v5196 = vand.u32 %v5057, 2147483648
      %v5197 = vor.u32 1.1754944e-38, %v5196
      %v5198 = vsel %vm5195, %v5197, %v5193
      %v5199 = vmul.f32 1.0, %v5198
      %v5200 = vrcp.pop %v5058
      %v5201 = vmul.f32 %v5058, %v5200
      %v5202 = vsub.f32 1.0, %v5201
      %v5203 = vmul.f32 %v5200, %v5202
      %v5204 = vadd.f32 %v5200, %v5203
      %vm5205 = vweird.f32 %v5058
      %vm5206 = vweird.f32 %v5200
      %vm5207 = vmor %vm5205, %vm5206
      %v5208 = vsel %vm5207, %v5200, %v5204
      %v5209 = vand.u32 2147483647, %v5058
      %vm5210 = vcmp.eq.f32.partialorder %v5209, 8.507059e+37
      %v5211 = vand.u32 %v5058, 2147483648
      %v5212 = vor.u32 1.1754944e-38, %v5211
      %v5213 = vsel %vm5210, %v5212, %v5208
      %v5214 = vmul.f32 1.0, %v5213
      %v5215 = vrcp.pop %v5059
      %v5216 = vmul.f32 %v5059, %v5215
      %v5217 = vsub.f32 1.0, %v5216
      %v5218 = vmul.f32 %v5215, %v5217
      %v5219 = vadd.f32 %v5215, %v5218
      %vm5220 = vweird.f32 %v5059
      %vm5221 = vweird.f32 %v5215
      %vm5222 = vmor %vm5220, %vm5221
      %v5223 = vsel %vm5222, %v5215, %v5219
      %v5224 = vand.u32 2147483647, %v5059
      %vm5225 = vcmp.eq.f32.partialorder %v5224, 8.507059e+37
      %v5226 = vand.u32 %v5059, 2147483648
      %v5227 = vor.u32 1.1754944e-38, %v5226
      %v5228 = vsel %vm5225, %v5227, %v5223
      %v5229 = vmul.f32 1.0, %v5228
      %v5230 = vrcp.pop %v5060
      %v5231 = vmul.f32 %v5060, %v5230
      %v5232 = vsub.f32 1.0, %v5231
      %v5233 = vmul.f32 %v5230, %v5232
      %v5234 = vadd.f32 %v5230, %v5233
      %vm5235 = vweird.f32 %v5060
      %vm5236 = vweird.f32 %v5230
      %vm5237 = vmor %vm5235, %vm5236
      %v5238 = vsel %vm5237, %v5230, %v5234
      %v5239 = vand.u32 2147483647, %v5060
      %vm5240 = vcmp.eq.f32.partialorder %v5239, 8.507059e+37
      %v5241 = vand.u32 %v5060, 2147483648
      %v5242 = vor.u32 1.1754944e-38, %v5241
      %v5243 = vsel %vm5240, %v5242, %v5238
      %v5244 = vmul.f32 1.0, %v5243
      %v5245 = vrcp.pop %v5061
      %v5246 = vmul.f32 %v5061, %v5245
      %v5247 = vsub.f32 1.0, %v5246
      %v5248 = vmul.f32 %v5245, %v5247
      %v5249 = vadd.f32 %v5245, %v5248
      %vm5250 = vweird.f32 %v5061
      %vm5251 = vweird.f32 %v5245
      %vm5252 = vmor %vm5250, %vm5251
      %v5253 = vsel %vm5252, %v5245, %v5249
      %v5254 = vand.u32 2147483647, %v5061
      %vm5255 = vcmp.eq.f32.partialorder %v5254, 8.507059e+37
      %v5256 = vand.u32 %v5061, 2147483648
      %v5257 = vor.u32 1.1754944e-38, %v5256
      %v5258 = vsel %vm5255, %v5257, %v5253
      %v5259 = vmul.f32 1.0, %v5258
      %v5260 = vrcp.pop %v5062
      %v5261 = vmul.f32 %v5062, %v5260
      %v5262 = vsub.f32 1.0, %v5261
      %v5263 = vmul.f32 %v5260, %v5262
      %v5264 = vadd.f32 %v5260, %v5263
      %vm5265 = vweird.f32 %v5062
      %vm5266 = vweird.f32 %v5260
      %vm5267 = vmor %vm5265, %vm5266
      %v5268 = vsel %vm5267, %v5260, %v5264
      %v5269 = vand.u32 2147483647, %v5062
      %vm5270 = vcmp.eq.f32.partialorder %v5269, 8.507059e+37
      %v5271 = vand.u32 %v5062, 2147483648
      %v5272 = vor.u32 1.1754944e-38, %v5271
      %v5273 = vsel %vm5270, %v5272, %v5268
      %v5274 = vmul.f32 1.0, %v5273
      %v5275 = vrcp.pop %v5063
      %v5276 = vmul.f32 %v5063, %v5275
      %v5277 = vsub.f32 1.0, %v5276
      %v5278 = vmul.f32 %v5275, %v5277
      %v5279 = vadd.f32 %v5275, %v5278
      %vm5280 = vweird.f32 %v5063
      %vm5281 = vweird.f32 %v5275
      %vm5282 = vmor %vm5280, %vm5281
      %v5283 = vsel %vm5282, %v5275, %v5279
      %v5284 = vand.u32 2147483647, %v5063
      %vm5285 = vcmp.eq.f32.partialorder %v5284, 8.507059e+37
      %v5286 = vand.u32 %v5063, 2147483648
      %v5287 = vor.u32 1.1754944e-38, %v5286
      %v5288 = vsel %vm5285, %v5287, %v5283
      %v5289 = vmul.f32 1.0, %v5288
      %v5290 = vrcp.pop %v5064
      %v5291 = vmul.f32 %v5064, %v5290
      %v5292 = vsub.f32 1.0, %v5291
      %v5293 = vmul.f32 %v5290, %v5292
      %v5294 = vadd.f32 %v5290, %v5293
      %vm5295 = vweird.f32 %v5064
      %vm5296 = vweird.f32 %v5290
      %vm5297 = vmor %vm5295, %vm5296
      %v5298 = vsel %vm5297, %v5290, %v5294
      %v5299 = vand.u32 2147483647, %v5064
      %vm5300 = vcmp.eq.f32.partialorder %v5299, 8.507059e+37
      %v5301 = vand.u32 %v5064, 2147483648
      %v5302 = vor.u32 1.1754944e-38, %v5301
      %v5303 = vsel %vm5300, %v5302, %v5298
      %v5304 = vmul.f32 1.0, %v5303
      %v5305 = vmul.f32 %v5079, 1.0614054
      %v5306 = vmul.f32 %v5094, 1.0614054
      %v5307 = vmul.f32 %v5109, 1.0614054
      %v5308 = vmul.f32 %v5124, 1.0614054
      %v5309 = vmul.f32 %v5139, 1.0614054
      %v5310 = vmul.f32 %v5154, 1.0614054
      %v5311 = vmul.f32 %v5169, 1.0614054
      %v5312 = vmul.f32 %v5184, 1.0614054
      %v5313 = vmul.f32 %v5199, 1.0614054
      %v5314 = vmul.f32 %v5214, 1.0614054
      %v5315 = vmul.f32 %v5229, 1.0614054
      %v5316 = vmul.f32 %v5244, 1.0614054
      %v5317 = vmul.f32 %v5259, 1.0614054
      %v5318 = vmul.f32 %v5274, 1.0614054
      %v5319 = vmul.f32 %v5289, 1.0614054
      %v5320 = vmul.f32 %v5304, 1.0614054
      %v5321 = vadd.f32 %v5305, -1.4531521
      %v5322 = vadd.f32 %v5306, -1.4531521
      %v5323 = vadd.f32 %v5307, -1.4531521
      %v5324 = vadd.f32 %v5308, -1.4531521
      %v5325 = vadd.f32 %v5309, -1.4531521
      %v5326 = vadd.f32 %v5310, -1.4531521
      %v5327 = vadd.f32 %v5311, -1.4531521
      %v5328 = vadd.f32 %v5312, -1.4531521
      %v5329 = vadd.f32 %v5313, -1.4531521
      %v5330 = vadd.f32 %v5314, -1.4531521
      %v5331 = vadd.f32 %v5315, -1.4531521
      %v5332 = vadd.f32 %v5316, -1.4531521
      %v5333 = vadd.f32 %v5317, -1.4531521
      %v5334 = vadd.f32 %v5318, -1.4531521
      %v5335 = vadd.f32 %v5319, -1.4531521
      %v5336 = vadd.f32 %v5320, -1.4531521
      %v5337 = vmul.f32 %v5321, %v5079
      %v5338 = vmul.f32 %v5322, %v5094
      %v5339 = vmul.f32 %v5323, %v5109
      %v5340 = vmul.f32 %v5324, %v5124
      %v5341 = vmul.f32 %v5325, %v5139
      %v5342 = vmul.f32 %v5326, %v5154
      %v5343 = vmul.f32 %v5327, %v5169
      %v5344 = vmul.f32 %v5328, %v5184
      %v5345 = vmul.f32 %v5329, %v5199
      %v5346 = vmul.f32 %v5330, %v5214
      %v5347 = vmul.f32 %v5331, %v5229
      %v5348 = vmul.f32 %v5332, %v5244
      %v5349 = vmul.f32 %v5333, %v5259
      %v5350 = vmul.f32 %v5334, %v5274
      %v5351 = vmul.f32 %v5335, %v5289
      %v5352 = vmul.f32 %v5336, %v5304
      %v5353 = vadd.f32 %v5337, 1.4214138
      %v5354 = vadd.f32 %v5338, 1.4214138
      %v5355 = vadd.f32 %v5339, 1.4214138
      %v5356 = vadd.f32 %v5340, 1.4214138
      %v5357 = vadd.f32 %v5341, 1.4214138
      %v5358 = vadd.f32 %v5342, 1.4214138
      %v5359 = vadd.f32 %v5343, 1.4214138
      %v5360 = vadd.f32 %v5344, 1.4214138
      %v5361 = vadd.f32 %v5345, 1.4214138
      %v5362 = vadd.f32 %v5346, 1.4214138
      %v5363 = vadd.f32 %v5347, 1.4214138
      %v5364 = vadd.f32 %v5348, 1.4214138
      %v5365 = vadd.f32 %v5349, 1.4214138
      %v5366 = vadd.f32 %v5350, 1.4214138
      %v5367 = vadd.f32 %v5351, 1.4214138
      %v5368 = vadd.f32 %v5352, 1.4214138
      %v5369 = vmul.f32 %v5353, %v5079
      %v5370 = vmul.f32 %v5354, %v5094
      %v5371 = vmul.f32 %v5355, %v5109
      %v5372 = vmul.f32 %v5356, %v5124
      %v5373 = vmul.f32 %v5357, %v5139
      %v5374 = vmul.f32 %v5358, %v5154
      %v5375 = vmul.f32 %v5359, %v5169
      %v5376 = vmul.f32 %v5360, %v5184
      %v5377 = vmul.f32 %v5361, %v5199
      %v5378 = vmul.f32 %v5362, %v5214
      %v5379 = vmul.f32 %v5363, %v5229
      %v5380 = vmul.f32 %v5364, %v5244
      %v5381 = vmul.f32 %v5365, %v5259
      %v5382 = vmul.f32 %v5366, %v5274
      %v5383 = vmul.f32 %v5367, %v5289
      %v5384 = vmul.f32 %v5368, %v5304
      %v5385 = vadd.f32 %v5369, -0.28449672
      %v5386 = vadd.f32 %v5370, -0.28449672
      %v5387 = vadd.f32 %v5371, -0.28449672
      %v5388 = vadd.f32 %v5372, -0.28449672
      %v5389 = vadd.f32 %v5373, -0.28449672
      %v5390 = vadd.f32 %v5374, -0.28449672
      %v5391 = vadd.f32 %v5375, -0.28449672
      %v5392 = vadd.f32 %v5376, -0.28449672
      %v5393 = vadd.f32 %v5377, -0.28449672
      %v5394 = vadd.f32 %v5378, -0.28449672
      %v5395 = vadd.f32 %v5379, -0.28449672
      %v5396 = vadd.f32 %v5380, -0.28449672
      %v5397 = vadd.f32 %v5381, -0.28449672
      %v5398 = vadd.f32 %v5382, -0.28449672
      %v5399 = vadd.f32 %v5383, -0.28449672
      %v5400 = vadd.f32 %v5384, -0.28449672
      %v5401 = vmul.f32 %v5385, %v5079
      %v5402 = vmul.f32 %v5386, %v5094
      %v5403 = vmul.f32 %v5387, %v5109
      %v5404 = vmul.f32 %v5388, %v5124
      %v5405 = vmul.f32 %v5389, %v5139
      %v5406 = vmul.f32 %v5390, %v5154
      %v5407 = vmul.f32 %v5391, %v5169
      %v5408 = vmul.f32 %v5392, %v5184
      %v5409 = vmul.f32 %v5393, %v5199
      %v5410 = vmul.f32 %v5394, %v5214
      %v5411 = vmul.f32 %v5395, %v5229
      %v5412 = vmul.f32 %v5396, %v5244
      %v5413 = vmul.f32 %v5397, %v5259
      %v5414 = vmul.f32 %v5398, %v5274
      %v5415 = vmul.f32 %v5399, %v5289
      %v5416 = vmul.f32 %v5400, %v5304
      %v5417 = vadd.f32 %v5401, 0.2548296
      %v5418 = vadd.f32 %v5402, 0.2548296
      %v5419 = vadd.f32 %v5403, 0.2548296
      %v5420 = vadd.f32 %v5404, 0.2548296
      %v5421 = vadd.f32 %v5405, 0.2548296
      %v5422 = vadd.f32 %v5406, 0.2548296
      %v5423 = vadd.f32 %v5407, 0.2548296
      %v5424 = vadd.f32 %v5408, 0.2548296
      %v5425 = vadd.f32 %v5409, 0.2548296
      %v5426 = vadd.f32 %v5410, 0.2548296
      %v5427 = vadd.f32 %v5411, 0.2548296
      %v5428 = vadd.f32 %v5412, 0.2548296
      %v5429 = vadd.f32 %v5413, 0.2548296
      %v5430 = vadd.f32 %v5414, 0.2548296
      %v5431 = vadd.f32 %v5415, 0.2548296
      %v5432 = vadd.f32 %v5416, 0.2548296
      %v5433 = vmul.f32 %v5417, %v5079
      %v5434 = vmul.f32 %v5418, %v5094
      %v5435 = vmul.f32 %v5419, %v5109
      %v5436 = vmul.f32 %v5420, %v5124
      %v5437 = vmul.f32 %v5421, %v5139
      %v5438 = vmul.f32 %v5422, %v5154
      %v5439 = vmul.f32 %v5423, %v5169
      %v5440 = vmul.f32 %v5424, %v5184
      %v5441 = vmul.f32 %v5425, %v5199
      %v5442 = vmul.f32 %v5426, %v5214
      %v5443 = vmul.f32 %v5427, %v5229
      %v5444 = vmul.f32 %v5428, %v5244
      %v5445 = vmul.f32 %v5429, %v5259
      %v5446 = vmul.f32 %v5430, %v5274
      %v5447 = vmul.f32 %v5431, %v5289
      %v5448 = vmul.f32 %v5432, %v5304
      %v5449 = vsub.f32 0.0, %v5017
      %v5450 = vsub.f32 0.0, %v5018
      %v5451 = vsub.f32 0.0, %v5019
      %v5452 = vsub.f32 0.0, %v5020
      %v5453 = vsub.f32 0.0, %v5021
      %v5454 = vsub.f32 0.0, %v5022
      %v5455 = vsub.f32 0.0, %v5023
      %v5456 = vsub.f32 0.0, %v5024
      %v5457 = vsub.f32 0.0, %v5025
      %v5458 = vsub.f32 0.0, %v5026
      %v5459 = vsub.f32 0.0, %v5027
      %v5460 = vsub.f32 0.0, %v5028
      %v5461 = vsub.f32 0.0, %v5029
      %v5462 = vsub.f32 0.0, %v5030
      %v5463 = vsub.f32 0.0, %v5031
      %v5464 = vsub.f32 0.0, %v5032
      %v5465 = vmul.f32 %v5449, %v5017
      %v5466 = vmul.f32 %v5450, %v5018
      %v5467 = vmul.f32 %v5451, %v5019
      %v5468 = vmul.f32 %v5452, %v5020
      %v5469 = vmul.f32 %v5453, %v5021
      %v5470 = vmul.f32 %v5454, %v5022
      %v5471 = vmul.f32 %v5455, %v5023
      %v5472 = vmul.f32 %v5456, %v5024
      %v5473 = vmul.f32 %v5457, %v5025
      %v5474 = vmul.f32 %v5458, %v5026
      %v5475 = vmul.f32 %v5459, %v5027
      %v5476 = vmul.f32 %v5460, %v5028
      %v5477 = vmul.f32 %v5461, %v5029
      %v5478 = vmul.f32 %v5462, %v5030
      %v5479 = vmul.f32 %v5463, %v5031
      %v5480 = vmul.f32 %v5464, %v5032
      %v5481 = vmul.f32 %v5465, 1.442695
      %v5482 = vpow.pop %v5481
      %v5483 = vmul.f32 %v5466, 1.442695
      %v5484 = vpow.pop %v5483
      %v5485 = vmul.f32 %v5467, 1.442695
      %v5486 = vpow.pop %v5485
      %v5487 = vmul.f32 %v5468, 1.442695
      %v5488 = vpow.pop %v5487
      %v5489 = vmul.f32 %v5469, 1.442695
      %v5490 = vpow.pop %v5489
      %v5491 = vmul.f32 %v5470, 1.442695
      %v5492 = vpow.pop %v5491
      %v5493 = vmul.f32 %v5471, 1.442695
      %v5494 = vpow.pop %v5493
      %v5495 = vmul.f32 %v5472, 1.442695
      %v5496 = vpow.pop %v5495
      %v5497 = vmul.f32 %v5473, 1.442695
      %v5498 = vpow.pop %v5497
      %v5499 = vmul.f32 %v5474, 1.442695
      %v5500 = vpow.pop %v5499
      %v5501 = vmul.f32 %v5475, 1.442695
      %v5502 = vpow.pop %v5501
      %v5503 = vmul.f32 %v5476, 1.442695
      %v5504 = vpow.pop %v5503
      %v5505 = vmul.f32 %v5477, 1.442695
      %v5506 = vpow.pop %v5505
      %v5507 = vmul.f32 %v5478, 1.442695
      %v5508 = vpow.pop %v5507
      %v5509 = vmul.f32 %v5479, 1.442695
      %v5510 = vpow.pop %v5509
      %v5511 = vmul.f32 %v5480, 1.442695
      %v5512 = vpow.pop %v5511
      %v5513 = vmul.f32 %v5433, %v5482
      %v5514 = vmul.f32 %v5434, %v5484
      %v5515 = vmul.f32 %v5435, %v5486
      %v5516 = vmul.f32 %v5436, %v5488
      %v5517 = vmul.f32 %v5437, %v5490
      %v5518 = vmul.f32 %v5438, %v5492
      %v5519 = vmul.f32 %v5439, %v5494
      %v5520 = vmul.f32 %v5440, %v5496
      %v5521 = vmul.f32 %v5441, %v5498
      %v5522 = vmul.f32 %v5442, %v5500
      %v5523 = vmul.f32 %v5443, %v5502
      %v5524 = vmul.f32 %v5444, %v5504
      %v5525 = vmul.f32 %v5445, %v5506
      %v5526 = vmul.f32 %v5446, %v5508
      %v5527 = vmul.f32 %v5447, %v5510
      %v5528 = vmul.f32 %v5448, %v5512
      %v5529 = vsub.f32 1.0, %v5513
      %v5530 = vsub.f32 1.0, %v5514
      %v5531 = vsub.f32 1.0, %v5515
      %v5532 = vsub.f32 1.0, %v5516
      %v5533 = vsub.f32 1.0, %v5517
      %v5534 = vsub.f32 1.0, %v5518
      %v5535 = vsub.f32 1.0, %v5519
      %v5536 = vsub.f32 1.0, %v5520
      %v5537 = vsub.f32 1.0, %v5521
      %v5538 = vsub.f32 1.0, %v5522
      %v5539 = vsub.f32 1.0, %v5523
      %v5540 = vsub.f32 1.0, %v5524
      %v5541 = vsub.f32 1.0, %v5525
      %v5542 = vsub.f32 1.0, %v5526
      %v5543 = vsub.f32 1.0, %v5527
      %v5544 = vsub.f32 1.0, %v5528
      %v5545 = vmul.f32 %v5001, %v5529
      %v5546 = vmul.f32 %v5002, %v5530
      %v5547 = vmul.f32 %v5003, %v5531
      %v5548 = vmul.f32 %v5004, %v5532
      %v5549 = vmul.f32 %v5005, %v5533
      %v5550 = vmul.f32 %v5006, %v5534
      %v5551 = vmul.f32 %v5007, %v5535
      %v5552 = vmul.f32 %v5008, %v5536
      %v5553 = vmul.f32 %v5009, %v5537
      %v5554 = vmul.f32 %v5010, %v5538
      %v5555 = vmul.f32 %v5011, %v5539
      %v5556 = vmul.f32 %v5012, %v5540
      %v5557 = vmul.f32 %v5013, %v5541
      %v5558 = vmul.f32 %v5014, %v5542
      %v5559 = vmul.f32 %v5015, %v5543
      %v5560 = vmul.f32 %v5016, %v5544
      %v5561 = vadd.f32 %v5545, 1.0
      %v5562 = vadd.f32 %v5546, 1.0
      %v5563 = vadd.f32 %v5547, 1.0
      %v5564 = vadd.f32 %v5548, 1.0
      %v5565 = vadd.f32 %v5549, 1.0
      %v5566 = vadd.f32 %v5550, 1.0
      %v5567 = vadd.f32 %v5551, 1.0
      %v5568 = vadd.f32 %v5552, 1.0
      %v5569 = vadd.f32 %v5553, 1.0
      %v5570 = vadd.f32 %v5554, 1.0
      %v5571 = vadd.f32 %v5555, 1.0
      %v5572 = vadd.f32 %v5556, 1.0
      %v5573 = vadd.f32 %v5557, 1.0
      %v5574 = vadd.f32 %v5558, 1.0
      %v5575 = vadd.f32 %v5559, 1.0
      %v5576 = vadd.f32 %v5560, 1.0
      %v5577 = vmul.f32 %v4953, %v5561
      %v5578 = vmul.f32 %v4954, %v5562
      %v5579 = vmul.f32 %v4955, %v5563
      %v5580 = vmul.f32 %v4956, %v5564
      %v5581 = vmul.f32 %v4957, %v5565
      %v5582 = vmul.f32 %v4958, %v5566
      %v5583 = vmul.f32 %v4959, %v5567
      %v5584 = vmul.f32 %v4960, %v5568
      %v5585 = vmul.f32 %v4961, %v5569
      %v5586 = vmul.f32 %v4962, %v5570
      %v5587 = vmul.f32 %v4963, %v5571
      %v5588 = vmul.f32 %v4964, %v5572
      %v5589 = vmul.f32 %v4965, %v5573
      %v5590 = vmul.f32 %v4966, %v5574
      %v5591 = vmul.f32 %v4967, %v5575
      %v5592 = vmul.f32 %v4968, %v5576
      %v5593 = vpack.c.bf16 %v5579, %v5577
      %v5594 = vpack.c.bf16 %v5580, %v5578
      %v5595 = vpack.c.bf16 %v5583, %v5581
      %v5596 = vpack.c.bf16 %v5584, %v5582
      %v5597 = vpack.c.bf16 %v5587, %v5585
      %v5598 = vpack.c.bf16 %v5588, %v5586
      %v5599 = vpack.c.bf16 %v5591, %v5589
      %v5600 = vpack.c.bf16 %v5592, %v5590
      %v5601 = vld [vmem:[%s11] sm:$0xf]
      %v5602 = vld [vmem:[%s11 + $0x4] sm:$0xf]
      %v5603 = vld [vmem:[%s11 + $0x8] sm:$0xf]
      %v5604 = vld [vmem:[%s11 + $0xc] sm:$0xf]
      %v5605 = vld [vmem:[%s11 + $0x10] sm:$0xf]
      %v5606 = vld [vmem:[%s11 + $0x14] sm:$0xf]
      %v5607 = vld [vmem:[%s11 + $0x18] sm:$0xf]
      %v5608 = vld [vmem:[%s11 + $0x1c] sm:$0xf]
      %v5609 = vld [vmem:[%s11 + $0x20] sm:$0xf]
      %v5610 = vld [vmem:[%s11 + $0x24] sm:$0xf]
      %v5611 = vld [vmem:[%s11 + $0x28] sm:$0xf]
      %v5612 = vld [vmem:[%s11 + $0x2c] sm:$0xf]
      %v5613 = vld [vmem:[%s11 + $0x30] sm:$0xf]
      %v5614 = vld [vmem:[%s11 + $0x34] sm:$0xf]
      %v5615 = vld [vmem:[%s11 + $0x38] sm:$0xf]
      %v5616 = vld [vmem:[%s11 + $0x3c] sm:$0xf]
      %v5617 = vld [vmem:[%s11 + $0x40] sm:$0xf]
      %v5618 = vld [vmem:[%s11 + $0x44] sm:$0xf]
      %v5619 = vld [vmem:[%s11 + $0x48] sm:$0xf]
      %v5620 = vld [vmem:[%s11 + $0x4c] sm:$0xf]
      %v5621 = vld [vmem:[%s11 + $0x50] sm:$0xf]
      %v5622 = vld [vmem:[%s11 + $0x54] sm:$0xf]
      %v5623 = vld [vmem:[%s11 + $0x58] sm:$0xf]
      %v5624 = vld [vmem:[%s11 + $0x5c] sm:$0xf]
      %v5625 = vld [vmem:[%s11 + $0x60] sm:$0xf]
      %v5626 = vld [vmem:[%s11 + $0x64] sm:$0xf]
      %v5627 = vld [vmem:[%s11 + $0x68] sm:$0xf]
      %v5628 = vld [vmem:[%s11 + $0x6c] sm:$0xf]
      %v5629 = vld [vmem:[%s11 + $0x70] sm:$0xf]
      %v5630 = vld [vmem:[%s11 + $0x74] sm:$0xf]
      %v5631 = vld [vmem:[%s11 + $0x78] sm:$0xf]
      %v5632 = vld [vmem:[%s11 + $0x7c] sm:$0xf]
      %v5633 = vld [vmem:[%s12] sm:$0x1]
      %v5635 = vperm.slane %v5633, 0
      %v5669 = vunpack.c.l.b16 %v5601
      %v5670 = vunpack.c.l.b16 %v5602
      %v5671 = vunpack.c.l.b16 %v5603
      %v5672 = vunpack.c.l.b16 %v5604
      %v5673 = vunpack.c.l.b16 %v5605
      %v5674 = vunpack.c.l.b16 %v5606
      %v5675 = vunpack.c.l.b16 %v5607
      %v5676 = vunpack.c.l.b16 %v5608
      %v5677 = vunpack.c.l.b16 %v5609
      %v5678 = vunpack.c.l.b16 %v5610
      %v5679 = vunpack.c.l.b16 %v5611
      %v5680 = vunpack.c.l.b16 %v5612
      %v5681 = vunpack.c.l.b16 %v5613
      %v5682 = vunpack.c.l.b16 %v5614
      %v5683 = vunpack.c.l.b16 %v5615
      %v5684 = vunpack.c.l.b16 %v5616
      %v5685 = vunpack.c.l.b16 %v5617
      %v5686 = vunpack.c.l.b16 %v5618
      %v5687 = vunpack.c.l.b16 %v5619
      %v5688 = vunpack.c.l.b16 %v5620
      %v5689 = vunpack.c.l.b16 %v5621
      %v5690 = vunpack.c.l.b16 %v5622
      %v5691 = vunpack.c.l.b16 %v5623
      %v5692 = vunpack.c.l.b16 %v5624
      %v5693 = vunpack.c.l.b16 %v5625
      %v5694 = vunpack.c.l.b16 %v5626
      %v5695 = vunpack.c.l.b16 %v5627
      %v5696 = vunpack.c.l.b16 %v5628
      %v5697 = vunpack.c.l.b16 %v5629
      %v5698 = vunpack.c.l.b16 %v5630
      %v5699 = vunpack.c.l.b16 %v5631
      %v5700 = vunpack.c.l.b16 %v5632
      %v5701 = vpack.c.b16 %v5670, %v5669
      %v5702 = vpack.c.b16 %v5672, %v5671
      %v5703 = vpack.c.b16 %v5674, %v5673
      %v5704 = vpack.c.b16 %v5676, %v5675
      %v5705 = vpack.c.b16 %v5678, %v5677
      %v5706 = vpack.c.b16 %v5680, %v5679
      %v5707 = vpack.c.b16 %v5682, %v5681
      %v5708 = vpack.c.b16 %v5684, %v5683
      %v5709 = vpack.c.b16 %v5686, %v5685
      %v5710 = vpack.c.b16 %v5688, %v5687
      %v5711 = vpack.c.b16 %v5690, %v5689
      %v5712 = vpack.c.b16 %v5692, %v5691
      %v5713 = vpack.c.b16 %v5694, %v5693
      %v5714 = vpack.c.b16 %v5696, %v5695
      %v5715 = vpack.c.b16 %v5698, %v5697
      %v5716 = vpack.c.b16 %v5700, %v5699
      %5733 = vmatpush.bf16.msra.mxu0 %v5708
      %5734 = vmatpush.bf16.msra.mxu0 %v5707
      %5735 = vmatpush.bf16.msra.mxu0 %v5706
      %5736 = vmatpush.bf16.msra.mxu0 %v5705
      %5737 = vmatpush.bf16.msra.mxu0 %v5704
      %5738 = vmatpush.bf16.msra.mxu0 %v5703
      %5739 = vmatpush.bf16.msra.mxu0 %v5702
      %5740 = vmatpush.bf16.msra.mxu0 %v5701
      %5741 = vmatmul.bf16.gmra.mxu0 %v5593
      %v5742 = vpop.f32.mrf.mxu0
      %v5743 = vadd.f32 %v5635, %v5742
      %v5744 = vpop.f32.mrf.mxu0
      %v5745 = vadd.f32 %v5635, %v5744
      %5746 = vmatmul.bf16.gmra.mxu0 %v5595
      %v5747 = vpop.f32.mrf.mxu0
      %v5748 = vadd.f32 %v5635, %v5747
      %v5749 = vpop.f32.mrf.mxu0
      %v5750 = vadd.f32 %v5635, %v5749
      %5751 = vmatmul.bf16.gmra.mxu0 %v5597
      %v5752 = vpop.f32.mrf.mxu0
      %v5753 = vadd.f32 %v5635, %v5752
      %v5754 = vpop.f32.mrf.mxu0
      %v5755 = vadd.f32 %v5635, %v5754
      %5756 = vmatmul.bf16.gmra.mxu0 %v5599
      %v5757 = vpop.f32.mrf.mxu0
      %v5758 = vadd.f32 %v5635, %v5757
      %v5759 = vpop.f32.mrf.mxu0
      %v5760 = vadd.f32 %v5635, %v5759
      %5761 = vdwg.mxu0
      %5762 = vmatpush.bf16.msra.mxu0 %v5716
      %5763 = vmatpush.bf16.msra.mxu0 %v5715
      %5764 = vmatpush.bf16.msra.mxu0 %v5714
      %5765 = vmatpush.bf16.msra.mxu0 %v5713
      %5766 = vmatpush.bf16.msra.mxu0 %v5712
      %5767 = vmatpush.bf16.msra.mxu0 %v5711
      %5768 = vmatpush.bf16.msra.mxu0 %v5710
      %5769 = vmatpush.bf16.msra.mxu0 %v5709
      %5770 = vmatmul.bf16.gmra.mxu0 %v5594
      %v5771 = vpop.f32.mrf.mxu0
      %v5772 = vadd.f32 %v5743, %v5771
      %v5773 = vpop.f32.mrf.mxu0
      %v5774 = vadd.f32 %v5745, %v5773
      %5775 = vmatmul.bf16.gmra.mxu0 %v5596
      %v5776 = vpop.f32.mrf.mxu0
      %v5777 = vadd.f32 %v5748, %v5776
      %v5778 = vpop.f32.mrf.mxu0
      %v5779 = vadd.f32 %v5750, %v5778
      %5780 = vmatmul.bf16.gmra.mxu0 %v5598
      %v5781 = vpop.f32.mrf.mxu0
      %v5782 = vadd.f32 %v5753, %v5781
      %v5783 = vpop.f32.mrf.mxu0
      %v5784 = vadd.f32 %v5755, %v5783
      %5785 = vmatmul.bf16.gmra.mxu0 %v5600
      %v5786 = vpop.f32.mrf.mxu0
      %v5787 = vadd.f32 %v5758, %v5786
      %v5788 = vpop.f32.mrf.mxu0
      %v5789 = vadd.f32 %v5760, %v5788
      %5790 = vdwg.mxu0
      %v5791 = vadd.f32 %v4617, %v5772
      %v5792 = vadd.f32 %v4618, %v5774
      %v5793 = vadd.f32 %v4619, %v5777
      %v5794 = vadd.f32 %v4620, %v5779
      %v5795 = vadd.f32 %v4621, %v5782
      %v5796 = vadd.f32 %v4622, %v5784
      %v5797 = vadd.f32 %v4623, %v5787
      %v5798 = vadd.f32 %v4624, %v5789
      %5799 = vst.msk [vmem:[%s462] sm:$0xff] %vm493, %v5791
      %5800 = vst.msk [vmem:[%s462 + $0x8] sm:$0xff] %vm493, %v5792
      %5801 = vst.msk [vmem:[%s462 + $0x10] sm:$0xff] %vm493, %v5793
      %5802 = vst.msk [vmem:[%s462 + $0x18] sm:$0xff] %vm493, %v5794
      %5803 = vst.msk [vmem:[%s462 + $0x20] sm:$0xff] %vm493, %v5795
      %5804 = vst.msk [vmem:[%s462 + $0x28] sm:$0xff] %vm493, %v5796
      %5805 = vst.msk [vmem:[%s462 + $0x30] sm:$0xff] %vm493, %v5797
      %5806 = vst.msk [vmem:[%s462 + $0x38] sm:$0xff] %vm493, %v5798
      %s5807 = smul.u32 8, %s29
      %p5808 = scmp.lt.s32.totalorder %s28, 1
      %s5809 = scalar_select %p5808, %s28, 1
      %p5810 = scmp.lt.s32.totalorder %s5807, 15
      %s5811 = scalar_select %p5810, %s5807, 15
      %s5812 = smul.addr %s5809, 16
      %s5813 = sadd.s32 %s5811, %s5812
      %s5814 = smul.addr %s5813, 8
      %s5815 = scalar_lea.vmem %s13, %s5814
      // Predicated region
      $region73: #{block_forward.1} parent=71 // pred_check
        %p5816 = pneg %p334
      $region74: #{block_forward.1} parent=71 // pred_check_branch
        %5818 = sbr.rel (%p5816) target = $region76
      $region75: #{block_forward.1} parent=71 // pred_region
        %s5819 = smul.u32 8, %s29
      $region76: #{block_forward.1} parent=71 // pred_fallthru
        _
    $region72: #{block_forward.1} parent=5 // pred_fallthru
      _
    %p5820 = scmp.le.s32.totalorder 2, %s19
    // Predicated region
    $region77: #{block_forward.1} parent=5 // pred_check
      %p5821 = pneg %p5820
    $region78: #{block_forward.1} parent=5 // pred_check_branch
      %5823 = sbr.rel (%p5821) target = $region80
    $region79: #{block_forward.1} parent=5 // pred_region
      %s5824 = ssub.s32 %s19, 2
      // Predicated region
      $region81: #{block_forward.1} parent=79 // pred_check
        %p5825 = pneg %p340
      $region82: #{block_forward.1} parent=79 // pred_check_branch
        %5827 = sbr.rel (%p5825) target = $region84
      $region83: #{block_forward.1} parent=79 // pred_region
        %s5828 = smul.u32 8, %s31
        %p5829 = scmp.lt.s32.totalorder %s30, 1
        %s5830 = scalar_select %p5829, %s30, 1
        %p5831 = scmp.lt.s32.totalorder %s5828, 15
        %s5832 = scalar_select %p5831, %s5828, 15
        %s5833 = smul.addr %s5830, 16
        %s5834 = sadd.s32 %s5832, %s5833
        %s5835 = smul.addr %s5834, 8
        %s5836 = scalar_lea.vmem %s13, %s5835
      $region84: #{block_forward.1} parent=79 // pred_fallthru
        _
    $region80: #{block_forward.1} parent=5 // pred_fallthru
      _
  $region6: #{block_forward.1} parent=0 // loop_footer
    %s23 = sadd.s32 1, %s19
  $region7: #{block_forward.1} parent=0 // loop_footer_branch
    %18 = sbr.rel target = $region3
  $region8: #{block_forward.1} parent=0 // loop_exit
    _

</llo_original>
